<compile_context>
chip_gen: v6e
topology: v6e:2x2x1
jax: 0.10.0
libtpu: 0.0.40
codegen_flags: <defaults>
</compile_context>

<pallas_src>
import math
import functools

import jax
import jax.numpy as jnp
from jax.experimental import pallas as pl
from jax.experimental.pallas import tpu as pltpu


# ----------------------------------------------------------------------------
# helpers
# ----------------------------------------------------------------------------
def _layernorm(x, g, b, eps=1e-5):
    x = x.astype(jnp.float32)
    mu = jnp.mean(x, axis=-1, keepdims=True)
    var = jnp.mean((x - mu) ** 2, axis=-1, keepdims=True)
    return (x - mu) * jax.lax.rsqrt(var + eps) * g + b


def sinusoidal_pe(T, M):
    pos = jnp.arange(T, dtype=jnp.float32)[:, None]
    div = jnp.exp(jnp.arange(0, M, 2, dtype=jnp.float32) * (-math.log(10000.0) / M))
    pe = jnp.zeros((T, M), jnp.float32)
    pe = pe.at[:, 0::2].set(jnp.sin(pos * div))
    pe = pe.at[:, 1::2].set(jnp.cos(pos * div))
    return pe


# ----------------------------------------------------------------------------
# fused encoder kernel: one grid step == (one batch block, one encoder layer)
# ----------------------------------------------------------------------------
def _encoder_kernel(x_ref, add_ref,
                    ln1g_ref, ln1b_ref, wqkv_ref, wproj_ref, bproj_ref,
                    ln2g_ref, ln2b_ref, wfc1_ref, bfc1_ref, wfc2_ref, bfc2_ref,
                    ng_ref, nb_ref,
                    o_ref,
                    res_ref, attn_ref,
                    *, num_heads, bblk):
    d = pl.program_id(1)
    n_layers = pl.num_programs(1)

    Bblk, S, M = o_ref.shape
    R = Bblk * S
    hd = M // num_heads

    # First layer: load the input batch block and fuse the positional-embedding add.
    @pl.when(d == 0)
    def _init():
        x0 = x_ref[...].astype(jnp.float32) + add_ref[...][None]
        res_ref[...] = x0.reshape(R, M)

    x = res_ref[...]                                           # (R, M) f32 residual stream

    # ---------------- attention branch (pre-norm) ----------------
    xb = _layernorm(x, ln1g_ref[0], ln1b_ref[0]).astype(jnp.bfloat16)
    # fused QKV: one wide matmul, f32 accumulation; 1/sqrt(hd) already folded into Wq.
    qkv = jnp.dot(xb, wqkv_ref[0], preferred_element_type=jnp.float32)     # (R, 3M)

    # per-(batch-element, head) attention; small static trip count, 128-aligned static slices.
    for bi in range(bblk):
        r0 = bi * S
        for h in range(num_heads):
            c = h * hd
            qh = qkv[r0:r0 + S, c:c + hd].astype(jnp.bfloat16)
            kh = qkv[r0:r0 + S, M + c:M + c + hd].astype(jnp.bfloat16)
            vh = qkv[r0:r0 + S, 2 * M + c:2 * M + c + hd].astype(jnp.bfloat16)
            # q @ k^T via contracting the last dims of both (idiomatic MXU form, no concat).
            s = jax.lax.dot_general(qh, kh, (((1,), (1,)), ((), ())),
                                    preferred_element_type=jnp.float32)    # (S, S)
            s = s - jnp.max(s, axis=-1, keepdims=True)
            p = jnp.exp(s)
            p = p * pl.reciprocal(jnp.sum(p, axis=-1, keepdims=True), approx=True)
            oh = jnp.dot(p.astype(jnp.bfloat16), vh,
                         preferred_element_type=jnp.float32)               # (S, hd)
            # stage head output at its static 128-aligned lane offset (no per-head projection).
            attn_ref[r0:r0 + S, c:c + hd] = oh.astype(jnp.bfloat16)

    # single full-width output projection for all heads / batch rows.
    attn = jnp.dot(attn_ref[...], wproj_ref[0], preferred_element_type=jnp.float32)
    x = x + attn + bproj_ref[0]

    # ---------------- MLP branch (pre-norm) ----------------
    xb2 = _layernorm(x, ln2g_ref[0], ln2b_ref[0]).astype(jnp.bfloat16)
    h1 = jnp.dot(xb2, wfc1_ref[0], preferred_element_type=jnp.float32) + bfc1_ref[0]
    # TODO(synk): reference EncoderBlock not provided; tanh-approx GELU used here
    #             (PyTorch nn.GELU default is exact erf GELU).
    h1 = jax.nn.gelu(h1, approximate=True)
    h2 = jnp.dot(h1.astype(jnp.bfloat16), wfc2_ref[0],
                 preferred_element_type=jnp.float32) + bfc2_ref[0]
    y = x + h2

    res_ref[...] = y                                           # carry residual to next layer

    # Last layer: fuse the final LayerNorm and write the only HBM output of the whole encoder.
    @pl.when(d == n_layers - 1)
    def _final():
        yn = _layernorm(y, ng_ref[...], nb_ref[...])
        o_ref[...] = yn.reshape(Bblk, S, M).astype(o_ref.dtype)


# ----------------------------------------------------------------------------
# pallas_call wrapper
# ----------------------------------------------------------------------------
def _encoder_call(xs, add, p, *, num_heads, depth, bblk):
    B, S, M = xs.shape
    nb = B // bblk

    x_spec = pl.BlockSpec((bblk, S, M), lambda b, d: (b, 0, 0))

    def lspec(shape):                       # per-layer (depth-stacked) weight, streamed along d
        zeros = (0,) * (len(shape) - 1)
        return pl.BlockSpec((1,) + tuple(shape[1:]), lambda b, d: (d,) + zeros)

    def cspec(shape):                       # grid-invariant constants (tiny: add / final norm)
        zeros = (0,) * len(shape)
        return pl.BlockSpec(tuple(shape), lambda b, d: zeros)

    weights = [p["ln1_g"], p["ln1_b"], p["wqkv"], p["wproj"], p["bproj"],
               p["ln2_g"], p["ln2_b"], p["wfc1"], p["bfc1"], p["wfc2"], p["bfc2"]]

    in_specs = ([x_spec, cspec(add.shape)]
                + [lspec(w.shape) for w in weights]
                + [cspec(p["norm_g"].shape), cspec(p["norm_b"].shape)])

    kernel = functools.partial(_encoder_kernel, num_heads=num_heads, bblk=bblk)
    return pl.pallas_call(
        kernel,
        out_shape=jax.ShapeDtypeStruct((B, S, M), xs.dtype),
        grid=(nb, depth),
        in_specs=in_specs,
        out_specs=pl.BlockSpec((bblk, S, M), lambda b, d: (b, 0, 0)),
        scratch_shapes=[
            pltpu.VMEM((bblk * S, M), jnp.float32),    # residual stream carried across layers
            pltpu.VMEM((bblk * S, M), jnp.bfloat16),   # staged per-head attention outputs
        ],
        compiler_params=pltpu.CompilerParams(
            dimension_semantics=("parallel", "arbitrary"),
            vmem_limit_bytes=64 * 1024 * 1024),
    )(xs, add, *weights, p["norm_g"], p["norm_b"])


# ----------------------------------------------------------------------------
# parameters & full forward
# ----------------------------------------------------------------------------
def init_params(key, *, num_patches, embed_dim, depth, num_heads, mlp_ratio):
    M = embed_dim
    hd = M // num_heads
    Hm = int(M * mlp_ratio)
    scale = 1.0 / math.sqrt(hd)

    k_pos, key = jax.random.split(key)
    wqkv_l, wproj_l, wfc1_l, wfc2_l = [], [], [], []
    for _ in range(depth):
        kq, kp, k1, k2, key = jax.random.split(key, 5)
        wqkv = 0.02 * jax.random.normal(kq, (M, 3 * M), jnp.float32)
        wqkv = wqkv.at[:, :M].multiply(scale)        # fold 1/sqrt(head_dim) into Wq
        wqkv_l.append(wqkv.astype(jnp.bfloat16))
        wproj_l.append((0.02 * jax.random.normal(kp, (M, M), jnp.float32)).astype(jnp.bfloat16))
        wfc1_l.append((0.02 * jax.random.normal(k1, (M, Hm), jnp.float32)).astype(jnp.bfloat16))
        wfc2_l.append((0.02 * jax.random.normal(k2, (Hm, M), jnp.float32)).astype(jnp.bfloat16))

    return {
        "pos_embed": 0.02 * jax.random.truncated_normal(
            k_pos, -2.0, 2.0, (num_patches, M), jnp.float32),
        "norm_g": jnp.ones((1, M), jnp.float32),
        "norm_b": jnp.zeros((1, M), jnp.float32),
        "ln1_g": jnp.ones((depth, 1, M), jnp.float32),
        "ln1_b": jnp.zeros((depth, 1, M), jnp.float32),
        "wqkv": jnp.stack(wqkv_l),
        "wproj": jnp.stack(wproj_l),
        "bproj": jnp.zeros((depth, 1, M), jnp.float32),
        "ln2_g": jnp.ones((depth, 1, M), jnp.float32),
        "ln2_b": jnp.zeros((depth, 1, M), jnp.float32),
        "wfc1": jnp.stack(wfc1_l),
        "bfc1": jnp.zeros((depth, 1, Hm), jnp.float32),
        "wfc2": jnp.stack(wfc2_l),
        "bfc2": jnp.zeros((depth, 1, M), jnp.float32),
    }


def encoder_forward(x, params, *, num_heads, mask=None, bblk=None):
    """x: (B, T, N, M) -> (B, T, N, M), matching Encoder.forward (eval mode, dropout = 0)."""
    # TODO(synk): EncoderBlock mask semantics undefined in the reference; mask unsupported.
    assert mask is None
    B, T, N, M = x.shape
    S = T * N
    depth = params["wqkv"].shape[0]
    if bblk is None:
        bblk = next(bb for bb in (8, 4, 2, 1) if B % bb == 0)

    # per-token positional add in (t, n) sequence order: add[t*N + n] = pe[t] + pos_embed[n]
    add = (sinusoidal_pe(T, M)[:, None, :] + params["pos_embed"][None, :, :]).reshape(S, M)

    xs = x.reshape(B, S, M)                 # pure reshape, no transpose / extra HBM pass
    out = _encoder_call(xs, add, params, num_heads=num_heads, depth=depth, bblk=bblk)
    return out.reshape(B, T, N, M)


# ----------------------------------------------------------------------------
if __name__ == "__main__":
    B, T, N, M = 2, 4, 8, 256                # batch, num_frames, num_patches, embed_dim
    depth, num_heads, mlp_ratio = 2, 2, 4.0  # head_dim = 128 -> lane-dense per-head tiles

    key = jax.random.PRNGKey(0)
    kx, kp = jax.random.split(key)
    x = jax.random.normal(kx, (B, T, N, M), jnp.float32)
    params = init_params(kp, num_patches=N, embed_dim=M, depth=depth,
                         num_heads=num_heads, mlp_ratio=mlp_ratio)

    out = encoder_forward(x, params, num_heads=num_heads, mask=None)
    out = jax.block_until_ready(out)
    assert out.shape == (B, T, N, M) and out.dtype == jnp.float32
    assert bool(jnp.all(jnp.isfinite(out)))
    print("KERNEL_OK")
</pallas_src>

<mosaic_0001>
module attributes {stable_mosaic.version = 11 : i64} {
  func.func @_encoder_kernel(%arg0: i32, %arg1: i32, %arg2: memref<2x32x256xf32, #tpu.memory_space<vmem>>, %arg3: memref<32x256xf32, #tpu.memory_space<vmem>>, %arg4: memref<1x1x256xf32, #tpu.memory_space<vmem>>, %arg5: memref<1x1x256xf32, #tpu.memory_space<vmem>>, %arg6: memref<1x256x768xbf16, #tpu.memory_space<vmem>>, %arg7: memref<1x256x256xbf16, #tpu.memory_space<vmem>>, %arg8: memref<1x1x256xf32, #tpu.memory_space<vmem>>, %arg9: memref<1x1x256xf32, #tpu.memory_space<vmem>>, %arg10: memref<1x1x256xf32, #tpu.memory_space<vmem>>, %arg11: memref<1x256x1024xbf16, #tpu.memory_space<vmem>>, %arg12: memref<1x1x1024xf32, #tpu.memory_space<vmem>>, %arg13: memref<1x1024x256xbf16, #tpu.memory_space<vmem>>, %arg14: memref<1x1x256xf32, #tpu.memory_space<vmem>>, %arg15: memref<1x256xf32, #tpu.memory_space<vmem>>, %arg16: memref<1x256xf32, #tpu.memory_space<vmem>>, %arg17: memref<2x32x256xf32, #tpu.memory_space<vmem>>, %arg18: memref<64x256xf32, #tpu.memory_space<vmem>>, %arg19: memref<64x256xbf16, #tpu.memory_space<vmem>>) attributes {dimension_semantics = [#tpu.dimension_semantics<parallel>, #tpu.dimension_semantics<arbitrary>], iteration_bounds = array<i64: 1, 2>, scalar_prefetch = 0 : i64, scratch_operands = 2 : i64, tpu.core_type = #tpu.core_type<tc>, window_params = [{transform_indices = @transform_0, window_bounds = array<i64: 2, 32, 256>}, {pipeline_mode = #tpu.pipeline_mode<synchronous>, transform_indices = @transform_1, window_bounds = array<i64: 32, 256>}, {transform_indices = @transform_2, window_bounds = array<i64: 1, 1, 256>}, {transform_indices = @transform_3, window_bounds = array<i64: 1, 1, 256>}, {transform_indices = @transform_4, window_bounds = array<i64: 1, 256, 768>}, {transform_indices = @transform_5, window_bounds = array<i64: 1, 256, 256>}, {transform_indices = @transform_6, window_bounds = array<i64: 1, 1, 256>}, {transform_indices = @transform_7, window_bounds = array<i64: 1, 1, 256>}, {transform_indices = @transform_8, window_bounds = array<i64: 1, 1, 256>}, {transform_indices = @transform_9, window_bounds = array<i64: 1, 256, 1024>}, {transform_indices = @transform_10, window_bounds = array<i64: 1, 1, 1024>}, {transform_indices = @transform_11, window_bounds = array<i64: 1, 1024, 256>}, {transform_indices = @transform_12, window_bounds = array<i64: 1, 1, 256>}, {pipeline_mode = #tpu.pipeline_mode<synchronous>, transform_indices = @transform_13, window_bounds = array<i64: 1, 256>}, {pipeline_mode = #tpu.pipeline_mode<synchronous>, transform_indices = @transform_14, window_bounds = array<i64: 1, 256>}, {transform_indices = @transform_15, window_bounds = array<i64: 2, 32, 256>}]} {
    %c0_i32 = arith.constant 0 : i32
    %0 = arith.cmpi eq, %arg1, %c0_i32 : i32
    %1 = arith.extui %0 : i1 to i32
    %c0_i32_0 = arith.constant 0 : i32
    %2 = arith.cmpi ne, %1, %c0_i32_0 : i32
    scf.if %2 {
      %c0_79 = arith.constant 0 : index
      %c0_80 = arith.constant 0 : index
      %c0_81 = arith.constant 0 : index
      %187 = vector.load %arg2[%c0_79, %c0_80, %c0_81] : memref<2x32x256xf32, #tpu.memory_space<vmem>>, vector<2x32x256xf32>
      %c0_82 = arith.constant 0 : index
      %c0_83 = arith.constant 0 : index
      %188 = vector.load %arg3[%c0_82, %c0_83] : memref<32x256xf32, #tpu.memory_space<vmem>>, vector<32x256xf32>
      %189 = vector.shape_cast %188 : vector<32x256xf32> to vector<1x32x256xf32>
      %190 = vector.broadcast %189 : vector<1x32x256xf32> to vector<2x32x256xf32>
      %191 = arith.addf %187, %190 : vector<2x32x256xf32>
      %192 = vector.shape_cast %191 : vector<2x32x256xf32> to vector<64x256xf32>
      %c0_84 = arith.constant 0 : index
      %c0_85 = arith.constant 0 : index
      %193 = vector.load %arg18[%c0_84, %c0_85] : memref<64x256xf32, #tpu.memory_space<vmem>>, vector<64x256xf32>
      tpu.vector_store %arg18[%c0_84, %c0_85], %192 {strides = array<i32>} : memref<64x256xf32, #tpu.memory_space<vmem>>, vector<64x256xf32>,
    } else {
    }
    %c0 = arith.constant 0 : index
    %c0_1 = arith.constant 0 : index
    %3 = vector.load %arg18[%c0, %c0_1] : memref<64x256xf32, #tpu.memory_space<vmem>>, vector<64x256xf32>
    %c0_2 = arith.constant 0 : index
    %c0_3 = arith.constant 0 : index
    %c0_4 = arith.constant 0 : index
    %4 = vector.load %arg4[%c0_2, %c0_3, %c0_4] : memref<1x1x256xf32, #tpu.memory_space<vmem>>, vector<1x1x256xf32>
    %5 = vector.shape_cast %4 : vector<1x1x256xf32> to vector<1x256xf32>
    %c0_5 = arith.constant 0 : index
    %c0_6 = arith.constant 0 : index
    %c0_7 = arith.constant 0 : index
    %6 = vector.load %arg5[%c0_5, %c0_6, %c0_7] : memref<1x1x256xf32, #tpu.memory_space<vmem>>, vector<1x1x256xf32>
    %7 = vector.shape_cast %6 : vector<1x1x256xf32> to vector<1x256xf32>
    %cst = arith.constant dense<0.000000e+00> : vector<64xf32>
    %8 = vector.multi_reduction <add>, %3, %cst [1] : vector<64x256xf32> to vector<64xf32>
    %9 = vector.shape_cast %8 : vector<64xf32> to vector<64x1xf32>
    %cst_8 = arith.constant 2.560000e+02 : f32
    %10 = vector.broadcast %cst_8 : f32 to vector<64x1xf32>
    %11 = arith.divf %9, %10 : vector<64x1xf32>
    %12 = vector.broadcast %11 : vector<64x1xf32> to vector<64x256xf32>
    %13 = arith.subf %3, %12 : vector<64x256xf32>
    %14 = arith.mulf %13, %13 : vector<64x256xf32>
    %cst_9 = arith.constant dense<0.000000e+00> : vector<64xf32>
    %15 = vector.multi_reduction <add>, %14, %cst_9 [1] : vector<64x256xf32> to vector<64xf32>
    %16 = vector.shape_cast %15 : vector<64xf32> to vector<64x1xf32>
    %cst_10 = arith.constant 2.560000e+02 : f32
    %17 = vector.broadcast %cst_10 : f32 to vector<64x1xf32>
    %18 = arith.divf %16, %17 : vector<64x1xf32>
    %19 = vector.broadcast %11 : vector<64x1xf32> to vector<64x256xf32>
    %20 = arith.subf %3, %19 : vector<64x256xf32>
    %cst_11 = arith.constant 9.99999974E-6 : f32
    %21 = vector.broadcast %cst_11 : f32 to vector<64x1xf32>
    %22 = arith.addf %18, %21 : vector<64x1xf32>
    %23 = math.rsqrt %22 : vector<64x1xf32>
    %24 = vector.broadcast %23 : vector<64x1xf32> to vector<64x256xf32>
    %25 = arith.mulf %20, %24 : vector<64x256xf32>
    %26 = vector.broadcast %5 : vector<1x256xf32> to vector<64x256xf32>
    %27 = arith.mulf %25, %26 : vector<64x256xf32>
    %28 = vector.broadcast %7 : vector<1x256xf32> to vector<64x256xf32>
    %29 = arith.addf %27, %28 : vector<64x256xf32>
    %30 = arith.truncf %29 : vector<64x256xf32> to vector<64x256xbf16>
    %c0_12 = arith.constant 0 : index
    %c0_13 = arith.constant 0 : index
    %c0_14 = arith.constant 0 : index
    %31 = vector.load %arg6[%c0_12, %c0_13, %c0_14] : memref<1x256x768xbf16, #tpu.memory_space<vmem>>, vector<1x256x768xbf16>
    %32 = vector.shape_cast %31 : vector<1x256x768xbf16> to vector<256x768xbf16>
    %cst_15 = arith.constant dense<0.000000e+00> : vector<64x768xf32>
    %33 = tpu.matmul %30, %32, %cst_15 {dimension_numbers = #tpu.dot_dimension_numbers<[1], [0], [0], [1], [0, 0, 1, 1], [], []>} : vector<64x256xbf16>, vector<256x768xbf16>, vector<64x768xf32> -> vector<64x768xf32>
    %34 = vector.extract_strided_slice %33 {offsets = [0, 0], sizes = [32, 128], strides = [1, 1]} : vector<64x768xf32> to vector<32x128xf32>
    %35 = arith.truncf %34 : vector<32x128xf32> to vector<32x128xbf16>
    %36 = vector.extract_strided_slice %33 {offsets = [0, 256], sizes = [32, 128], strides = [1, 1]} : vector<64x768xf32> to vector<32x128xf32>
    %37 = arith.truncf %36 : vector<32x128xf32> to vector<32x128xbf16>
    %38 = vector.extract_strided_slice %33 {offsets = [0, 512], sizes = [32, 128], strides = [1, 1]} : vector<64x768xf32> to vector<32x128xf32>
    %39 = arith.truncf %38 : vector<32x128xf32> to vector<32x128xbf16>
    %cst_16 = arith.constant dense<0.000000e+00> : vector<32x32xf32>
    %40 = tpu.matmul %35, %37, %cst_16 {dimension_numbers = #tpu.dot_dimension_numbers<[1], [1], [0], [0], [0, 0, 1, 0], [], []>} : vector<32x128xbf16>, vector<32x128xbf16>, vector<32x32xf32> -> vector<32x32xf32>
    %cst_17 = arith.constant dense<0xFF800000> : vector<32xf32>
    %41 = vector.multi_reduction <maximumf>, %40, %cst_17 [1] : vector<32x32xf32> to vector<32xf32>
    %42 = vector.shape_cast %41 : vector<32xf32> to vector<32x1xf32>
    %43 = vector.broadcast %42 : vector<32x1xf32> to vector<32x32xf32>
    %44 = arith.subf %40, %43 : vector<32x32xf32>
    %45 = math.exp %44 : vector<32x32xf32>
    %cst_18 = arith.constant dense<0.000000e+00> : vector<32xf32>
    %46 = vector.multi_reduction <add>, %45, %cst_18 [1] : vector<32x32xf32> to vector<32xf32>
    %47 = vector.shape_cast %46 : vector<32xf32> to vector<32x1xf32>
    %48 = tpu.reciprocal %47 {approx = true} : vector<32x1xf32> -> vector<32x1xf32>
    %49 = vector.broadcast %48 : vector<32x1xf32> to vector<32x32xf32>
    %50 = arith.mulf %45, %49 : vector<32x32xf32>
    %51 = arith.truncf %50 : vector<32x32xf32> to vector<32x32xbf16>
    %cst_19 = arith.constant dense<0.000000e+00> : vector<32x128xf32>
    %52 = tpu.matmul %51, %39, %cst_19 {dimension_numbers = #tpu.dot_dimension_numbers<[1], [0], [0], [1], [0, 0, 1, 1], [], []>} : vector<32x32xbf16>, vector<32x128xbf16>, vector<32x128xf32> -> vector<32x128xf32>
    %53 = arith.truncf %52 : vector<32x128xf32> to vector<32x128xbf16>
    %c0_20 = arith.constant 0 : index
    %c0_21 = arith.constant 0 : index
    %54 = vector.load %arg19[%c0_20, %c0_21] : memref<64x256xbf16, #tpu.memory_space<vmem>>, vector<32x128xbf16>
    tpu.vector_store %arg19[%c0_20, %c0_21], %53 {strides = array<i32>} : memref<64x256xbf16, #tpu.memory_space<vmem>>, vector<32x128xbf16>,
    %55 = vector.extract_strided_slice %33 {offsets = [0, 128], sizes = [32, 128], strides = [1, 1]} : vector<64x768xf32> to vector<32x128xf32>
    %56 = arith.truncf %55 : vector<32x128xf32> to vector<32x128xbf16>
    %57 = vector.extract_strided_slice %33 {offsets = [0, 384], sizes = [32, 128], strides = [1, 1]} : vector<64x768xf32> to vector<32x128xf32>
    %58 = arith.truncf %57 : vector<32x128xf32> to vector<32x128xbf16>
    %59 = vector.extract_strided_slice %33 {offsets = [0, 640], sizes = [32, 128], strides = [1, 1]} : vector<64x768xf32> to vector<32x128xf32>
    %60 = arith.truncf %59 : vector<32x128xf32> to vector<32x128xbf16>
    %cst_22 = arith.constant dense<0.000000e+00> : vector<32x32xf32>
    %61 = tpu.matmul %56, %58, %cst_22 {dimension_numbers = #tpu.dot_dimension_numbers<[1], [1], [0], [0], [0, 0, 1, 0], [], []>} : vector<32x128xbf16>, vector<32x128xbf16>, vector<32x32xf32> -> vector<32x32xf32>
    %cst_23 = arith.constant dense<0xFF800000> : vector<32xf32>
    %62 = vector.multi_reduction <maximumf>, %61, %cst_23 [1] : vector<32x32xf32> to vector<32xf32>
    %63 = vector.shape_cast %62 : vector<32xf32> to vector<32x1xf32>
    %64 = vector.broadcast %63 : vector<32x1xf32> to vector<32x32xf32>
    %65 = arith.subf %61, %64 : vector<32x32xf32>
    %66 = math.exp %65 : vector<32x32xf32>
    %cst_24 = arith.constant dense<0.000000e+00> : vector<32xf32>
    %67 = vector.multi_reduction <add>, %66, %cst_24 [1] : vector<32x32xf32> to vector<32xf32>
    %68 = vector.shape_cast %67 : vector<32xf32> to vector<32x1xf32>
    %69 = tpu.reciprocal %68 {approx = true} : vector<32x1xf32> -> vector<32x1xf32>
    %70 = vector.broadcast %69 : vector<32x1xf32> to vector<32x32xf32>
    %71 = arith.mulf %66, %70 : vector<32x32xf32>
    %72 = arith.truncf %71 : vector<32x32xf32> to vector<32x32xbf16>
    %cst_25 = arith.constant dense<0.000000e+00> : vector<32x128xf32>
    %73 = tpu.matmul %72, %60, %cst_25 {dimension_numbers = #tpu.dot_dimension_numbers<[1], [0], [0], [1], [0, 0, 1, 1], [], []>} : vector<32x32xbf16>, vector<32x128xbf16>, vector<32x128xf32> -> vector<32x128xf32>
    %74 = arith.truncf %73 : vector<32x128xf32> to vector<32x128xbf16>
    %c0_26 = arith.constant 0 : index
    %c128 = arith.constant 128 : index
    %75 = vector.load %arg19[%c0_26, %c128] : memref<64x256xbf16, #tpu.memory_space<vmem>>, vector<32x128xbf16>
    tpu.vector_store %arg19[%c0_26, %c128], %74 {strides = array<i32>} : memref<64x256xbf16, #tpu.memory_space<vmem>>, vector<32x128xbf16>,
    %76 = vector.extract_strided_slice %33 {offsets = [32, 0], sizes = [32, 128], strides = [1, 1]} : vector<64x768xf32> to vector<32x128xf32>
    %77 = arith.truncf %76 : vector<32x128xf32> to vector<32x128xbf16>
    %78 = vector.extract_strided_slice %33 {offsets = [32, 256], sizes = [32, 128], strides = [1, 1]} : vector<64x768xf32> to vector<32x128xf32>
    %79 = arith.truncf %78 : vector<32x128xf32> to vector<32x128xbf16>
    %80 = vector.extract_strided_slice %33 {offsets = [32, 512], sizes = [32, 128], strides = [1, 1]} : vector<64x768xf32> to vector<32x128xf32>
    %81 = arith.truncf %80 : vector<32x128xf32> to vector<32x128xbf16>
    %cst_27 = arith.constant dense<0.000000e+00> : vector<32x32xf32>
    %82 = tpu.matmul %77, %79, %cst_27 {dimension_numbers = #tpu.dot_dimension_numbers<[1], [1], [0], [0], [0, 0, 1, 0], [], []>} : vector<32x128xbf16>, vector<32x128xbf16>, vector<32x32xf32> -> vector<32x32xf32>
    %cst_28 = arith.constant dense<0xFF800000> : vector<32xf32>
    %83 = vector.multi_reduction <maximumf>, %82, %cst_28 [1] : vector<32x32xf32> to vector<32xf32>
    %84 = vector.shape_cast %83 : vector<32xf32> to vector<32x1xf32>
    %85 = vector.broadcast %84 : vector<32x1xf32> to vector<32x32xf32>
    %86 = arith.subf %82, %85 : vector<32x32xf32>
    %87 = math.exp %86 : vector<32x32xf32>
    %cst_29 = arith.constant dense<0.000000e+00> : vector<32xf32>
    %88 = vector.multi_reduction <add>, %87, %cst_29 [1] : vector<32x32xf32> to vector<32xf32>
    %89 = vector.shape_cast %88 : vector<32xf32> to vector<32x1xf32>
    %90 = tpu.reciprocal %89 {approx = true} : vector<32x1xf32> -> vector<32x1xf32>
    %91 = vector.broadcast %90 : vector<32x1xf32> to vector<32x32xf32>
    %92 = arith.mulf %87, %91 : vector<32x32xf32>
    %93 = arith.truncf %92 : vector<32x32xf32> to vector<32x32xbf16>
    %cst_30 = arith.constant dense<0.000000e+00> : vector<32x128xf32>
    %94 = tpu.matmul %93, %81, %cst_30 {dimension_numbers = #tpu.dot_dimension_numbers<[1], [0], [0], [1], [0, 0, 1, 1], [], []>} : vector<32x32xbf16>, vector<32x128xbf16>, vector<32x128xf32> -> vector<32x128xf32>
    %95 = arith.truncf %94 : vector<32x128xf32> to vector<32x128xbf16>
    %c32 = arith.constant 32 : index
    %c0_31 = arith.constant 0 : index
    %96 = vector.load %arg19[%c32, %c0_31] : memref<64x256xbf16, #tpu.memory_space<vmem>>, vector<32x128xbf16>
    tpu.vector_store %arg19[%c32, %c0_31], %95 {strides = array<i32>} : memref<64x256xbf16, #tpu.memory_space<vmem>>, vector<32x128xbf16>,
    %97 = vector.extract_strided_slice %33 {offsets = [32, 128], sizes = [32, 128], strides = [1, 1]} : vector<64x768xf32> to vector<32x128xf32>
    %98 = arith.truncf %97 : vector<32x128xf32> to vector<32x128xbf16>
    %99 = vector.extract_strided_slice %33 {offsets = [32, 384], sizes = [32, 128], strides = [1, 1]} : vector<64x768xf32> to vector<32x128xf32>
    %100 = arith.truncf %99 : vector<32x128xf32> to vector<32x128xbf16>
    %101 = vector.extract_strided_slice %33 {offsets = [32, 640], sizes = [32, 128], strides = [1, 1]} : vector<64x768xf32> to vector<32x128xf32>
    %102 = arith.truncf %101 : vector<32x128xf32> to vector<32x128xbf16>
    %cst_32 = arith.constant dense<0.000000e+00> : vector<32x32xf32>
    %103 = tpu.matmul %98, %100, %cst_32 {dimension_numbers = #tpu.dot_dimension_numbers<[1], [1], [0], [0], [0, 0, 1, 0], [], []>} : vector<32x128xbf16>, vector<32x128xbf16>, vector<32x32xf32> -> vector<32x32xf32>
    %cst_33 = arith.constant dense<0xFF800000> : vector<32xf32>
    %104 = vector.multi_reduction <maximumf>, %103, %cst_33 [1] : vector<32x32xf32> to vector<32xf32>
    %105 = vector.shape_cast %104 : vector<32xf32> to vector<32x1xf32>
    %106 = vector.broadcast %105 : vector<32x1xf32> to vector<32x32xf32>
    %107 = arith.subf %103, %106 : vector<32x32xf32>
    %108 = math.exp %107 : vector<32x32xf32>
    %cst_34 = arith.constant dense<0.000000e+00> : vector<32xf32>
    %109 = vector.multi_reduction <add>, %108, %cst_34 [1] : vector<32x32xf32> to vector<32xf32>
    %110 = vector.shape_cast %109 : vector<32xf32> to vector<32x1xf32>
    %111 = tpu.reciprocal %110 {approx = true} : vector<32x1xf32> -> vector<32x1xf32>
    %112 = vector.broadcast %111 : vector<32x1xf32> to vector<32x32xf32>
    %113 = arith.mulf %108, %112 : vector<32x32xf32>
    %114 = arith.truncf %113 : vector<32x32xf32> to vector<32x32xbf16>
    %cst_35 = arith.constant dense<0.000000e+00> : vector<32x128xf32>
    %115 = tpu.matmul %114, %102, %cst_35 {dimension_numbers = #tpu.dot_dimension_numbers<[1], [0], [0], [1], [0, 0, 1, 1], [], []>} : vector<32x32xbf16>, vector<32x128xbf16>, vector<32x128xf32> -> vector<32x128xf32>
    %116 = arith.truncf %115 : vector<32x128xf32> to vector<32x128xbf16>
    %c32_36 = arith.constant 32 : index
    %c128_37 = arith.constant 128 : index
    %117 = vector.load %arg19[%c32_36, %c128_37] : memref<64x256xbf16, #tpu.memory_space<vmem>>, vector<32x128xbf16>
    tpu.vector_store %arg19[%c32_36, %c128_37], %116 {strides = array<i32>} : memref<64x256xbf16, #tpu.memory_space<vmem>>, vector<32x128xbf16>,
    %c0_38 = arith.constant 0 : index
    %c0_39 = arith.constant 0 : index
    %118 = vector.load %arg19[%c0_38, %c0_39] : memref<64x256xbf16, #tpu.memory_space<vmem>>, vector<64x256xbf16>
    %c0_40 = arith.constant 0 : index
    %c0_41 = arith.constant 0 : index
    %c0_42 = arith.constant 0 : index
    %119 = vector.load %arg7[%c0_40, %c0_41, %c0_42] : memref<1x256x256xbf16, #tpu.memory_space<vmem>>, vector<1x256x256xbf16>
    %120 = vector.shape_cast %119 : vector<1x256x256xbf16> to vector<256x256xbf16>
    %cst_43 = arith.constant dense<0.000000e+00> : vector<64x256xf32>
    %121 = tpu.matmul %118, %120, %cst_43 {dimension_numbers = #tpu.dot_dimension_numbers<[1], [0], [0], [1], [0, 0, 1, 1], [], []>} : vector<64x256xbf16>, vector<256x256xbf16>, vector<64x256xf32> -> vector<64x256xf32>
    %122 = arith.addf %3, %121 : vector<64x256xf32>
    %c0_44 = arith.constant 0 : index
    %c0_45 = arith.constant 0 : index
    %c0_46 = arith.constant 0 : index
    %123 = vector.load %arg8[%c0_44, %c0_45, %c0_46] : memref<1x1x256xf32, #tpu.memory_space<vmem>>, vector<1x1x256xf32>
    %124 = vector.shape_cast %123 : vector<1x1x256xf32> to vector<1x256xf32>
    %125 = vector.broadcast %124 : vector<1x256xf32> to vector<64x256xf32>
    %126 = arith.addf %122, %125 : vector<64x256xf32>
    %c0_47 = arith.constant 0 : index
    %c0_48 = arith.constant 0 : index
    %c0_49 = arith.constant 0 : index
    %127 = vector.load %arg9[%c0_47, %c0_48, %c0_49] : memref<1x1x256xf32, #tpu.memory_space<vmem>>, vector<1x1x256xf32>
    %128 = vector.shape_cast %127 : vector<1x1x256xf32> to vector<1x256xf32>
    %c0_50 = arith.constant 0 : index
    %c0_51 = arith.constant 0 : index
    %c0_52 = arith.constant 0 : index
    %129 = vector.load %arg10[%c0_50, %c0_51, %c0_52] : memref<1x1x256xf32, #tpu.memory_space<vmem>>, vector<1x1x256xf32>
    %130 = vector.shape_cast %129 : vector<1x1x256xf32> to vector<1x256xf32>
    %cst_53 = arith.constant dense<0.000000e+00> : vector<64xf32>
    %131 = vector.multi_reduction <add>, %126, %cst_53 [1] : vector<64x256xf32> to vector<64xf32>
    %132 = vector.shape_cast %131 : vector<64xf32> to vector<64x1xf32>
    %cst_54 = arith.constant 2.560000e+02 : f32
    %133 = vector.broadcast %cst_54 : f32 to vector<64x1xf32>
    %134 = arith.divf %132, %133 : vector<64x1xf32>
    %135 = vector.broadcast %134 : vector<64x1xf32> to vector<64x256xf32>
    %136 = arith.subf %126, %135 : vector<64x256xf32>
    %137 = arith.mulf %136, %136 : vector<64x256xf32>
    %cst_55 = arith.constant dense<0.000000e+00> : vector<64xf32>
    %138 = vector.multi_reduction <add>, %137, %cst_55 [1] : vector<64x256xf32> to vector<64xf32>
    %139 = vector.shape_cast %138 : vector<64xf32> to vector<64x1xf32>
    %cst_56 = arith.constant 2.560000e+02 : f32
    %140 = vector.broadcast %cst_56 : f32 to vector<64x1xf32>
    %141 = arith.divf %139, %140 : vector<64x1xf32>
    %142 = vector.broadcast %134 : vector<64x1xf32> to vector<64x256xf32>
    %143 = arith.subf %126, %142 : vector<64x256xf32>
    %cst_57 = arith.constant 9.99999974E-6 : f32
    %144 = vector.broadcast %cst_57 : f32 to vector<64x1xf32>
    %145 = arith.addf %141, %144 : vector<64x1xf32>
    %146 = math.rsqrt %145 : vector<64x1xf32>
    %147 = vector.broadcast %146 : vector<64x1xf32> to vector<64x256xf32>
    %148 = arith.mulf %143, %147 : vector<64x256xf32>
    %149 = vector.broadcast %128 : vector<1x256xf32> to vector<64x256xf32>
    %150 = arith.mulf %148, %149 : vector<64x256xf32>
    %151 = vector.broadcast %130 : vector<1x256xf32> to vector<64x256xf32>
    %152 = arith.addf %150, %151 : vector<64x256xf32>
    %153 = arith.truncf %152 : vector<64x256xf32> to vector<64x256xbf16>
    %c0_58 = arith.constant 0 : index
    %c0_59 = arith.constant 0 : index
    %c0_60 = arith.constant 0 : index
    %154 = vector.load %arg11[%c0_58, %c0_59, %c0_60] : memref<1x256x1024xbf16, #tpu.memory_space<vmem>>, vector<1x256x1024xbf16>
    %155 = vector.shape_cast %154 : vector<1x256x1024xbf16> to vector<256x1024xbf16>
    %cst_61 = arith.constant dense<0.000000e+00> : vector<64x1024xf32>
    %156 = tpu.matmul %153, %155, %cst_61 {dimension_numbers = #tpu.dot_dimension_numbers<[1], [0], [0], [1], [0, 0, 1, 1], [], []>} : vector<64x256xbf16>, vector<256x1024xbf16>, vector<64x1024xf32> -> vector<64x1024xf32>
    %c0_62 = arith.constant 0 : index
    %c0_63 = arith.constant 0 : index
    %c0_64 = arith.constant 0 : index
    %157 = vector.load %arg12[%c0_62, %c0_63, %c0_64] : memref<1x1x1024xf32, #tpu.memory_space<vmem>>, vector<1x1x1024xf32>
    %158 = vector.shape_cast %157 : vector<1x1x1024xf32> to vector<1x1024xf32>
    %159 = vector.broadcast %158 : vector<1x1024xf32> to vector<64x1024xf32>
    %160 = arith.addf %156, %159 : vector<64x1024xf32>
    %161 = arith.mulf %160, %160 : vector<64x1024xf32>
    %162 = arith.mulf %160, %161 : vector<64x1024xf32>
    %cst_65 = arith.constant 4.471500e-02 : f32
    %163 = vector.broadcast %cst_65 : f32 to vector<64x1024xf32>
    %164 = arith.mulf %163, %162 : vector<64x1024xf32>
    %165 = arith.addf %160, %164 : vector<64x1024xf32>
    %cst_66 = arith.constant 0.797884583 : f32
    %166 = vector.broadcast %cst_66 : f32 to vector<64x1024xf32>
    %167 = arith.mulf %166, %165 : vector<64x1024xf32>
    %168 = math.tanh %167 : vector<64x1024xf32>
    %cst_67 = arith.constant 1.000000e+00 : f32
    %169 = vector.broadcast %cst_67 : f32 to vector<64x1024xf32>
    %170 = arith.addf %169, %168 : vector<64x1024xf32>
    %cst_68 = arith.constant 5.000000e-01 : f32
    %171 = vector.broadcast %cst_68 : f32 to vector<64x1024xf32>
    %172 = arith.mulf %171, %170 : vector<64x1024xf32>
    %173 = arith.mulf %160, %172 : vector<64x1024xf32>
    %174 = arith.truncf %173 : vector<64x1024xf32> to vector<64x1024xbf16>
    %c0_69 = arith.constant 0 : index
    %c0_70 = arith.constant 0 : index
    %c0_71 = arith.constant 0 : index
    %175 = vector.load %arg13[%c0_69, %c0_70, %c0_71] : memref<1x1024x256xbf16, #tpu.memory_space<vmem>>, vector<1x1024x256xbf16>
    %176 = vector.shape_cast %175 : vector<1x1024x256xbf16> to vector<1024x256xbf16>
    %cst_72 = arith.constant dense<0.000000e+00> : vector<64x256xf32>
    %177 = tpu.matmul %174, %176, %cst_72 {dimension_numbers = #tpu.dot_dimension_numbers<[1], [0], [0], [1], [0, 0, 1, 1], [], []>} : vector<64x1024xbf16>, vector<1024x256xbf16>, vector<64x256xf32> -> vector<64x256xf32>
    %c0_73 = arith.constant 0 : index
    %c0_74 = arith.constant 0 : index
    %c0_75 = arith.constant 0 : index
    %178 = vector.load %arg14[%c0_73, %c0_74, %c0_75] : memref<1x1x256xf32, #tpu.memory_space<vmem>>, vector<1x1x256xf32>
    %179 = vector.shape_cast %178 : vector<1x1x256xf32> to vector<1x256xf32>
    %180 = vector.broadcast %179 : vector<1x256xf32> to vector<64x256xf32>
    %181 = arith.addf %177, %180 : vector<64x256xf32>
    %182 = arith.addf %126, %181 : vector<64x256xf32>
    %c0_76 = arith.constant 0 : index
    %c0_77 = arith.constant 0 : index
    %183 = vector.load %arg18[%c0_76, %c0_77] : memref<64x256xf32, #tpu.memory_space<vmem>>, vector<64x256xf32>
    tpu.vector_store %arg18[%c0_76, %c0_77], %182 {strides = array<i32>} : memref<64x256xf32, #tpu.memory_space<vmem>>, vector<64x256xf32>,
    %c1_i32 = arith.constant 1 : i32
    %184 = arith.cmpi eq, %arg1, %c1_i32 : i32
    %185 = arith.extui %184 : i1 to i32
    %c0_i32_78 = arith.constant 0 : i32
    %186 = arith.cmpi ne, %185, %c0_i32_78 : i32
    scf.if %186 {
      %c0_79 = arith.constant 0 : index
      %c0_80 = arith.constant 0 : index
      %187 = vector.load %arg15[%c0_79, %c0_80] : memref<1x256xf32, #tpu.memory_space<vmem>>, vector<1x256xf32>
      %c0_81 = arith.constant 0 : index
      %c0_82 = arith.constant 0 : index
      %188 = vector.load %arg16[%c0_81, %c0_82] : memref<1x256xf32, #tpu.memory_space<vmem>>, vector<1x256xf32>
      %cst_83 = arith.constant dense<0.000000e+00> : vector<64xf32>
      %189 = vector.multi_reduction <add>, %182, %cst_83 [1] : vector<64x256xf32> to vector<64xf32>
      %190 = vector.shape_cast %189 : vector<64xf32> to vector<64x1xf32>
      %cst_84 = arith.constant 2.560000e+02 : f32
      %191 = vector.broadcast %cst_84 : f32 to vector<64x1xf32>
      %192 = arith.divf %190, %191 : vector<64x1xf32>
      %193 = vector.broadcast %192 : vector<64x1xf32> to vector<64x256xf32>
      %194 = arith.subf %182, %193 : vector<64x256xf32>
      %195 = arith.mulf %194, %194 : vector<64x256xf32>
      %cst_85 = arith.constant dense<0.000000e+00> : vector<64xf32>
      %196 = vector.multi_reduction <add>, %195, %cst_85 [1] : vector<64x256xf32> to vector<64xf32>
      %197 = vector.shape_cast %196 : vector<64xf32> to vector<64x1xf32>
      %cst_86 = arith.constant 2.560000e+02 : f32
      %198 = vector.broadcast %cst_86 : f32 to vector<64x1xf32>
      %199 = arith.divf %197, %198 : vector<64x1xf32>
      %200 = vector.broadcast %192 : vector<64x1xf32> to vector<64x256xf32>
      %201 = arith.subf %182, %200 : vector<64x256xf32>
      %cst_87 = arith.constant 9.99999974E-6 : f32
      %202 = vector.broadcast %cst_87 : f32 to vector<64x1xf32>
      %203 = arith.addf %199, %202 : vector<64x1xf32>
      %204 = math.rsqrt %203 : vector<64x1xf32>
      %205 = vector.broadcast %204 : vector<64x1xf32> to vector<64x256xf32>
      %206 = arith.mulf %201, %205 : vector<64x256xf32>
      %207 = vector.broadcast %187 : vector<1x256xf32> to vector<64x256xf32>
      %208 = arith.mulf %206, %207 : vector<64x256xf32>
      %209 = vector.broadcast %188 : vector<1x256xf32> to vector<64x256xf32>
      %210 = arith.addf %208, %209 : vector<64x256xf32>
      %211 = vector.shape_cast %210 : vector<64x256xf32> to vector<2x32x256xf32>
      %c0_88 = arith.constant 0 : index
      %c0_89 = arith.constant 0 : index
      %c0_90 = arith.constant 0 : index
      %212 = vector.load %arg17[%c0_88, %c0_89, %c0_90] : memref<2x32x256xf32, #tpu.memory_space<vmem>>, vector<2x32x256xf32>
      tpu.vector_store %arg17[%c0_88, %c0_89, %c0_90], %211 {strides = array<i32>} : memref<2x32x256xf32, #tpu.memory_space<vmem>>, vector<2x32x256xf32>,
    } else {
    }
    return
  }
  func.func @transform_0(%arg0: i32, %arg1: i32) -> (i32, i32, i32) {
    %c0_i32 = arith.constant 0 : i32
    %c0_i32_0 = arith.constant 0 : i32
    %c0_i32_1 = arith.constant 0 : i32
    return %arg0, %c0_i32, %c0_i32_0 : i32, i32, i32
  }
  func.func @transform_1(%arg0: i32, %arg1: i32) -> (i32, i32) {
    %c0_i32 = arith.constant 0 : i32
    %c0_i32_0 = arith.constant 0 : i32
    %c0_i32_1 = arith.constant 0 : i32
    return %c0_i32, %c0_i32_0 : i32, i32
  }
  func.func @transform_2(%arg0: i32, %arg1: i32) -> (i32, i32, i32) {
    %c0_i32 = arith.constant 0 : i32
    %c0_i32_0 = arith.constant 0 : i32
    %c0_i32_1 = arith.constant 0 : i32
    return %arg1, %c0_i32, %c0_i32_0 : i32, i32, i32
  }
  func.func @transform_3(%arg0: i32, %arg1: i32) -> (i32, i32, i32) {
    %c0_i32 = arith.constant 0 : i32
    %c0_i32_0 = arith.constant 0 : i32
    %c0_i32_1 = arith.constant 0 : i32
    return %arg1, %c0_i32, %c0_i32_0 : i32, i32, i32
  }
  func.func @transform_4(%arg0: i32, %arg1: i32) -> (i32, i32, i32) {
    %c0_i32 = arith.constant 0 : i32
    %c0_i32_0 = arith.constant 0 : i32
    %c0_i32_1 = arith.constant 0 : i32
    return %arg1, %c0_i32, %c0_i32_0 : i32, i32, i32
  }
  func.func @transform_5(%arg0: i32, %arg1: i32) -> (i32, i32, i32) {
    %c0_i32 = arith.constant 0 : i32
    %c0_i32_0 = arith.constant 0 : i32
    %c0_i32_1 = arith.constant 0 : i32
    return %arg1, %c0_i32, %c0_i32_0 : i32, i32, i32
  }
  func.func @transform_6(%arg0: i32, %arg1: i32) -> (i32, i32, i32) {
    %c0_i32 = arith.constant 0 : i32
    %c0_i32_0 = arith.constant 0 : i32
    %c0_i32_1 = arith.constant 0 : i32
    return %arg1, %c0_i32, %c0_i32_0 : i32, i32, i32
  }
  func.func @transform_7(%arg0: i32, %arg1: i32) -> (i32, i32, i32) {
    %c0_i32 = arith.constant 0 : i32
    %c0_i32_0 = arith.constant 0 : i32
    %c0_i32_1 = arith.constant 0 : i32
    return %arg1, %c0_i32, %c0_i32_0 : i32, i32, i32
  }
  func.func @transform_8(%arg0: i32, %arg1: i32) -> (i32, i32, i32) {
    %c0_i32 = arith.constant 0 : i32
    %c0_i32_0 = arith.constant 0 : i32
    %c0_i32_1 = arith.constant 0 : i32
    return %arg1, %c0_i32, %c0_i32_0 : i32, i32, i32
  }
  func.func @transform_9(%arg0: i32, %arg1: i32) -> (i32, i32, i32) {
    %c0_i32 = arith.constant 0 : i32
    %c0_i32_0 = arith.constant 0 : i32
    %c0_i32_1 = arith.constant 0 : i32
    return %arg1, %c0_i32, %c0_i32_0 : i32, i32, i32
  }
  func.func @transform_10(%arg0: i32, %arg1: i32) -> (i32, i32, i32) {
    %c0_i32 = arith.constant 0 : i32
    %c0_i32_0 = arith.constant 0 : i32
    %c0_i32_1 = arith.constant 0 : i32
    return %arg1, %c0_i32, %c0_i32_0 : i32, i32, i32
  }
  func.func @transform_11(%arg0: i32, %arg1: i32) -> (i32, i32, i32) {
    %c0_i32 = arith.constant 0 : i32
    %c0_i32_0 = arith.constant 0 : i32
    %c0_i32_1 = arith.constant 0 : i32
    return %arg1, %c0_i32, %c0_i32_0 : i32, i32, i32
  }
  func.func @transform_12(%arg0: i32, %arg1: i32) -> (i32, i32, i32) {
    %c0_i32 = arith.constant 0 : i32
    %c0_i32_0 = arith.constant 0 : i32
    %c0_i32_1 = arith.constant 0 : i32
    return %arg1, %c0_i32, %c0_i32_0 : i32, i32, i32
  }
  func.func @transform_13(%arg0: i32, %arg1: i32) -> (i32, i32) {
    %c0_i32 = arith.constant 0 : i32
    %c0_i32_0 = arith.constant 0 : i32
    %c0_i32_1 = arith.constant 0 : i32
    return %c0_i32, %c0_i32_0 : i32, i32
  }
  func.func @transform_14(%arg0: i32, %arg1: i32) -> (i32, i32) {
    %c0_i32 = arith.constant 0 : i32
    %c0_i32_0 = arith.constant 0 : i32
    %c0_i32_1 = arith.constant 0 : i32
    return %c0_i32, %c0_i32_0 : i32, i32
  }
  func.func @transform_15(%arg0: i32, %arg1: i32) -> (i32, i32, i32) {
    %c0_i32 = arith.constant 0 : i32
    %c0_i32_0 = arith.constant 0 : i32
    %c0_i32_1 = arith.constant 0 : i32
    return %arg0, %c0_i32, %c0_i32_0 : i32, i32, i32
  }
}

</mosaic_0001>

<llo_original>
// kernel: tpu_custom_call.1
$region0: #{tpu_custom_call.1}
  #allocation0 [shape = 'u32[]', space=smem, size = 0x4, offset = 0x4, fixed_abs, tag = 'smem constant byte address 0x4 - core index']
  #allocation1 [shape = 'u32[144,128]{1,0:T(1,128)}', space=vmem, size = 0x12000, scoped, tag = 'internal scratch']
  #allocation2 [shape = 'f32[64,256]{1,0:T(8,128)}', space=vmem, size = 0x10000, scoped, tag = 'scratch operand']
  #allocation3 [shape = 'bf16[64,256]{1,0:T(8,128)(2,1)}', space=vmem, size = 0x8000, scoped, tag = 'scratch operand']
  %s0 = inlined_call_operand.hbm [shape: f32[2,32,256], index: 0, kind: input, shape index: {}]
  %s1 = inlined_call_operand.hbm [shape: f32[32,256], index: 1, kind: input, shape index: {}]
  %s2 = inlined_call_operand.hbm [shape: f32[2,1,256], index: 2, kind: input, shape index: {}]
  %s3 = inlined_call_operand.hbm [shape: f32[2,1,256], index: 3, kind: input, shape index: {}]
  %s4 = inlined_call_operand.hbm [shape: bf16[2,256,768], index: 4, kind: input, shape index: {}]
  %s5 = inlined_call_operand.hbm [shape: bf16[2,256,256], index: 5, kind: input, shape index: {}]
  %s6 = inlined_call_operand.hbm [shape: f32[2,1,256], index: 6, kind: input, shape index: {}]
  %s7 = inlined_call_operand.hbm [shape: f32[2,1,256], index: 7, kind: input, shape index: {}]
  %s8 = inlined_call_operand.hbm [shape: f32[2,1,256], index: 8, kind: input, shape index: {}]
  %s9 = inlined_call_operand.hbm [shape: bf16[2,256,1024], index: 9, kind: input, shape index: {}]
  %s10 = inlined_call_operand.vmem [shape: f32[2,1,1024], index: 10, kind: input, shape index: {}]
  %s11 = inlined_call_operand.hbm [shape: bf16[2,1024,256], index: 11, kind: input, shape index: {}]
  %s12 = inlined_call_operand.vmem [shape: f32[2,1,256], index: 12, kind: input, shape index: {}]
  %s13 = inlined_call_operand.vmem [shape: f32[1,256], index: 13, kind: input, shape index: {}]
  %s14 = inlined_call_operand.vmem [shape: f32[1,256], index: 14, kind: input, shape index: {}]
  %s15 = inlined_call_operand.hbm [shape: f32[2,32,256], index: 15, kind: output, shape index: {}]
  %s16 = sld [smem:[#allocation0]]
  $region145: #{tpu_custom_call.1} parent=0
    _
  %s18 = ssub.s32 1, %s16
  %s19 = scalar_select 0, %s18, %s16
  $region1: #{tpu_custom_call.1} parent=0
    #allocation4 [shape = 'u8[65536]{0}', space=vmem, size = 0x10000, scoped, tag = 'input window, operand 0, single buffered']
    #allocation5 [shape = 's32[2]{0}', space=sflag, size = 0x8, scoped, tag = 'scoped memory for tpu_custom_call.1']
    #allocation6 [shape = 's32[2]{0}', space=sflag, size = 0x8, scoped, tag = 'scoped memory for tpu_custom_call.1']
    #allocation7 [shape = 'u8[32768]{0}', space=vmem, size = 0x8000, scoped, tag = 'input window, operand 1, single buffered']
    #allocation8 [shape = 's32[1]{0}', space=sflag, size = 0x4, scoped, tag = 'scoped memory for tpu_custom_call.1']
    #allocation9 [shape = 'u8[2048]{0}', space=vmem, size = 0x800, scoped, tag = 'input window, operand 2']
    #allocation10 [shape = 'u8[2048]{0}', space=vmem, size = 0x800, scoped, tag = 'input window, operand 3']
    #allocation11 [shape = 'u8[786432]{0}', space=vmem, size = 0xc0000, scoped, tag = 'input window, operand 4']
    #allocation12 [shape = 'u8[262144]{0}', space=vmem, size = 0x40000, scoped, tag = 'input window, operand 5']
    #allocation13 [shape = 'u8[2048]{0}', space=vmem, size = 0x800, scoped, tag = 'input window, operand 6']
    #allocation14 [shape = 'u8[2048]{0}', space=vmem, size = 0x800, scoped, tag = 'input window, operand 7']
    #allocation15 [shape = 'u8[2048]{0}', space=vmem, size = 0x800, scoped, tag = 'input window, operand 8']
    #allocation16 [shape = 'u8[1048576]{0}', space=vmem, size = 0x100000, scoped, tag = 'input window, operand 9']
    #allocation17 [shape = 'u8[1048576]{0}', space=vmem, size = 0x100000, scoped, tag = 'input window, operand 11']
    #allocation18 [shape = 'u8[65536]{0}', space=vmem, size = 0x10000, scoped, tag = 'output window, operand 0, single buffered']
    %20 = vsyncpa [#allocation5], 0
    %21 = vsyncpa [#allocation8], 0
    %22 = vsyncpa [#allocation6], 0
    loop: start=0, step=1, limit=4
    $region2: #{tpu_custom_call.1} parent=1 // loop_pre_header
      _
    $region3: #{tpu_custom_call.1} parent=1 // loop_header
      %s24 = sphi 0, %s28
      %p25 = scmp.ge.s32.totalorder %s24, 4
      %s31 = sphi 0, %s43
      %s32 = sphi 0, %s39
      %s33 = sphi 0, %s31
      %s34 = sphi 0, %s32
      %s35 = sphi 0, %s33
      %s36 = sphi 0, %s34
      %s46 = sphi 0, %s48
      %s49 = sphi 0, %s46
      %s50 = sphi 0, %s49
      %s66 = sphi 0, %s50
      %s70 = sphi 0, %s70
      %s72 = sphi 0, %s70
      %s73 = sphi 0, %s72
      %s87 = sphi 0, %s73
      %s93 = sphi 0, %s95
      %s96 = sphi 0, %s93
      %s97 = sphi 0, %s96
      %s113 = sphi 0, %s97
      %s119 = sphi 0, %s121
      %s122 = sphi 0, %s119
      %s123 = sphi 0, %s122
      %s139 = sphi 0, %s123
      %s145 = sphi 0, %s147
      %s148 = sphi 0, %s145
      %s149 = sphi 0, %s148
      %s165 = sphi 0, %s149
      %s171 = sphi 0, %s173
      %s174 = sphi 0, %s171
      %s175 = sphi 0, %s174
      %s191 = sphi 0, %s175
      %s197 = sphi 0, %s199
      %s200 = sphi 0, %s197
      %s201 = sphi 0, %s200
      %s217 = sphi 0, %s201
      %s223 = sphi 0, %s225
      %s226 = sphi 0, %s223
      %s227 = sphi 0, %s226
      %s243 = sphi 0, %s227
      %s249 = sphi 0, %s251
      %s252 = sphi 0, %s249
      %s253 = sphi 0, %s252
      %s269 = sphi 0, %s253
      %s275 = sphi 0, %s277
      %s278 = sphi 0, %s275
      %s279 = sphi 0, %s278
      %s295 = sphi 0, %s279
      %s301 = sphi 0, %s303
      %s304 = sphi 0, %s301
      %s305 = sphi 0, %s304
      %s321 = sphi 0, %s305
      %s327 = sphi 0, %s329
      %s330 = sphi 0, %s327
      %s331 = sphi 0, %s330
      %s347 = sphi 0, %s331
      %s353 = sphi 0, %s355
      %s356 = sphi 0, %s353
      %s357 = sphi 0, %s356
      %s373 = sphi 0, %s357
      %s377 = sphi 0, %s377
      %s379 = sphi 0, %s377
      %s380 = sphi 0, %s379
      %s394 = sphi 0, %s380
      %s398 = sphi 0, %s398
      %s400 = sphi 0, %s398
      %s401 = sphi 0, %s400
      %s415 = sphi 0, %s401
      %s421 = sphi 0, %s423
      %s424 = sphi 0, %s421
      %s425 = sphi 0, %s424
      %s441 = sphi 0, %s425
    $region4: #{tpu_custom_call.1} parent=1 // loop_header_branch
      %27 = sbr.rel (%p25) target = $region8
    $region5: #{tpu_custom_call.1} parent=1 // loop_body
      %s29 = ssub.s32 %s24, 1
      %s30 = ssub.s32 %s24, 2
      %s37 = sadd.s32 1, %s32
      %p38 = scmp.ge.s32.totalorder %s37, 2
      %s39 = scalar_select %p38, 0, %s37
      %s40 = sadd.s32 1, %s31
      %s41 = scalar_select %p38, %s40, %s31
      %p42 = scmp.ge.s32.totalorder %s41, 1
      %s43 = scalar_select %p42, 0, %s41
      %s44 = ssub.s32 %s31, %s43
      %p45 = scmp.eq.s32.totalorder %s44, 0
      %s47 = sadd.s32 %s46, 1
      %s48 = scalar_select %p45, %s46, %s47
      %p51 = pneg %p45
      %p52 = scmp.eq.s32.totalorder %s24, 1
      %p53 = por %p51, %p52
      %p54 = scmp.ne.s32.totalorder %s46, %s49
      %p55 = scmp.eq.s32.totalorder %s24, 0
      %p56 = por %p54, %p55
      %p57 = scmp.ne.s32.totalorder %s46, %s49
      %p58 = scmp.eq.s32.totalorder %s29, 1
      %p59 = por %p57, %p58
      %p60 = scmp.ne.s32.totalorder %s49, %s50
      %p61 = scmp.eq.s32.totalorder %s29, 0
      %p62 = por %p60, %p61
      %p63 = scmp.ne.s32.totalorder %s49, %s50
      %p64 = scmp.eq.s32.totalorder %s30, 1
      %p65 = por %p63, %p64
      %p67 = scmp.ne.s32.totalorder %s50, %s66
      %p68 = scmp.eq.s32.totalorder %s30, 0
      %p69 = por %p67, %p68
      %s71 = sadd.s32 %s70, 1
      %p74 = scmp.eq.s32.totalorder %s24, 1
      %p75 = scmp.ne.s32.totalorder %s70, %s72
      %p76 = scmp.eq.s32.totalorder %s24, 0
      %p77 = por %p75, %p76
      %p78 = scmp.ne.s32.totalorder %s70, %s72
      %p79 = scmp.eq.s32.totalorder %s29, 1
      %p80 = por %p78, %p79
      %p81 = scmp.ne.s32.totalorder %s72, %s73
      %p82 = scmp.eq.s32.totalorder %s29, 0
      %p83 = por %p81, %p82
      %p84 = scmp.ne.s32.totalorder %s72, %s73
      %p85 = scmp.eq.s32.totalorder %s30, 1
      %p86 = por %p84, %p85
      %p88 = scmp.ne.s32.totalorder %s73, %s87
      %p89 = scmp.eq.s32.totalorder %s30, 0
      %p90 = por %p88, %p89
      %s91 = ssub.s32 %s32, %s39
      %p92 = scmp.eq.s32.totalorder %s91, 0
      %s94 = sadd.s32 %s93, 1
      %s95 = scalar_select %p92, %s93, %s94
      %p98 = pneg %p92
      %p99 = scmp.eq.s32.totalorder %s24, 1
      %p100 = por %p98, %p99
      %p101 = scmp.ne.s32.totalorder %s93, %s96
      %p102 = scmp.eq.s32.totalorder %s24, 0
      %p103 = por %p101, %p102
      %p104 = scmp.ne.s32.totalorder %s93, %s96
      %p105 = scmp.eq.s32.totalorder %s29, 1
      %p106 = por %p104, %p105
      %p107 = scmp.ne.s32.totalorder %s96, %s97
      %p108 = scmp.eq.s32.totalorder %s29, 0
      %p109 = por %p107, %p108
      %p110 = scmp.ne.s32.totalorder %s96, %s97
      %p111 = scmp.eq.s32.totalorder %s30, 1
      %p112 = por %p110, %p111
      %p114 = scmp.ne.s32.totalorder %s97, %s113
      %p115 = scmp.eq.s32.totalorder %s30, 0
      %p116 = por %p114, %p115
      %s117 = ssub.s32 %s32, %s39
      %p118 = scmp.eq.s32.totalorder %s117, 0
      %s120 = sadd.s32 %s119, 1
      %s121 = scalar_select %p118, %s119, %s120
      %p124 = pneg %p118
      %p125 = scmp.eq.s32.totalorder %s24, 1
      %p126 = por %p124, %p125
      %p127 = scmp.ne.s32.totalorder %s119, %s122
      %p128 = scmp.eq.s32.totalorder %s24, 0
      %p129 = por %p127, %p128
      %p130 = scmp.ne.s32.totalorder %s119, %s122
      %p131 = scmp.eq.s32.totalorder %s29, 1
      %p132 = por %p130, %p131
      %p133 = scmp.ne.s32.totalorder %s122, %s123
      %p134 = scmp.eq.s32.totalorder %s29, 0
      %p135 = por %p133, %p134
      %p136 = scmp.ne.s32.totalorder %s122, %s123
      %p137 = scmp.eq.s32.totalorder %s30, 1
      %p138 = por %p136, %p137
      %p140 = scmp.ne.s32.totalorder %s123, %s139
      %p141 = scmp.eq.s32.totalorder %s30, 0
      %p142 = por %p140, %p141
      %s143 = ssub.s32 %s32, %s39
      %p144 = scmp.eq.s32.totalorder %s143, 0
      %s146 = sadd.s32 %s145, 1
      %s147 = scalar_select %p144, %s145, %s146
      %p150 = pneg %p144
      %p151 = scmp.eq.s32.totalorder %s24, 1
      %p152 = por %p150, %p151
      %p153 = scmp.ne.s32.totalorder %s145, %s148
      %p154 = scmp.eq.s32.totalorder %s24, 0
      %p155 = por %p153, %p154
      %p156 = scmp.ne.s32.totalorder %s145, %s148
      %p157 = scmp.eq.s32.totalorder %s29, 1
      %p158 = por %p156, %p157
      %p159 = scmp.ne.s32.totalorder %s148, %s149
      %p160 = scmp.eq.s32.totalorder %s29, 0
      %p161 = por %p159, %p160
      %p162 = scmp.ne.s32.totalorder %s148, %s149
      %p163 = scmp.eq.s32.totalorder %s30, 1
      %p164 = por %p162, %p163
      %p166 = scmp.ne.s32.totalorder %s149, %s165
      %p167 = scmp.eq.s32.totalorder %s30, 0
      %p168 = por %p166, %p167
      %s169 = ssub.s32 %s32, %s39
      %p170 = scmp.eq.s32.totalorder %s169, 0
      %s172 = sadd.s32 %s171, 1
      %s173 = scalar_select %p170, %s171, %s172
      %p176 = pneg %p170
      %p177 = scmp.eq.s32.totalorder %s24, 1
      %p178 = por %p176, %p177
      %p179 = scmp.ne.s32.totalorder %s171, %s174
      %p180 = scmp.eq.s32.totalorder %s24, 0
      %p181 = por %p179, %p180
      %p182 = scmp.ne.s32.totalorder %s171, %s174
      %p183 = scmp.eq.s32.totalorder %s29, 1
      %p184 = por %p182, %p183
      %p185 = scmp.ne.s32.totalorder %s174, %s175
      %p186 = scmp.eq.s32.totalorder %s29, 0
      %p187 = por %p185, %p186
      %p188 = scmp.ne.s32.totalorder %s174, %s175
      %p189 = scmp.eq.s32.totalorder %s30, 1
      %p190 = por %p188, %p189
      %p192 = scmp.ne.s32.totalorder %s175, %s191
      %p193 = scmp.eq.s32.totalorder %s30, 0
      %p194 = por %p192, %p193
      %s195 = ssub.s32 %s32, %s39
      %p196 = scmp.eq.s32.totalorder %s195, 0
      %s198 = sadd.s32 %s197, 1
      %s199 = scalar_select %p196, %s197, %s198
      %p202 = pneg %p196
      %p203 = scmp.eq.s32.totalorder %s24, 1
      %p204 = por %p202, %p203
      %p205 = scmp.ne.s32.totalorder %s197, %s200
      %p206 = scmp.eq.s32.totalorder %s24, 0
      %p207 = por %p205, %p206
      %p208 = scmp.ne.s32.totalorder %s197, %s200
      %p209 = scmp.eq.s32.totalorder %s29, 1
      %p210 = por %p208, %p209
      %p211 = scmp.ne.s32.totalorder %s200, %s201
      %p212 = scmp.eq.s32.totalorder %s29, 0
      %p213 = por %p211, %p212
      %p214 = scmp.ne.s32.totalorder %s200, %s201
      %p215 = scmp.eq.s32.totalorder %s30, 1
      %p216 = por %p214, %p215
      %p218 = scmp.ne.s32.totalorder %s201, %s217
      %p219 = scmp.eq.s32.totalorder %s30, 0
      %p220 = por %p218, %p219
      %s221 = ssub.s32 %s32, %s39
      %p222 = scmp.eq.s32.totalorder %s221, 0
      %s224 = sadd.s32 %s223, 1
      %s225 = scalar_select %p222, %s223, %s224
      %p228 = pneg %p222
      %p229 = scmp.eq.s32.totalorder %s24, 1
      %p230 = por %p228, %p229
      %p231 = scmp.ne.s32.totalorder %s223, %s226
      %p232 = scmp.eq.s32.totalorder %s24, 0
      %p233 = por %p231, %p232
      %p234 = scmp.ne.s32.totalorder %s223, %s226
      %p235 = scmp.eq.s32.totalorder %s29, 1
      %p236 = por %p234, %p235
      %p237 = scmp.ne.s32.totalorder %s226, %s227
      %p238 = scmp.eq.s32.totalorder %s29, 0
      %p239 = por %p237, %p238
      %p240 = scmp.ne.s32.totalorder %s226, %s227
      %p241 = scmp.eq.s32.totalorder %s30, 1
      %p242 = por %p240, %p241
      %p244 = scmp.ne.s32.totalorder %s227, %s243
      %p245 = scmp.eq.s32.totalorder %s30, 0
      %p246 = por %p244, %p245
      %s247 = ssub.s32 %s32, %s39
      %p248 = scmp.eq.s32.totalorder %s247, 0
      %s250 = sadd.s32 %s249, 1
      %s251 = scalar_select %p248, %s249, %s250
      %p254 = pneg %p248
      %p255 = scmp.eq.s32.totalorder %s24, 1
      %p256 = por %p254, %p255
      %p257 = scmp.ne.s32.totalorder %s249, %s252
      %p258 = scmp.eq.s32.totalorder %s24, 0
      %p259 = por %p257, %p258
      %p260 = scmp.ne.s32.totalorder %s249, %s252
      %p261 = scmp.eq.s32.totalorder %s29, 1
      %p262 = por %p260, %p261
      %p263 = scmp.ne.s32.totalorder %s252, %s253
      %p264 = scmp.eq.s32.totalorder %s29, 0
      %p265 = por %p263, %p264
      %p266 = scmp.ne.s32.totalorder %s252, %s253
      %p267 = scmp.eq.s32.totalorder %s30, 1
      %p268 = por %p266, %p267
      %p270 = scmp.ne.s32.totalorder %s253, %s269
      %p271 = scmp.eq.s32.totalorder %s30, 0
      %p272 = por %p270, %p271
      %s273 = ssub.s32 %s32, %s39
      %p274 = scmp.eq.s32.totalorder %s273, 0
      %s276 = sadd.s32 %s275, 1
      %s277 = scalar_select %p274, %s275, %s276
      %p280 = pneg %p274
      %p281 = scmp.eq.s32.totalorder %s24, 1
      %p282 = por %p280, %p281
      %p283 = scmp.ne.s32.totalorder %s275, %s278
      %p284 = scmp.eq.s32.totalorder %s24, 0
      %p285 = por %p283, %p284
      %p286 = scmp.ne.s32.totalorder %s275, %s278
      %p287 = scmp.eq.s32.totalorder %s29, 1
      %p288 = por %p286, %p287
      %p289 = scmp.ne.s32.totalorder %s278, %s279
      %p290 = scmp.eq.s32.totalorder %s29, 0
      %p291 = por %p289, %p290
      %p292 = scmp.ne.s32.totalorder %s278, %s279
      %p293 = scmp.eq.s32.totalorder %s30, 1
      %p294 = por %p292, %p293
      %p296 = scmp.ne.s32.totalorder %s279, %s295
      %p297 = scmp.eq.s32.totalorder %s30, 0
      %p298 = por %p296, %p297
      %s299 = ssub.s32 %s32, %s39
      %p300 = scmp.eq.s32.totalorder %s299, 0
      %s302 = sadd.s32 %s301, 1
      %s303 = scalar_select %p300, %s301, %s302
      %p306 = pneg %p300
      %p307 = scmp.eq.s32.totalorder %s24, 1
      %p308 = por %p306, %p307
      %p309 = scmp.ne.s32.totalorder %s301, %s304
      %p310 = scmp.eq.s32.totalorder %s24, 0
      %p311 = por %p309, %p310
      %p312 = scmp.ne.s32.totalorder %s301, %s304
      %p313 = scmp.eq.s32.totalorder %s29, 1
      %p314 = por %p312, %p313
      %p315 = scmp.ne.s32.totalorder %s304, %s305
      %p316 = scmp.eq.s32.totalorder %s29, 0
      %p317 = por %p315, %p316
      %p318 = scmp.ne.s32.totalorder %s304, %s305
      %p319 = scmp.eq.s32.totalorder %s30, 1
      %p320 = por %p318, %p319
      %p322 = scmp.ne.s32.totalorder %s305, %s321
      %p323 = scmp.eq.s32.totalorder %s30, 0
      %p324 = por %p322, %p323
      %s325 = ssub.s32 %s32, %s39
      %p326 = scmp.eq.s32.totalorder %s325, 0
      %s328 = sadd.s32 %s327, 1
      %s329 = scalar_select %p326, %s327, %s328
      %p332 = pneg %p326
      %p333 = scmp.eq.s32.totalorder %s24, 1
      %p334 = por %p332, %p333
      %p335 = scmp.ne.s32.totalorder %s327, %s330
      %p336 = scmp.eq.s32.totalorder %s24, 0
      %p337 = por %p335, %p336
      %p338 = scmp.ne.s32.totalorder %s327, %s330
      %p339 = scmp.eq.s32.totalorder %s29, 1
      %p340 = por %p338, %p339
      %p341 = scmp.ne.s32.totalorder %s330, %s331
      %p342 = scmp.eq.s32.totalorder %s29, 0
      %p343 = por %p341, %p342
      %p344 = scmp.ne.s32.totalorder %s330, %s331
      %p345 = scmp.eq.s32.totalorder %s30, 1
      %p346 = por %p344, %p345
      %p348 = scmp.ne.s32.totalorder %s331, %s347
      %p349 = scmp.eq.s32.totalorder %s30, 0
      %p350 = por %p348, %p349
      %s351 = ssub.s32 %s32, %s39
      %p352 = scmp.eq.s32.totalorder %s351, 0
      %s354 = sadd.s32 %s353, 1
      %s355 = scalar_select %p352, %s353, %s354
      %p358 = pneg %p352
      %p359 = scmp.eq.s32.totalorder %s24, 1
      %p360 = por %p358, %p359
      %p361 = scmp.ne.s32.totalorder %s353, %s356
      %p362 = scmp.eq.s32.totalorder %s24, 0
      %p363 = por %p361, %p362
      %p364 = scmp.ne.s32.totalorder %s353, %s356
      %p365 = scmp.eq.s32.totalorder %s29, 1
      %p366 = por %p364, %p365
      %p367 = scmp.ne.s32.totalorder %s356, %s357
      %p368 = scmp.eq.s32.totalorder %s29, 0
      %p369 = por %p367, %p368
      %p370 = scmp.ne.s32.totalorder %s356, %s357
      %p371 = scmp.eq.s32.totalorder %s30, 1
      %p372 = por %p370, %p371
      %p374 = scmp.ne.s32.totalorder %s357, %s373
      %p375 = scmp.eq.s32.totalorder %s30, 0
      %p376 = por %p374, %p375
      %s378 = sadd.s32 %s377, 1
      %p381 = scmp.eq.s32.totalorder %s24, 1
      %p382 = scmp.ne.s32.totalorder %s377, %s379
      %p383 = scmp.eq.s32.totalorder %s24, 0
      %p384 = por %p382, %p383
      %p385 = scmp.ne.s32.totalorder %s377, %s379
      %p386 = scmp.eq.s32.totalorder %s29, 1
      %p387 = por %p385, %p386
      %p388 = scmp.ne.s32.totalorder %s379, %s380
      %p389 = scmp.eq.s32.totalorder %s29, 0
      %p390 = por %p388, %p389
      %p391 = scmp.ne.s32.totalorder %s379, %s380
      %p392 = scmp.eq.s32.totalorder %s30, 1
      %p393 = por %p391, %p392
      %p395 = scmp.ne.s32.totalorder %s380, %s394
      %p396 = scmp.eq.s32.totalorder %s30, 0
      %p397 = por %p395, %p396
      %s399 = sadd.s32 %s398, 1
      %p402 = scmp.eq.s32.totalorder %s24, 1
      %p403 = scmp.ne.s32.totalorder %s398, %s400
      %p404 = scmp.eq.s32.totalorder %s24, 0
      %p405 = por %p403, %p404
      %p406 = scmp.ne.s32.totalorder %s398, %s400
      %p407 = scmp.eq.s32.totalorder %s29, 1
      %p408 = por %p406, %p407
      %p409 = scmp.ne.s32.totalorder %s400, %s401
      %p410 = scmp.eq.s32.totalorder %s29, 0
      %p411 = por %p409, %p410
      %p412 = scmp.ne.s32.totalorder %s400, %s401
      %p413 = scmp.eq.s32.totalorder %s30, 1
      %p414 = por %p412, %p413
      %p416 = scmp.ne.s32.totalorder %s401, %s415
      %p417 = scmp.eq.s32.totalorder %s30, 0
      %p418 = por %p416, %p417
      %s419 = ssub.s32 %s31, %s43
      %p420 = scmp.eq.s32.totalorder %s419, 0
      %s422 = sadd.s32 %s421, 1
      %s423 = scalar_select %p420, %s421, %s422
      %p426 = pneg %p420
      %p427 = scmp.eq.s32.totalorder %s24, 1
      %p428 = por %p426, %p427
      %p429 = scmp.ne.s32.totalorder %s421, %s424
      %p430 = scmp.eq.s32.totalorder %s24, 0
      %p431 = por %p429, %p430
      %p432 = scmp.ne.s32.totalorder %s421, %s424
      %p433 = scmp.eq.s32.totalorder %s29, 1
      %p434 = por %p432, %p433
      %p435 = scmp.ne.s32.totalorder %s424, %s425
      %p436 = scmp.eq.s32.totalorder %s29, 0
      %p437 = por %p435, %p436
      %p438 = scmp.ne.s32.totalorder %s424, %s425
      %p439 = scmp.eq.s32.totalorder %s30, 1
      %p440 = por %p438, %p439
      %p442 = scmp.ne.s32.totalorder %s425, %s441
      %p443 = scmp.eq.s32.totalorder %s30, 0
      %p444 = por %p442, %p443
      %p445 = scmp.le.s32.totalorder 1, %s24
      %p446 = scmp.lt.s32.totalorder %s24, 3
      %p447 = pnand %p445, %p446
      %p448 = pneg %p447
      // Predicated region
      $region9: #{tpu_custom_call.1} parent=5 // pred_check
        _
      $region10: #{tpu_custom_call.1} parent=5 // pred_check_branch
        %450 = sbr.rel (%p447) target = $region12
      $region11: #{tpu_custom_call.1} parent=5 // pred_region
        %s451 = ssub.s32 %s24, 1
        // Predicated region
        $region13: #{tpu_custom_call.1} parent=11 // pred_check
          %p452 = pneg %p62
        $region14: #{tpu_custom_call.1} parent=11 // pred_check_branch
          %454 = sbr.rel (%p452) target = $region16
        $region15: #{tpu_custom_call.1} parent=11 // pred_region
          %s455 = smul.u32 2, %s33
          %s457 = ssub.s32 2048, 2048
          %458 = vsyncadd [#allocation5], %s457
          %s459 = smul.addr %s455, 8
          %s460 = smul.addr %s459, 128
          %s461 = scalar_lea.hbm %s0, %s460
          %s462 = sshll.u32 [#allocation4], 4
          %s463 = int_to_ptr.vmem [resolvable:$true] %s462
          %468 = dma.hbm_to_vmem [thread:$0]  %s461, 2048, %s463, [#allocation5], 256, 256, 16
        $region16: #{tpu_custom_call.1} parent=11 // pred_fallthru
          _
        // Predicated region
        $region17: #{tpu_custom_call.1} parent=11 // pred_check
          %p469 = pneg %p83
        $region18: #{tpu_custom_call.1} parent=11 // pred_check_branch
          %471 = sbr.rel (%p469) target = $region20
        $region19: #{tpu_custom_call.1} parent=11 // pred_region
          %s473 = ssub.s32 1024, 1024
          %474 = vsyncadd [#allocation8], %s473
          %s475 = sshll.u32 [#allocation7], 4
          %s476 = int_to_ptr.vmem [resolvable:$true] %s475
          %481 = dma.hbm_to_vmem [thread:$0]  %s1, 1024, %s476, [#allocation8], 256, 256, 16
        $region20: #{tpu_custom_call.1} parent=11 // pred_fallthru
          _
        // Predicated region
        $region21: #{tpu_custom_call.1} parent=11 // pred_check
          %p482 = pneg %p390
        $region22: #{tpu_custom_call.1} parent=11 // pred_check_branch
          %484 = sbr.rel (%p482) target = $region24
        $region23: #{tpu_custom_call.1} parent=11 // pred_region
          _
        $region24: #{tpu_custom_call.1} parent=11 // pred_fallthru
          _
        // Predicated region
        $region25: #{tpu_custom_call.1} parent=11 // pred_check
          %p485 = pneg %p411
        $region26: #{tpu_custom_call.1} parent=11 // pred_check_branch
          %487 = sbr.rel (%p485) target = $region28
        $region27: #{tpu_custom_call.1} parent=11 // pred_region
          _
        $region28: #{tpu_custom_call.1} parent=11 // pred_fallthru
          _
      $region12: #{tpu_custom_call.1} parent=5 // pred_fallthru
        _
      %p488 = scmp.lt.s32.totalorder %s24, 2
      // Predicated region
      $region29: #{tpu_custom_call.1} parent=5 // pred_check
        %p489 = pneg %p488
      $region30: #{tpu_custom_call.1} parent=5 // pred_check_branch
        %491 = sbr.rel (%p489) target = $region32
      $region31: #{tpu_custom_call.1} parent=5 // pred_region
        // Predicated region
        $region33: #{tpu_custom_call.1} parent=31 // pred_check
          %p492 = pneg %p103
        $region34: #{tpu_custom_call.1} parent=31 // pred_check_branch
          %494 = sbr.rel (%p492) target = $region36
        $region35: #{tpu_custom_call.1} parent=31 // pred_region
          %s495 = sand.u32 %s24, 1
          %s496 = scalar_lea.sflag [#allocation5], %s495
          %s497 = sand.u32 %s93, 1
          %s498 = smul.addr %s497, 2
          %s499 = scalar_lea.vmem [#allocation9], %s498
          %s501 = ssub.s32 32, 32
          %502 = vsyncadd %s496, %s501
          %s503 = smul.addr %s32, 2
          %s504 = smul.addr %s503, 16
          %s505 = scalar_lea.hbm %s2, %s504
          %s507 = sshll.u32 %s499, 4
          %s508 = int_to_ptr.vmem [resolvable:$true] %s507
          %510 = dma.hbm_to_vmem [thread:$0]  %s505, 32, %s508, %s496
        $region36: #{tpu_custom_call.1} parent=31 // pred_fallthru
          _
        // Predicated region
        $region37: #{tpu_custom_call.1} parent=31 // pred_check
          %p511 = pneg %p129
        $region38: #{tpu_custom_call.1} parent=31 // pred_check_branch
          %513 = sbr.rel (%p511) target = $region40
        $region39: #{tpu_custom_call.1} parent=31 // pred_region
          %s514 = sand.u32 %s24, 1
          %s515 = scalar_lea.sflag [#allocation5], %s514
          %s516 = sand.u32 %s119, 1
          %s517 = smul.addr %s516, 2
          %s518 = scalar_lea.vmem [#allocation10], %s517
          %s520 = ssub.s32 32, 32
          %521 = vsyncadd %s515, %s520
          %s522 = smul.addr %s32, 2
          %s523 = smul.addr %s522, 16
          %s524 = scalar_lea.hbm %s3, %s523
          %s526 = sshll.u32 %s518, 4
          %s527 = int_to_ptr.vmem [resolvable:$true] %s526
          %529 = dma.hbm_to_vmem [thread:$0]  %s524, 32, %s527, %s515
        $region40: #{tpu_custom_call.1} parent=31 // pred_fallthru
          _
        // Predicated region
        $region41: #{tpu_custom_call.1} parent=31 // pred_check
          %p530 = pneg %p155
        $region42: #{tpu_custom_call.1} parent=31 // pred_check_branch
          %532 = sbr.rel (%p530) target = $region44
        $region43: #{tpu_custom_call.1} parent=31 // pred_region
          %s533 = sand.u32 %s24, 1
          %s534 = scalar_lea.sflag [#allocation5], %s533
          %s535 = sand.u32 %s145, 1
          %s536 = smul.addr %s535, 768
          %s537 = scalar_lea.vmem [#allocation11], %s536
          %s539 = ssub.s32 12288, 12288
          %540 = vsyncadd %s534, %s539
          %s541 = smul.addr %s32, 192
          %s542 = smul.addr %s541, 64
          %s543 = scalar_lea.hbm %s4, %s542
          %s544 = sshll.u32 %s537, 4
          %s545 = int_to_ptr.vmem [resolvable:$true] %s544
          %550 = dma.hbm_to_vmem [thread:$0]  %s543, 12288, %s545, %s534, 384, 384, 24
        $region44: #{tpu_custom_call.1} parent=31 // pred_fallthru
          _
        // Predicated region
        $region45: #{tpu_custom_call.1} parent=31 // pred_check
          %p551 = pneg %p181
        $region46: #{tpu_custom_call.1} parent=31 // pred_check_branch
          %553 = sbr.rel (%p551) target = $region48
        $region47: #{tpu_custom_call.1} parent=31 // pred_region
          %s554 = sand.u32 %s24, 1
          %s555 = scalar_lea.sflag [#allocation5], %s554
          %s556 = sand.u32 %s171, 1
          %s557 = smul.addr %s556, 256
          %s558 = scalar_lea.vmem [#allocation12], %s557
          %s560 = ssub.s32 4096, 4096
          %561 = vsyncadd %s555, %s560
          %s562 = smul.addr %s32, 64
          %s563 = smul.addr %s562, 64
          %s564 = scalar_lea.hbm %s5, %s563
          %s565 = sshll.u32 %s558, 4
          %s566 = int_to_ptr.vmem [resolvable:$true] %s565
          %571 = dma.hbm_to_vmem [thread:$0]  %s564, 4096, %s566, %s555, 128, 128, 8
        $region48: #{tpu_custom_call.1} parent=31 // pred_fallthru
          _
        // Predicated region
        $region49: #{tpu_custom_call.1} parent=31 // pred_check
          %p572 = pneg %p207
        $region50: #{tpu_custom_call.1} parent=31 // pred_check_branch
          %574 = sbr.rel (%p572) target = $region52
        $region51: #{tpu_custom_call.1} parent=31 // pred_region
          %s575 = sand.u32 %s24, 1
          %s576 = scalar_lea.sflag [#allocation5], %s575
          %s577 = sand.u32 %s197, 1
          %s578 = smul.addr %s577, 2
          %s579 = scalar_lea.vmem [#allocation13], %s578
          %s581 = ssub.s32 32, 32
          %582 = vsyncadd %s576, %s581
          %s583 = smul.addr %s32, 2
          %s584 = smul.addr %s583, 16
          %s585 = scalar_lea.hbm %s6, %s584
          %s587 = sshll.u32 %s579, 4
          %s588 = int_to_ptr.vmem [resolvable:$true] %s587
          %590 = dma.hbm_to_vmem [thread:$0]  %s585, 32, %s588, %s576
        $region52: #{tpu_custom_call.1} parent=31 // pred_fallthru
          _
        // Predicated region
        $region53: #{tpu_custom_call.1} parent=31 // pred_check
          %p591 = pneg %p233
        $region54: #{tpu_custom_call.1} parent=31 // pred_check_branch
          %593 = sbr.rel (%p591) target = $region56
        $region55: #{tpu_custom_call.1} parent=31 // pred_region
          %s594 = sand.u32 %s24, 1
          %s595 = scalar_lea.sflag [#allocation5], %s594
          %s596 = sand.u32 %s223, 1
          %s597 = smul.addr %s596, 2
          %s598 = scalar_lea.vmem [#allocation14], %s597
          %s600 = ssub.s32 32, 32
          %601 = vsyncadd %s595, %s600
          %s602 = smul.addr %s32, 2
          %s603 = smul.addr %s602, 16
          %s604 = scalar_lea.hbm %s7, %s603
          %s606 = sshll.u32 %s598, 4
          %s607 = int_to_ptr.vmem [resolvable:$true] %s606
          %609 = dma.hbm_to_vmem [thread:$0]  %s604, 32, %s607, %s595
        $region56: #{tpu_custom_call.1} parent=31 // pred_fallthru
          _
        // Predicated region
        $region57: #{tpu_custom_call.1} parent=31 // pred_check
          %p610 = pneg %p259
        $region58: #{tpu_custom_call.1} parent=31 // pred_check_branch
          %612 = sbr.rel (%p610) target = $region60
        $region59: #{tpu_custom_call.1} parent=31 // pred_region
          %s613 = sand.u32 %s24, 1
          %s614 = scalar_lea.sflag [#allocation5], %s613
          %s615 = sand.u32 %s249, 1
          %s616 = smul.addr %s615, 2
          %s617 = scalar_lea.vmem [#allocation15], %s616
          %s619 = ssub.s32 32, 32
          %620 = vsyncadd %s614, %s619
          %s621 = smul.addr %s32, 2
          %s622 = smul.addr %s621, 16
          %s623 = scalar_lea.hbm %s8, %s622
          %s625 = sshll.u32 %s617, 4
          %s626 = int_to_ptr.vmem [resolvable:$true] %s625
          %628 = dma.hbm_to_vmem [thread:$0]  %s623, 32, %s626, %s614
        $region60: #{tpu_custom_call.1} parent=31 // pred_fallthru
          _
        // Predicated region
        $region61: #{tpu_custom_call.1} parent=31 // pred_check
          %p629 = pneg %p285
        $region62: #{tpu_custom_call.1} parent=31 // pred_check_branch
          %631 = sbr.rel (%p629) target = $region64
        $region63: #{tpu_custom_call.1} parent=31 // pred_region
          %s632 = sand.u32 %s24, 1
          %s633 = scalar_lea.sflag [#allocation5], %s632
          %s634 = sand.u32 %s275, 1
          %s635 = smul.addr %s634, 1024
          %s636 = scalar_lea.vmem [#allocation16], %s635
          %s638 = ssub.s32 16384, 16384
          %639 = vsyncadd %s633, %s638
          %s640 = smul.addr %s32, 256
          %s641 = smul.addr %s640, 64
          %s642 = scalar_lea.hbm %s9, %s641
          %s643 = sshll.u32 %s636, 4
          %s644 = int_to_ptr.vmem [resolvable:$true] %s643
          %649 = dma.hbm_to_vmem [thread:$0]  %s642, 16384, %s644, %s633, 512, 512, 32
        $region64: #{tpu_custom_call.1} parent=31 // pred_fallthru
          _
        // Predicated region
        $region65: #{tpu_custom_call.1} parent=31 // pred_check
          %p650 = pneg %p311
        $region66: #{tpu_custom_call.1} parent=31 // pred_check_branch
          %652 = sbr.rel (%p650) target = $region68
        $region67: #{tpu_custom_call.1} parent=31 // pred_region
          %p653 = scmp.lt.s32.totalorder %s32, 1
          %s654 = scalar_select %p653, %s32, 1
          %s655 = smul.addr %s654, 8
          %s656 = scalar_lea.vmem %s10, %s655
        $region68: #{tpu_custom_call.1} parent=31 // pred_fallthru
          _
        // Predicated region
        $region69: #{tpu_custom_call.1} parent=31 // pred_check
          %p657 = pneg %p337
        $region70: #{tpu_custom_call.1} parent=31 // pred_check_branch
          %659 = sbr.rel (%p657) target = $region72
        $region71: #{tpu_custom_call.1} parent=31 // pred_region
          %s660 = sand.u32 %s24, 1
          %s661 = scalar_lea.sflag [#allocation5], %s660
          %s662 = sand.u32 %s327, 1
          %s663 = smul.addr %s662, 1024
          %s664 = scalar_lea.vmem [#allocation17], %s663
          %s666 = ssub.s32 16384, 16384
          %667 = vsyncadd %s661, %s666
          %s668 = smul.addr %s32, 256
          %s669 = smul.addr %s668, 64
          %s670 = scalar_lea.hbm %s11, %s669
          %s671 = sshll.u32 %s664, 4
          %s672 = int_to_ptr.vmem [resolvable:$true] %s671
          %677 = dma.hbm_to_vmem [thread:$0]  %s670, 16384, %s672, %s661, 128, 128, 8
        $region72: #{tpu_custom_call.1} parent=31 // pred_fallthru
          _
        // Predicated region
        $region73: #{tpu_custom_call.1} parent=31 // pred_check
          %p678 = pneg %p363
        $region74: #{tpu_custom_call.1} parent=31 // pred_check_branch
          %680 = sbr.rel (%p678) target = $region76
        $region75: #{tpu_custom_call.1} parent=31 // pred_region
          %p681 = scmp.lt.s32.totalorder %s32, 1
          %s682 = scalar_select %p681, %s32, 1
          %s683 = smul.addr %s682, 2
          %s684 = scalar_lea.vmem %s12, %s683
        $region76: #{tpu_custom_call.1} parent=31 // pred_fallthru
          _
      $region32: #{tpu_custom_call.1} parent=5 // pred_fallthru
        _
      %p685 = scmp.le.s32.totalorder 1, %s24
      %p686 = scmp.lt.s32.totalorder %s24, 3
      %p687 = pnand %p685, %p686
      %p688 = pneg %p687
      // Predicated region
      $region77: #{tpu_custom_call.1} parent=5 // pred_check
        _
      $region78: #{tpu_custom_call.1} parent=5 // pred_check_branch
        %690 = sbr.rel (%p687) target = $region80
      $region79: #{tpu_custom_call.1} parent=5 // pred_region
        %s691 = ssub.s32 %s24, 1
        // Predicated region
        $region81: #{tpu_custom_call.1} parent=79 // pred_check
          %p692 = pneg %p62
        $region82: #{tpu_custom_call.1} parent=79 // pred_check_branch
          %694 = sbr.rel (%p692) target = $region84
        $region83: #{tpu_custom_call.1} parent=79 // pred_region
          %695 = dma.done [#allocation5], 2048
        $region84: #{tpu_custom_call.1} parent=79 // pred_fallthru
          _
        // Predicated region
        $region85: #{tpu_custom_call.1} parent=79 // pred_check
          %p696 = pneg %p83
        $region86: #{tpu_custom_call.1} parent=79 // pred_check_branch
          %698 = sbr.rel (%p696) target = $region88
        $region87: #{tpu_custom_call.1} parent=79 // pred_region
          %699 = dma.done [#allocation8], 1024
        $region88: #{tpu_custom_call.1} parent=79 // pred_fallthru
          _
        %s700 = sand.u32 %s29, 1
        %s701 = scalar_lea.sflag [#allocation5], %s700
        %s702 = sand.u32 %s96, 1
        %s703 = smul.addr %s702, 2
        %s704 = scalar_lea.vmem [#allocation9], %s703
        // Predicated region
        $region89: #{tpu_custom_call.1} parent=79 // pred_check
          %p705 = pneg %p109
        $region90: #{tpu_custom_call.1} parent=79 // pred_check_branch
          %707 = sbr.rel (%p705) target = $region92
        $region91: #{tpu_custom_call.1} parent=79 // pred_region
          %708 = dma.done %s701, 32
        $region92: #{tpu_custom_call.1} parent=79 // pred_fallthru
          _
        %s709 = sand.u32 %s29, 1
        %s710 = scalar_lea.sflag [#allocation5], %s709
        %s711 = sand.u32 %s122, 1
        %s712 = smul.addr %s711, 2
        %s713 = scalar_lea.vmem [#allocation10], %s712
        // Predicated region
        $region93: #{tpu_custom_call.1} parent=79 // pred_check
          %p714 = pneg %p135
        $region94: #{tpu_custom_call.1} parent=79 // pred_check_branch
          %716 = sbr.rel (%p714) target = $region96
        $region95: #{tpu_custom_call.1} parent=79 // pred_region
          %717 = dma.done %s710, 32
        $region96: #{tpu_custom_call.1} parent=79 // pred_fallthru
          _
        %s718 = sand.u32 %s29, 1
        %s719 = scalar_lea.sflag [#allocation5], %s718
        %s720 = sand.u32 %s148, 1
        %s721 = smul.addr %s720, 768
        %s722 = scalar_lea.vmem [#allocation11], %s721
        // Predicated region
        $region97: #{tpu_custom_call.1} parent=79 // pred_check
          %p723 = pneg %p161
        $region98: #{tpu_custom_call.1} parent=79 // pred_check_branch
          %725 = sbr.rel (%p723) target = $region100
        $region99: #{tpu_custom_call.1} parent=79 // pred_region
          %726 = dma.done %s719, 12288
        $region100: #{tpu_custom_call.1} parent=79 // pred_fallthru
          _
        %s727 = sand.u32 %s29, 1
        %s728 = scalar_lea.sflag [#allocation5], %s727
        %s729 = sand.u32 %s174, 1
        %s730 = smul.addr %s729, 256
        %s731 = scalar_lea.vmem [#allocation12], %s730
        // Predicated region
        $region101: #{tpu_custom_call.1} parent=79 // pred_check
          %p732 = pneg %p187
        $region102: #{tpu_custom_call.1} parent=79 // pred_check_branch
          %734 = sbr.rel (%p732) target = $region104
        $region103: #{tpu_custom_call.1} parent=79 // pred_region
          %735 = dma.done %s728, 4096
        $region104: #{tpu_custom_call.1} parent=79 // pred_fallthru
          _
        %s736 = sand.u32 %s29, 1
        %s737 = scalar_lea.sflag [#allocation5], %s736
        %s738 = sand.u32 %s200, 1
        %s739 = smul.addr %s738, 2
        %s740 = scalar_lea.vmem [#allocation13], %s739
        // Predicated region
        $region105: #{tpu_custom_call.1} parent=79 // pred_check
          %p741 = pneg %p213
        $region106: #{tpu_custom_call.1} parent=79 // pred_check_branch
          %743 = sbr.rel (%p741) target = $region108
        $region107: #{tpu_custom_call.1} parent=79 // pred_region
          %744 = dma.done %s737, 32
        $region108: #{tpu_custom_call.1} parent=79 // pred_fallthru
          _
        %s745 = sand.u32 %s29, 1
        %s746 = scalar_lea.sflag [#allocation5], %s745
        %s747 = sand.u32 %s226, 1
        %s748 = smul.addr %s747, 2
        %s749 = scalar_lea.vmem [#allocation14], %s748
        // Predicated region
        $region109: #{tpu_custom_call.1} parent=79 // pred_check
          %p750 = pneg %p239
        $region110: #{tpu_custom_call.1} parent=79 // pred_check_branch
          %752 = sbr.rel (%p750) target = $region112
        $region111: #{tpu_custom_call.1} parent=79 // pred_region
          %753 = dma.done %s746, 32
        $region112: #{tpu_custom_call.1} parent=79 // pred_fallthru
          _
        %s754 = sand.u32 %s29, 1
        %s755 = scalar_lea.sflag [#allocation5], %s754
        %s756 = sand.u32 %s252, 1
        %s757 = smul.addr %s756, 2
        %s758 = scalar_lea.vmem [#allocation15], %s757
        // Predicated region
        $region113: #{tpu_custom_call.1} parent=79 // pred_check
          %p759 = pneg %p265
        $region114: #{tpu_custom_call.1} parent=79 // pred_check_branch
          %761 = sbr.rel (%p759) target = $region116
        $region115: #{tpu_custom_call.1} parent=79 // pred_region
          %762 = dma.done %s755, 32
        $region116: #{tpu_custom_call.1} parent=79 // pred_fallthru
          _
        %s763 = sand.u32 %s29, 1
        %s764 = scalar_lea.sflag [#allocation5], %s763
        %s765 = sand.u32 %s278, 1
        %s766 = smul.addr %s765, 1024
        %s767 = scalar_lea.vmem [#allocation16], %s766
        // Predicated region
        $region117: #{tpu_custom_call.1} parent=79 // pred_check
          %p768 = pneg %p291
        $region118: #{tpu_custom_call.1} parent=79 // pred_check_branch
          %770 = sbr.rel (%p768) target = $region120
        $region119: #{tpu_custom_call.1} parent=79 // pred_region
          %771 = dma.done %s764, 16384
        $region120: #{tpu_custom_call.1} parent=79 // pred_fallthru
          _
        %s772 = sand.u32 %s29, 1
        %s773 = scalar_lea.sflag [#allocation5], %s772
        %s774 = sand.u32 %s330, 1
        %s775 = smul.addr %s774, 1024
        %s776 = scalar_lea.vmem [#allocation17], %s775
        // Predicated region
        $region121: #{tpu_custom_call.1} parent=79 // pred_check
          %p777 = pneg %p343
        $region122: #{tpu_custom_call.1} parent=79 // pred_check_branch
          %779 = sbr.rel (%p777) target = $region124
        $region123: #{tpu_custom_call.1} parent=79 // pred_region
          %780 = dma.done %s773, 16384
        $region124: #{tpu_custom_call.1} parent=79 // pred_fallthru
          _
        %p781 = pneg %p62
        %p782 = pneg %p59
        %p783 = pneg %p83
        %p784 = pneg %p80
        %s785 = sand.u32 %s29, 1
        %s786 = scalar_lea.sflag [#allocation5], %s785
        %s787 = sand.u32 %s96, 1
        %s788 = smul.addr %s787, 2
        %s789 = scalar_lea.vmem [#allocation9], %s788
        %p790 = pneg %p109
        %p791 = pneg %p106
        %s792 = sand.u32 %s29, 1
        %s793 = scalar_lea.sflag [#allocation5], %s792
        %s794 = sand.u32 %s122, 1
        %s795 = smul.addr %s794, 2
        %s796 = scalar_lea.vmem [#allocation10], %s795
        %p797 = pneg %p135
        %p798 = pneg %p132
        %s799 = sand.u32 %s29, 1
        %s800 = scalar_lea.sflag [#allocation5], %s799
        %s801 = sand.u32 %s148, 1
        %s802 = smul.addr %s801, 768
        %s803 = scalar_lea.vmem [#allocation11], %s802
        %p804 = pneg %p161
        %p805 = pneg %p158
        %s806 = sand.u32 %s29, 1
        %s807 = scalar_lea.sflag [#allocation5], %s806
        %s808 = sand.u32 %s174, 1
        %s809 = smul.addr %s808, 256
        %s810 = scalar_lea.vmem [#allocation12], %s809
        %p811 = pneg %p187
        %p812 = pneg %p184
        %s813 = sand.u32 %s29, 1
        %s814 = scalar_lea.sflag [#allocation5], %s813
        %s815 = sand.u32 %s200, 1
        %s816 = smul.addr %s815, 2
        %s817 = scalar_lea.vmem [#allocation13], %s816
        %p818 = pneg %p213
        %p819 = pneg %p210
        %s820 = sand.u32 %s29, 1
        %s821 = scalar_lea.sflag [#allocation5], %s820
        %s822 = sand.u32 %s226, 1
        %s823 = smul.addr %s822, 2
        %s824 = scalar_lea.vmem [#allocation14], %s823
        %p825 = pneg %p239
        %p826 = pneg %p236
        %s827 = sand.u32 %s29, 1
        %s828 = scalar_lea.sflag [#allocation5], %s827
        %s829 = sand.u32 %s252, 1
        %s830 = smul.addr %s829, 2
        %s831 = scalar_lea.vmem [#allocation15], %s830
        %p832 = pneg %p265
        %p833 = pneg %p262
        %s834 = sand.u32 %s29, 1
        %s835 = scalar_lea.sflag [#allocation5], %s834
        %s836 = sand.u32 %s278, 1
        %s837 = smul.addr %s836, 1024
        %s838 = scalar_lea.vmem [#allocation16], %s837
        %p839 = pneg %p291
        %p840 = pneg %p288
        %p841 = scmp.lt.s32.totalorder %s34, 1
        %s842 = scalar_select %p841, %s34, 1
        %s843 = smul.addr %s842, 8
        %s844 = scalar_lea.vmem %s10, %s843
        %p845 = pneg %p317
        %p846 = pneg %p314
        %s847 = sand.u32 %s29, 1
        %s848 = scalar_lea.sflag [#allocation5], %s847
        %s849 = sand.u32 %s330, 1
        %s850 = smul.addr %s849, 1024
        %s851 = scalar_lea.vmem [#allocation17], %s850
        %p852 = pneg %p343
        %p853 = pneg %p340
        %p854 = scmp.lt.s32.totalorder %s34, 1
        %s855 = scalar_select %p854, %s34, 1
        %s856 = smul.addr %s855, 2
        %s857 = scalar_lea.vmem %s12, %s856
        %p858 = pneg %p369
        %p859 = pneg %p366
        %p860 = pneg %p390
        %p861 = pneg %p387
        %p862 = pneg %p411
        %p863 = pneg %p408
        %p864 = pneg %p437
        %p865 = pneg %p434
        %s866 = smul.u32 2, %s33
        %p867 = scmp.lt.s32.totalorder %s34, 1
        %s868 = scalar_select %p867, %s34, 1
        %s869 = smul.addr %s868, 8
        %s870 = scalar_lea.vmem %s10, %s869
        %p871 = scmp.lt.s32.totalorder %s34, 1
        %s872 = scalar_select %p871, %s34, 1
        %s873 = smul.addr %s872, 2
        %s874 = scalar_lea.vmem %s12, %s873
        %s875 = smul.u32 2, %s33
        %p877 = scmp.eq.s32.totalorder %s34, 0
        // Predicated region
        $region125: #{tpu_custom_call.1} parent=79 // pred_check
          %p878 = pneg %p877
        $region126: #{tpu_custom_call.1} parent=79 // pred_check_branch
          %880 = sbr.rel (%p878) target = $region128
        $region127: #{tpu_custom_call.1} parent=79 // pred_region
          %v881 = vld [vmem:[#allocation4] sm:$0xff]
          %v882 = vld [vmem:[#allocation4 + $0x8] sm:$0xff]
          %v883 = vld [vmem:[#allocation4 + $0x10] sm:$0xff]
          %v884 = vld [vmem:[#allocation4 + $0x18] sm:$0xff]
          %v885 = vld [vmem:[#allocation4 + $0x20] sm:$0xff]
          %v886 = vld [vmem:[#allocation4 + $0x28] sm:$0xff]
          %v887 = vld [vmem:[#allocation4 + $0x30] sm:$0xff]
          %v888 = vld [vmem:[#allocation4 + $0x38] sm:$0xff]
          %v889 = vld [vmem:[#allocation4 + $0x40] sm:$0xff]
          %v890 = vld [vmem:[#allocation4 + $0x48] sm:$0xff]
          %v891 = vld [vmem:[#allocation4 + $0x50] sm:$0xff]
          %v892 = vld [vmem:[#allocation4 + $0x58] sm:$0xff]
          %v893 = vld [vmem:[#allocation4 + $0x60] sm:$0xff]
          %v894 = vld [vmem:[#allocation4 + $0x68] sm:$0xff]
          %v895 = vld [vmem:[#allocation4 + $0x70] sm:$0xff]
          %v896 = vld [vmem:[#allocation4 + $0x78] sm:$0xff]
          %v897 = vld [vmem:[#allocation7] sm:$0xff]
          %v898 = vld [vmem:[#allocation7 + $0x8] sm:$0xff]
          %v899 = vld [vmem:[#allocation7 + $0x10] sm:$0xff]
          %v900 = vld [vmem:[#allocation7 + $0x18] sm:$0xff]
          %v901 = vld [vmem:[#allocation7 + $0x20] sm:$0xff]
          %v902 = vld [vmem:[#allocation7 + $0x28] sm:$0xff]
          %v903 = vld [vmem:[#allocation7 + $0x30] sm:$0xff]
          %v904 = vld [vmem:[#allocation7 + $0x38] sm:$0xff]
          %v905 = vadd.f32 %v881, %v897
          %v906 = vadd.f32 %v882, %v898
          %v907 = vadd.f32 %v883, %v899
          %v908 = vadd.f32 %v884, %v900
          %v909 = vadd.f32 %v885, %v901
          %v910 = vadd.f32 %v886, %v902
          %v911 = vadd.f32 %v887, %v903
          %v912 = vadd.f32 %v888, %v904
          %v913 = vadd.f32 %v889, %v897
          %v914 = vadd.f32 %v890, %v898
          %v915 = vadd.f32 %v891, %v899
          %v916 = vadd.f32 %v892, %v900
          %v917 = vadd.f32 %v893, %v901
          %v918 = vadd.f32 %v894, %v902
          %v919 = vadd.f32 %v895, %v903
          %v920 = vadd.f32 %v896, %v904
          %921 = vst [vmem:[#allocation2] sm:$0xff] %v905
          %922 = vst [vmem:[#allocation2 + $0x8] sm:$0xff] %v906
          %923 = vst [vmem:[#allocation2 + $0x10] sm:$0xff] %v907
          %924 = vst [vmem:[#allocation2 + $0x18] sm:$0xff] %v908
          %925 = vst [vmem:[#allocation2 + $0x20] sm:$0xff] %v909
          %926 = vst [vmem:[#allocation2 + $0x28] sm:$0xff] %v910
          %927 = vst [vmem:[#allocation2 + $0x30] sm:$0xff] %v911
          %928 = vst [vmem:[#allocation2 + $0x38] sm:$0xff] %v912
          %929 = vst [vmem:[#allocation2 + $0x40] sm:$0xff] %v913
          %930 = vst [vmem:[#allocation2 + $0x48] sm:$0xff] %v914
          %931 = vst [vmem:[#allocation2 + $0x50] sm:$0xff] %v915
          %932 = vst [vmem:[#allocation2 + $0x58] sm:$0xff] %v916
          %933 = vst [vmem:[#allocation2 + $0x60] sm:$0xff] %v917
          %934 = vst [vmem:[#allocation2 + $0x68] sm:$0xff] %v918
          %935 = vst [vmem:[#allocation2 + $0x70] sm:$0xff] %v919
          %936 = vst [vmem:[#allocation2 + $0x78] sm:$0xff] %v920
        $region128: #{tpu_custom_call.1} parent=79 // pred_fallthru
          _
        %v937 = vld [vmem:[#allocation2] sm:$0xff]
        %v938 = vld [vmem:[#allocation2 + $0x8] sm:$0xff]
        %v939 = vld [vmem:[#allocation2 + $0x10] sm:$0xff]
        %v940 = vld [vmem:[#allocation2 + $0x18] sm:$0xff]
        %v941 = vld [vmem:[#allocation2 + $0x20] sm:$0xff]
        %v942 = vld [vmem:[#allocation2 + $0x28] sm:$0xff]
        %v943 = vld [vmem:[#allocation2 + $0x30] sm:$0xff]
        %v944 = vld [vmem:[#allocation2 + $0x38] sm:$0xff]
        %v945 = vld [vmem:[#allocation2 + $0x40] sm:$0xff]
        %v946 = vld [vmem:[#allocation2 + $0x48] sm:$0xff]
        %v947 = vld [vmem:[#allocation2 + $0x50] sm:$0xff]
        %v948 = vld [vmem:[#allocation2 + $0x58] sm:$0xff]
        %v949 = vld [vmem:[#allocation2 + $0x60] sm:$0xff]
        %v950 = vld [vmem:[#allocation2 + $0x68] sm:$0xff]
        %v951 = vld [vmem:[#allocation2 + $0x70] sm:$0xff]
        %v952 = vld [vmem:[#allocation2 + $0x78] sm:$0xff]
        %v953 = vld [vmem:[%s704] sm:$0x3]
        %v954 = vld [vmem:[%s713] sm:$0x3]
        %v955 = vadd.f32 %v937, %v938
        %956 = vadd.xlane.f32.xlu0 %v955
        %v957 = vpop.xlane.xlu0 %956
        %v958 = vadd.f32 %v939, %v940
        %959 = vadd.xlane.f32.xlu0 %v958
        %v960 = vpop.xlane.xlu0 %959
        %v961 = vadd.f32 %v941, %v942
        %962 = vadd.xlane.f32.xlu0 %v961
        %v963 = vpop.xlane.xlu0 %962
        %v964 = vadd.f32 %v943, %v944
        %965 = vadd.xlane.f32.xlu0 %v964
        %v966 = vpop.xlane.xlu0 %965
        %v967 = vadd.f32 %v945, %v946
        %968 = vadd.xlane.f32.xlu0 %v967
        %v969 = vpop.xlane.xlu0 %968
        %v970 = vadd.f32 %v947, %v948
        %971 = vadd.xlane.f32.xlu0 %v970
        %v972 = vpop.xlane.xlu0 %971
        %v973 = vadd.f32 %v949, %v950
        %974 = vadd.xlane.f32.xlu0 %v973
        %v975 = vpop.xlane.xlu0 %974
        %v976 = vadd.f32 %v951, %v952
        %977 = vadd.xlane.f32.xlu0 %v976
        %v978 = vpop.xlane.xlu0 %977
        %v979 = vrcp.pop 256.0
        %v980 = vmul.f32 %v957, %v979
        %v981 = vmul.f32 %v960, %v979
        %v982 = vmul.f32 %v963, %v979
        %v983 = vmul.f32 %v966, %v979
        %v984 = vmul.f32 %v969, %v979
        %v985 = vmul.f32 %v972, %v979
        %v986 = vmul.f32 %v975, %v979
        %v987 = vmul.f32 %v978, %v979
        %v988 = vsub.f32 %v937, %v980
        %v989 = vsub.f32 %v938, %v980
        %v990 = vsub.f32 %v939, %v981
        %v991 = vsub.f32 %v940, %v981
        %v992 = vsub.f32 %v941, %v982
        %v993 = vsub.f32 %v942, %v982
        %v994 = vsub.f32 %v943, %v983
        %v995 = vsub.f32 %v944, %v983
        %v996 = vsub.f32 %v945, %v984
        %v997 = vsub.f32 %v946, %v984
        %v998 = vsub.f32 %v947, %v985
        %v999 = vsub.f32 %v948, %v985
        %v1000 = vsub.f32 %v949, %v986
        %v1001 = vsub.f32 %v950, %v986
        %v1002 = vsub.f32 %v951, %v987
        %v1003 = vsub.f32 %v952, %v987
        %v1004 = vmul.f32 %v988, %v988
        %v1005 = vmul.f32 %v989, %v989
        %v1006 = vmul.f32 %v990, %v990
        %v1007 = vmul.f32 %v991, %v991
        %v1008 = vmul.f32 %v992, %v992
        %v1009 = vmul.f32 %v993, %v993
        %v1010 = vmul.f32 %v994, %v994
        %v1011 = vmul.f32 %v995, %v995
        %v1012 = vmul.f32 %v996, %v996
        %v1013 = vmul.f32 %v997, %v997
        %v1014 = vmul.f32 %v998, %v998
        %v1015 = vmul.f32 %v999, %v999
        %v1016 = vmul.f32 %v1000, %v1000
        %v1017 = vmul.f32 %v1001, %v1001
        %v1018 = vmul.f32 %v1002, %v1002
        %v1019 = vmul.f32 %v1003, %v1003
        %v1020 = vadd.f32 %v1004, %v1005
        %1021 = vadd.xlane.f32.xlu0 %v1020
        %v1022 = vpop.xlane.xlu0 %1021
        %v1023 = vadd.f32 %v1006, %v1007
        %1024 = vadd.xlane.f32.xlu0 %v1023
        %v1025 = vpop.xlane.xlu0 %1024
        %v1026 = vadd.f32 %v1008, %v1009
        %1027 = vadd.xlane.f32.xlu0 %v1026
        %v1028 = vpop.xlane.xlu0 %1027
        %v1029 = vadd.f32 %v1010, %v1011
        %1030 = vadd.xlane.f32.xlu0 %v1029
        %v1031 = vpop.xlane.xlu0 %1030
        %v1032 = vadd.f32 %v1012, %v1013
        %1033 = vadd.xlane.f32.xlu0 %v1032
        %v1034 = vpop.xlane.xlu0 %1033
        %v1035 = vadd.f32 %v1014, %v1015
        %1036 = vadd.xlane.f32.xlu0 %v1035
        %v1037 = vpop.xlane.xlu0 %1036
        %v1038 = vadd.f32 %v1016, %v1017
        %1039 = vadd.xlane.f32.xlu0 %v1038
        %v1040 = vpop.xlane.xlu0 %1039
        %v1041 = vadd.f32 %v1018, %v1019
        %1042 = vadd.xlane.f32.xlu0 %v1041
        %v1043 = vpop.xlane.xlu0 %1042
        %v1044 = vmul.f32 %v1022, %v979
        %v1045 = vmul.f32 %v1025, %v979
        %v1046 = vmul.f32 %v1028, %v979
        %v1047 = vmul.f32 %v1031, %v979
        %v1048 = vmul.f32 %v1034, %v979
        %v1049 = vmul.f32 %v1037, %v979
        %v1050 = vmul.f32 %v1040, %v979
        %v1051 = vmul.f32 %v1043, %v979
        %v1052 = vadd.f32 %v1044, 1e-05
        %v1053 = vadd.f32 %v1045, 1e-05
        %v1054 = vadd.f32 %v1046, 1e-05
        %v1055 = vadd.f32 %v1047, 1e-05
        %v1056 = vadd.f32 %v1048, 1e-05
        %v1057 = vadd.f32 %v1049, 1e-05
        %v1058 = vadd.f32 %v1050, 1e-05
        %v1059 = vadd.f32 %v1051, 1e-05
        %v1060 = vrsqrt.pop %v1052
        %v1061 = vrsqrt.pop %v1053
        %v1062 = vrsqrt.pop %v1054
        %v1063 = vrsqrt.pop %v1055
        %v1064 = vrsqrt.pop %v1056
        %v1065 = vrsqrt.pop %v1057
        %v1066 = vrsqrt.pop %v1058
        %v1067 = vrsqrt.pop %v1059
        %v1068 = vmul.f32 %v988, %v1060
        %v1069 = vmul.f32 %v989, %v1060
        %v1070 = vmul.f32 %v990, %v1061
        %v1071 = vmul.f32 %v991, %v1061
        %v1072 = vmul.f32 %v992, %v1062
        %v1073 = vmul.f32 %v993, %v1062
        %v1074 = vmul.f32 %v994, %v1063
        %v1075 = vmul.f32 %v995, %v1063
        %v1076 = vmul.f32 %v996, %v1064
        %v1077 = vmul.f32 %v997, %v1064
        %v1078 = vmul.f32 %v998, %v1065
        %v1079 = vmul.f32 %v999, %v1065
        %v1080 = vmul.f32 %v1000, %v1066
        %v1081 = vmul.f32 %v1001, %v1066
        %v1082 = vmul.f32 %v1002, %v1067
        %v1083 = vmul.f32 %v1003, %v1067
        %v1085 = vlaneseq
        %v1086 = vshrl.u32 %v1085, 7
        %v1087 = vsub.s32 0, %v1086
        %v1088 = vrot.slane %v953, %v1087
        %v1089 = vlaneseq
        %v1090 = vshrl.u32 %v1089, 7
        %v1091 = vsub.s32 1, %v1090
        %v1092 = vrot.slane %v953, %v1091
        %v1095 = vmul.f32 %v1068, %v1088
        %v1096 = vmul.f32 %v1069, %v1092
        %v1097 = vmul.f32 %v1070, %v1088
        %v1098 = vmul.f32 %v1071, %v1092
        %v1099 = vmul.f32 %v1072, %v1088
        %v1100 = vmul.f32 %v1073, %v1092
        %v1101 = vmul.f32 %v1074, %v1088
        %v1102 = vmul.f32 %v1075, %v1092
        %v1103 = vmul.f32 %v1076, %v1088
        %v1104 = vmul.f32 %v1077, %v1092
        %v1105 = vmul.f32 %v1078, %v1088
        %v1106 = vmul.f32 %v1079, %v1092
        %v1107 = vmul.f32 %v1080, %v1088
        %v1108 = vmul.f32 %v1081, %v1092
        %v1109 = vmul.f32 %v1082, %v1088
        %v1110 = vmul.f32 %v1083, %v1092
        %v1112 = vlaneseq
        %v1113 = vshrl.u32 %v1112, 7
        %v1114 = vsub.s32 0, %v1113
        %v1115 = vrot.slane %v954, %v1114
        %v1116 = vlaneseq
        %v1117 = vshrl.u32 %v1116, 7
        %v1118 = vsub.s32 1, %v1117
        %v1119 = vrot.slane %v954, %v1118
        %v1122 = vadd.f32 %v1095, %v1115
        %v1123 = vadd.f32 %v1096, %v1119
        %v1124 = vadd.f32 %v1097, %v1115
        %v1125 = vadd.f32 %v1098, %v1119
        %v1126 = vadd.f32 %v1099, %v1115
        %v1127 = vadd.f32 %v1100, %v1119
        %v1128 = vadd.f32 %v1101, %v1115
        %v1129 = vadd.f32 %v1102, %v1119
        %v1130 = vadd.f32 %v1103, %v1115
        %v1131 = vadd.f32 %v1104, %v1119
        %v1132 = vadd.f32 %v1105, %v1115
        %v1133 = vadd.f32 %v1106, %v1119
        %v1134 = vadd.f32 %v1107, %v1115
        %v1135 = vadd.f32 %v1108, %v1119
        %v1136 = vadd.f32 %v1109, %v1115
        %v1137 = vadd.f32 %v1110, %v1119
        %v1138 = vpack.c.bf16 %v1124, %v1122
        %v1139 = vpack.c.bf16 %v1125, %v1123
        %v1140 = vpack.c.bf16 %v1128, %v1126
        %v1141 = vpack.c.bf16 %v1129, %v1127
        %v1142 = vpack.c.bf16 %v1132, %v1130
        %v1143 = vpack.c.bf16 %v1133, %v1131
        %v1144 = vpack.c.bf16 %v1136, %v1134
        %v1145 = vpack.c.bf16 %v1137, %v1135
        %v1146 = vld [vmem:[%s722] sm:$0xff]
        %v1147 = vld [vmem:[%s722 + $0x8] sm:$0xff]
        %v1148 = vld [vmem:[%s722 + $0x10] sm:$0xff]
        %v1149 = vld [vmem:[%s722 + $0x18] sm:$0xff]
        %v1150 = vld [vmem:[%s722 + $0x20] sm:$0xff]
        %v1151 = vld [vmem:[%s722 + $0x28] sm:$0xff]
        %v1152 = vld [vmem:[%s722 + $0x30] sm:$0xff]
        %v1153 = vld [vmem:[%s722 + $0x38] sm:$0xff]
        %v1154 = vld [vmem:[%s722 + $0x40] sm:$0xff]
        %v1155 = vld [vmem:[%s722 + $0x48] sm:$0xff]
        %v1156 = vld [vmem:[%s722 + $0x50] sm:$0xff]
        %v1157 = vld [vmem:[%s722 + $0x58] sm:$0xff]
        %v1158 = vld [vmem:[%s722 + $0x60] sm:$0xff]
        %v1159 = vld [vmem:[%s722 + $0x68] sm:$0xff]
        %v1160 = vld [vmem:[%s722 + $0x70] sm:$0xff]
        %v1161 = vld [vmem:[%s722 + $0x78] sm:$0xff]
        %v1162 = vld [vmem:[%s722 + $0x80] sm:$0xff]
        %v1163 = vld [vmem:[%s722 + $0x88] sm:$0xff]
        %v1164 = vld [vmem:[%s722 + $0x90] sm:$0xff]
        %v1165 = vld [vmem:[%s722 + $0x98] sm:$0xff]
        %v1166 = vld [vmem:[%s722 + $0xa0] sm:$0xff]
        %v1167 = vld [vmem:[%s722 + $0xa8] sm:$0xff]
        %v1168 = vld [vmem:[%s722 + $0xb0] sm:$0xff]
        %v1169 = vld [vmem:[%s722 + $0xb8] sm:$0xff]
        %v1170 = vld [vmem:[%s722 + $0xc0] sm:$0xff]
        %v1171 = vld [vmem:[%s722 + $0xc8] sm:$0xff]
        %v1172 = vld [vmem:[%s722 + $0xd0] sm:$0xff]
        %v1173 = vld [vmem:[%s722 + $0xd8] sm:$0xff]
        %v1174 = vld [vmem:[%s722 + $0xe0] sm:$0xff]
        %v1175 = vld [vmem:[%s722 + $0xe8] sm:$0xff]
        %v1176 = vld [vmem:[%s722 + $0xf0] sm:$0xff]
        %v1177 = vld [vmem:[%s722 + $0xf8] sm:$0xff]
        %v1178 = vld [vmem:[%s722 + $0x100] sm:$0xff]
        %v1179 = vld [vmem:[%s722 + $0x108] sm:$0xff]
        %v1180 = vld [vmem:[%s722 + $0x110] sm:$0xff]
        %v1181 = vld [vmem:[%s722 + $0x118] sm:$0xff]
        %v1182 = vld [vmem:[%s722 + $0x120] sm:$0xff]
        %v1183 = vld [vmem:[%s722 + $0x128] sm:$0xff]
        %v1184 = vld [vmem:[%s722 + $0x130] sm:$0xff]
        %v1185 = vld [vmem:[%s722 + $0x138] sm:$0xff]
        %v1186 = vld [vmem:[%s722 + $0x140] sm:$0xff]
        %v1187 = vld [vmem:[%s722 + $0x148] sm:$0xff]
        %v1188 = vld [vmem:[%s722 + $0x150] sm:$0xff]
        %v1189 = vld [vmem:[%s722 + $0x158] sm:$0xff]
        %v1190 = vld [vmem:[%s722 + $0x160] sm:$0xff]
        %v1191 = vld [vmem:[%s722 + $0x168] sm:$0xff]
        %v1192 = vld [vmem:[%s722 + $0x170] sm:$0xff]
        %v1193 = vld [vmem:[%s722 + $0x178] sm:$0xff]
        %v1194 = vld [vmem:[%s722 + $0x180] sm:$0xff]
        %v1195 = vld [vmem:[%s722 + $0x188] sm:$0xff]
        %v1196 = vld [vmem:[%s722 + $0x190] sm:$0xff]
        %v1197 = vld [vmem:[%s722 + $0x198] sm:$0xff]
        %v1198 = vld [vmem:[%s722 + $0x1a0] sm:$0xff]
        %v1199 = vld [vmem:[%s722 + $0x1a8] sm:$0xff]
        %v1200 = vld [vmem:[%s722 + $0x1b0] sm:$0xff]
        %v1201 = vld [vmem:[%s722 + $0x1b8] sm:$0xff]
        %v1202 = vld [vmem:[%s722 + $0x1c0] sm:$0xff]
        %v1203 = vld [vmem:[%s722 + $0x1c8] sm:$0xff]
        %v1204 = vld [vmem:[%s722 + $0x1d0] sm:$0xff]
        %v1205 = vld [vmem:[%s722 + $0x1d8] sm:$0xff]
        %v1206 = vld [vmem:[%s722 + $0x1e0] sm:$0xff]
        %v1207 = vld [vmem:[%s722 + $0x1e8] sm:$0xff]
        %v1208 = vld [vmem:[%s722 + $0x1f0] sm:$0xff]
        %v1209 = vld [vmem:[%s722 + $0x1f8] sm:$0xff]
        %v1210 = vld [vmem:[%s722 + $0x200] sm:$0xff]
        %v1211 = vld [vmem:[%s722 + $0x208] sm:$0xff]
        %v1212 = vld [vmem:[%s722 + $0x210] sm:$0xff]
        %v1213 = vld [vmem:[%s722 + $0x218] sm:$0xff]
        %v1214 = vld [vmem:[%s722 + $0x220] sm:$0xff]
        %v1215 = vld [vmem:[%s722 + $0x228] sm:$0xff]
        %v1216 = vld [vmem:[%s722 + $0x230] sm:$0xff]
        %v1217 = vld [vmem:[%s722 + $0x238] sm:$0xff]
        %v1218 = vld [vmem:[%s722 + $0x240] sm:$0xff]
        %v1219 = vld [vmem:[%s722 + $0x248] sm:$0xff]
        %v1220 = vld [vmem:[%s722 + $0x250] sm:$0xff]
        %v1221 = vld [vmem:[%s722 + $0x258] sm:$0xff]
        %v1222 = vld [vmem:[%s722 + $0x260] sm:$0xff]
        %v1223 = vld [vmem:[%s722 + $0x268] sm:$0xff]
        %v1224 = vld [vmem:[%s722 + $0x270] sm:$0xff]
        %v1225 = vld [vmem:[%s722 + $0x278] sm:$0xff]
        %v1226 = vld [vmem:[%s722 + $0x280] sm:$0xff]
        %v1227 = vld [vmem:[%s722 + $0x288] sm:$0xff]
        %v1228 = vld [vmem:[%s722 + $0x290] sm:$0xff]
        %v1229 = vld [vmem:[%s722 + $0x298] sm:$0xff]
        %v1230 = vld [vmem:[%s722 + $0x2a0] sm:$0xff]
        %v1231 = vld [vmem:[%s722 + $0x2a8] sm:$0xff]
        %v1232 = vld [vmem:[%s722 + $0x2b0] sm:$0xff]
        %v1233 = vld [vmem:[%s722 + $0x2b8] sm:$0xff]
        %v1234 = vld [vmem:[%s722 + $0x2c0] sm:$0xff]
        %v1235 = vld [vmem:[%s722 + $0x2c8] sm:$0xff]
        %v1236 = vld [vmem:[%s722 + $0x2d0] sm:$0xff]
        %v1237 = vld [vmem:[%s722 + $0x2d8] sm:$0xff]
        %v1238 = vld [vmem:[%s722 + $0x2e0] sm:$0xff]
        %v1239 = vld [vmem:[%s722 + $0x2e8] sm:$0xff]
        %v1240 = vld [vmem:[%s722 + $0x2f0] sm:$0xff]
        %v1241 = vld [vmem:[%s722 + $0x2f8] sm:$0xff]
        %v1338 = vunpack.c.l.b16 %v1146
        %v1339 = vunpack.c.h.b16 %v1146
        %v1340 = vunpack.c.l.b16 %v1147
        %v1341 = vunpack.c.h.b16 %v1147
        %v1342 = vunpack.c.l.b16 %v1148
        %v1343 = vunpack.c.h.b16 %v1148
        %v1344 = vunpack.c.l.b16 %v1149
        %v1345 = vunpack.c.h.b16 %v1149
        %v1346 = vunpack.c.l.b16 %v1150
        %v1347 = vunpack.c.h.b16 %v1150
        %v1348 = vunpack.c.l.b16 %v1151
        %v1349 = vunpack.c.h.b16 %v1151
        %v1350 = vunpack.c.l.b16 %v1152
        %v1351 = vunpack.c.h.b16 %v1152
        %v1352 = vunpack.c.l.b16 %v1153
        %v1353 = vunpack.c.h.b16 %v1153
        %v1354 = vunpack.c.l.b16 %v1154
        %v1355 = vunpack.c.h.b16 %v1154
        %v1356 = vunpack.c.l.b16 %v1155
        %v1357 = vunpack.c.h.b16 %v1155
        %v1358 = vunpack.c.l.b16 %v1156
        %v1359 = vunpack.c.h.b16 %v1156
        %v1360 = vunpack.c.l.b16 %v1157
        %v1361 = vunpack.c.h.b16 %v1157
        %v1362 = vunpack.c.l.b16 %v1158
        %v1363 = vunpack.c.h.b16 %v1158
        %v1364 = vunpack.c.l.b16 %v1159
        %v1365 = vunpack.c.h.b16 %v1159
        %v1366 = vunpack.c.l.b16 %v1160
        %v1367 = vunpack.c.h.b16 %v1160
        %v1368 = vunpack.c.l.b16 %v1161
        %v1369 = vunpack.c.h.b16 %v1161
        %v1370 = vunpack.c.l.b16 %v1162
        %v1371 = vunpack.c.h.b16 %v1162
        %v1372 = vunpack.c.l.b16 %v1163
        %v1373 = vunpack.c.h.b16 %v1163
        %v1374 = vunpack.c.l.b16 %v1164
        %v1375 = vunpack.c.h.b16 %v1164
        %v1376 = vunpack.c.l.b16 %v1165
        %v1377 = vunpack.c.h.b16 %v1165
        %v1378 = vunpack.c.l.b16 %v1166
        %v1379 = vunpack.c.h.b16 %v1166
        %v1380 = vunpack.c.l.b16 %v1167
        %v1381 = vunpack.c.h.b16 %v1167
        %v1382 = vunpack.c.l.b16 %v1168
        %v1383 = vunpack.c.h.b16 %v1168
        %v1384 = vunpack.c.l.b16 %v1169
        %v1385 = vunpack.c.h.b16 %v1169
        %v1386 = vunpack.c.l.b16 %v1170
        %v1387 = vunpack.c.h.b16 %v1170
        %v1388 = vunpack.c.l.b16 %v1171
        %v1389 = vunpack.c.h.b16 %v1171
        %v1390 = vunpack.c.l.b16 %v1172
        %v1391 = vunpack.c.h.b16 %v1172
        %v1392 = vunpack.c.l.b16 %v1173
        %v1393 = vunpack.c.h.b16 %v1173
        %v1394 = vunpack.c.l.b16 %v1174
        %v1395 = vunpack.c.h.b16 %v1174
        %v1396 = vunpack.c.l.b16 %v1175
        %v1397 = vunpack.c.h.b16 %v1175
        %v1398 = vunpack.c.l.b16 %v1176
        %v1399 = vunpack.c.h.b16 %v1176
        %v1400 = vunpack.c.l.b16 %v1177
        %v1401 = vunpack.c.h.b16 %v1177
        %v1402 = vunpack.c.l.b16 %v1178
        %v1403 = vunpack.c.h.b16 %v1178
        %v1404 = vunpack.c.l.b16 %v1179
        %v1405 = vunpack.c.h.b16 %v1179
        %v1406 = vunpack.c.l.b16 %v1180
        %v1407 = vunpack.c.h.b16 %v1180
        %v1408 = vunpack.c.l.b16 %v1181
        %v1409 = vunpack.c.h.b16 %v1181
        %v1410 = vunpack.c.l.b16 %v1182
        %v1411 = vunpack.c.h.b16 %v1182
        %v1412 = vunpack.c.l.b16 %v1183
        %v1413 = vunpack.c.h.b16 %v1183
        %v1414 = vunpack.c.l.b16 %v1184
        %v1415 = vunpack.c.h.b16 %v1184
        %v1416 = vunpack.c.l.b16 %v1185
        %v1417 = vunpack.c.h.b16 %v1185
        %v1418 = vunpack.c.l.b16 %v1186
        %v1419 = vunpack.c.h.b16 %v1186
        %v1420 = vunpack.c.l.b16 %v1187
        %v1421 = vunpack.c.h.b16 %v1187
        %v1422 = vunpack.c.l.b16 %v1188
        %v1423 = vunpack.c.h.b16 %v1188
        %v1424 = vunpack.c.l.b16 %v1189
        %v1425 = vunpack.c.h.b16 %v1189
        %v1426 = vunpack.c.l.b16 %v1190
        %v1427 = vunpack.c.h.b16 %v1190
        %v1428 = vunpack.c.l.b16 %v1191
        %v1429 = vunpack.c.h.b16 %v1191
        %v1430 = vunpack.c.l.b16 %v1192
        %v1431 = vunpack.c.h.b16 %v1192
        %v1432 = vunpack.c.l.b16 %v1193
        %v1433 = vunpack.c.h.b16 %v1193
        %v1434 = vunpack.c.l.b16 %v1194
        %v1435 = vunpack.c.h.b16 %v1194
        %v1436 = vunpack.c.l.b16 %v1195
        %v1437 = vunpack.c.h.b16 %v1195
        %v1438 = vunpack.c.l.b16 %v1196
        %v1439 = vunpack.c.h.b16 %v1196
        %v1440 = vunpack.c.l.b16 %v1197
        %v1441 = vunpack.c.h.b16 %v1197
        %v1442 = vunpack.c.l.b16 %v1198
        %v1443 = vunpack.c.h.b16 %v1198
        %v1444 = vunpack.c.l.b16 %v1199
        %v1445 = vunpack.c.h.b16 %v1199
        %v1446 = vunpack.c.l.b16 %v1200
        %v1447 = vunpack.c.h.b16 %v1200
        %v1448 = vunpack.c.l.b16 %v1201
        %v1449 = vunpack.c.h.b16 %v1201
        %v1450 = vunpack.c.l.b16 %v1202
        %v1451 = vunpack.c.h.b16 %v1202
        %v1452 = vunpack.c.l.b16 %v1203
        %v1453 = vunpack.c.h.b16 %v1203
        %v1454 = vunpack.c.l.b16 %v1204
        %v1455 = vunpack.c.h.b16 %v1204
        %v1456 = vunpack.c.l.b16 %v1205
        %v1457 = vunpack.c.h.b16 %v1205
        %v1458 = vunpack.c.l.b16 %v1206
        %v1459 = vunpack.c.h.b16 %v1206
        %v1460 = vunpack.c.l.b16 %v1207
        %v1461 = vunpack.c.h.b16 %v1207
        %v1462 = vunpack.c.l.b16 %v1208
        %v1463 = vunpack.c.h.b16 %v1208
        %v1464 = vunpack.c.l.b16 %v1209
        %v1465 = vunpack.c.h.b16 %v1209
        %v1466 = vunpack.c.l.b16 %v1210
        %v1467 = vunpack.c.h.b16 %v1210
        %v1468 = vunpack.c.l.b16 %v1211
        %v1469 = vunpack.c.h.b16 %v1211
        %v1470 = vunpack.c.l.b16 %v1212
        %v1471 = vunpack.c.h.b16 %v1212
        %v1472 = vunpack.c.l.b16 %v1213
        %v1473 = vunpack.c.h.b16 %v1213
        %v1474 = vunpack.c.l.b16 %v1214
        %v1475 = vunpack.c.h.b16 %v1214
        %v1476 = vunpack.c.l.b16 %v1215
        %v1477 = vunpack.c.h.b16 %v1215
        %v1478 = vunpack.c.l.b16 %v1216
        %v1479 = vunpack.c.h.b16 %v1216
        %v1480 = vunpack.c.l.b16 %v1217
        %v1481 = vunpack.c.h.b16 %v1217
        %v1482 = vunpack.c.l.b16 %v1218
        %v1483 = vunpack.c.h.b16 %v1218
        %v1484 = vunpack.c.l.b16 %v1219
        %v1485 = vunpack.c.h.b16 %v1219
        %v1486 = vunpack.c.l.b16 %v1220
        %v1487 = vunpack.c.h.b16 %v1220
        %v1488 = vunpack.c.l.b16 %v1221
        %v1489 = vunpack.c.h.b16 %v1221
        %v1490 = vunpack.c.l.b16 %v1222
        %v1491 = vunpack.c.h.b16 %v1222
        %v1492 = vunpack.c.l.b16 %v1223
        %v1493 = vunpack.c.h.b16 %v1223
        %v1494 = vunpack.c.l.b16 %v1224
        %v1495 = vunpack.c.h.b16 %v1224
        %v1496 = vunpack.c.l.b16 %v1225
        %v1497 = vunpack.c.h.b16 %v1225
        %v1498 = vunpack.c.l.b16 %v1226
        %v1499 = vunpack.c.h.b16 %v1226
        %v1500 = vunpack.c.l.b16 %v1227
        %v1501 = vunpack.c.h.b16 %v1227
        %v1502 = vunpack.c.l.b16 %v1228
        %v1503 = vunpack.c.h.b16 %v1228
        %v1504 = vunpack.c.l.b16 %v1229
        %v1505 = vunpack.c.h.b16 %v1229
        %v1506 = vunpack.c.l.b16 %v1230
        %v1507 = vunpack.c.h.b16 %v1230
        %v1508 = vunpack.c.l.b16 %v1231
        %v1509 = vunpack.c.h.b16 %v1231
        %v1510 = vunpack.c.l.b16 %v1232
        %v1511 = vunpack.c.h.b16 %v1232
        %v1512 = vunpack.c.l.b16 %v1233
        %v1513 = vunpack.c.h.b16 %v1233
        %v1514 = vunpack.c.l.b16 %v1234
        %v1515 = vunpack.c.h.b16 %v1234
        %v1516 = vunpack.c.l.b16 %v1235
        %v1517 = vunpack.c.h.b16 %v1235
        %v1518 = vunpack.c.l.b16 %v1236
        %v1519 = vunpack.c.h.b16 %v1236
        %v1520 = vunpack.c.l.b16 %v1237
        %v1521 = vunpack.c.h.b16 %v1237
        %v1522 = vunpack.c.l.b16 %v1238
        %v1523 = vunpack.c.h.b16 %v1238
        %v1524 = vunpack.c.l.b16 %v1239
        %v1525 = vunpack.c.h.b16 %v1239
        %v1526 = vunpack.c.l.b16 %v1240
        %v1527 = vunpack.c.h.b16 %v1240
        %v1528 = vunpack.c.l.b16 %v1241
        %v1529 = vunpack.c.h.b16 %v1241
        %v1530 = vpack.c.b16 %v1344, %v1338
        %v1531 = vpack.c.b16 %v1345, %v1339
        %v1532 = vpack.c.b16 %v1346, %v1340
        %v1533 = vpack.c.b16 %v1347, %v1341
        %v1534 = vpack.c.b16 %v1348, %v1342
        %v1535 = vpack.c.b16 %v1349, %v1343
        %v1536 = vpack.c.b16 %v1356, %v1350
        %v1537 = vpack.c.b16 %v1357, %v1351
        %v1538 = vpack.c.b16 %v1358, %v1352
        %v1539 = vpack.c.b16 %v1359, %v1353
        %v1540 = vpack.c.b16 %v1360, %v1354
        %v1541 = vpack.c.b16 %v1361, %v1355
        %v1542 = vpack.c.b16 %v1368, %v1362
        %v1543 = vpack.c.b16 %v1369, %v1363
        %v1544 = vpack.c.b16 %v1370, %v1364
        %v1545 = vpack.c.b16 %v1371, %v1365
        %v1546 = vpack.c.b16 %v1372, %v1366
        %v1547 = vpack.c.b16 %v1373, %v1367
        %v1548 = vpack.c.b16 %v1380, %v1374
        %v1549 = vpack.c.b16 %v1381, %v1375
        %v1550 = vpack.c.b16 %v1382, %v1376
        %v1551 = vpack.c.b16 %v1383, %v1377
        %v1552 = vpack.c.b16 %v1384, %v1378
        %v1553 = vpack.c.b16 %v1385, %v1379
        %v1554 = vpack.c.b16 %v1392, %v1386
        %v1555 = vpack.c.b16 %v1393, %v1387
        %v1556 = vpack.c.b16 %v1394, %v1388
        %v1557 = vpack.c.b16 %v1395, %v1389
        %v1558 = vpack.c.b16 %v1396, %v1390
        %v1559 = vpack.c.b16 %v1397, %v1391
        %v1560 = vpack.c.b16 %v1404, %v1398
        %v1561 = vpack.c.b16 %v1405, %v1399
        %v1562 = vpack.c.b16 %v1406, %v1400
        %v1563 = vpack.c.b16 %v1407, %v1401
        %v1564 = vpack.c.b16 %v1408, %v1402
        %v1565 = vpack.c.b16 %v1409, %v1403
        %v1566 = vpack.c.b16 %v1416, %v1410
        %v1567 = vpack.c.b16 %v1417, %v1411
        %v1568 = vpack.c.b16 %v1418, %v1412
        %v1569 = vpack.c.b16 %v1419, %v1413
        %v1570 = vpack.c.b16 %v1420, %v1414
        %v1571 = vpack.c.b16 %v1421, %v1415
        %v1572 = vpack.c.b16 %v1428, %v1422
        %v1573 = vpack.c.b16 %v1429, %v1423
        %v1574 = vpack.c.b16 %v1430, %v1424
        %v1575 = vpack.c.b16 %v1431, %v1425
        %v1576 = vpack.c.b16 %v1432, %v1426
        %v1577 = vpack.c.b16 %v1433, %v1427
        %v1578 = vpack.c.b16 %v1440, %v1434
        %v1579 = vpack.c.b16 %v1441, %v1435
        %v1580 = vpack.c.b16 %v1442, %v1436
        %v1581 = vpack.c.b16 %v1443, %v1437
        %v1582 = vpack.c.b16 %v1444, %v1438
        %v1583 = vpack.c.b16 %v1445, %v1439
        %v1584 = vpack.c.b16 %v1452, %v1446
        %v1585 = vpack.c.b16 %v1453, %v1447
        %v1586 = vpack.c.b16 %v1454, %v1448
        %v1587 = vpack.c.b16 %v1455, %v1449
        %v1588 = vpack.c.b16 %v1456, %v1450
        %v1589 = vpack.c.b16 %v1457, %v1451
        %v1590 = vpack.c.b16 %v1464, %v1458
        %v1591 = vpack.c.b16 %v1465, %v1459
        %v1592 = vpack.c.b16 %v1466, %v1460
        %v1593 = vpack.c.b16 %v1467, %v1461
        %v1594 = vpack.c.b16 %v1468, %v1462
        %v1595 = vpack.c.b16 %v1469, %v1463
        %v1596 = vpack.c.b16 %v1476, %v1470
        %v1597 = vpack.c.b16 %v1477, %v1471
        %v1598 = vpack.c.b16 %v1478, %v1472
        %v1599 = vpack.c.b16 %v1479, %v1473
        %v1600 = vpack.c.b16 %v1480, %v1474
        %v1601 = vpack.c.b16 %v1481, %v1475
        %v1602 = vpack.c.b16 %v1488, %v1482
        %v1603 = vpack.c.b16 %v1489, %v1483
        %v1604 = vpack.c.b16 %v1490, %v1484
        %v1605 = vpack.c.b16 %v1491, %v1485
        %v1606 = vpack.c.b16 %v1492, %v1486
        %v1607 = vpack.c.b16 %v1493, %v1487
        %v1608 = vpack.c.b16 %v1500, %v1494
        %v1609 = vpack.c.b16 %v1501, %v1495
        %v1610 = vpack.c.b16 %v1502, %v1496
        %v1611 = vpack.c.b16 %v1503, %v1497
        %v1612 = vpack.c.b16 %v1504, %v1498
        %v1613 = vpack.c.b16 %v1505, %v1499
        %v1614 = vpack.c.b16 %v1512, %v1506
        %v1615 = vpack.c.b16 %v1513, %v1507
        %v1616 = vpack.c.b16 %v1514, %v1508
        %v1617 = vpack.c.b16 %v1515, %v1509
        %v1618 = vpack.c.b16 %v1516, %v1510
        %v1619 = vpack.c.b16 %v1517, %v1511
        %v1620 = vpack.c.b16 %v1524, %v1518
        %v1621 = vpack.c.b16 %v1525, %v1519
        %v1622 = vpack.c.b16 %v1526, %v1520
        %v1623 = vpack.c.b16 %v1527, %v1521
        %v1624 = vpack.c.b16 %v1528, %v1522
        %v1625 = vpack.c.b16 %v1529, %v1523
        %1722 = vmatprep.subr.bf16.mxu0 %v1573
        %1723 = vmatpush1.bf16.msra.mxu0 %v1572
        %1724 = vmatprep.subr.bf16.mxu0 %v1567
        %1725 = vmatpush1.bf16.msra.mxu0 %v1566
        %1726 = vmatprep.subr.bf16.mxu0 %v1561
        %1727 = vmatpush1.bf16.msra.mxu0 %v1560
        %1728 = vmatprep.subr.bf16.mxu0 %v1555
        %1729 = vmatpush1.bf16.msra.mxu0 %v1554
        %1730 = vmatprep.subr.bf16.mxu0 %v1549
        %1731 = vmatpush1.bf16.msra.mxu0 %v1548
        %1732 = vmatprep.subr.bf16.mxu0 %v1543
        %1733 = vmatpush1.bf16.msra.mxu0 %v1542
        %1734 = vmatprep.subr.bf16.mxu0 %v1537
        %1735 = vmatpush1.bf16.msra.mxu0 %v1536
        %1736 = vmatprep.subr.bf16.mxu0 %v1531
        %1737 = vmatpush1.bf16.msra.mxu0 %v1530
        %1738 = vmatprep.subr.bf16.mxu0 %v1621
        %1739 = vmatpush2.bf16.msra.mxu0 %v1620
        %1740 = vmatprep.subr.bf16.mxu0 %v1615
        %1741 = vmatpush2.bf16.msra.mxu0 %v1614
        %1742 = vmatprep.subr.bf16.mxu0 %v1609
        %1743 = vmatpush2.bf16.msra.mxu0 %v1608
        %1744 = vmatprep.subr.bf16.mxu0 %v1603
        %1745 = vmatpush2.bf16.msra.mxu0 %v1602
        %1746 = vmatprep.subr.bf16.mxu0 %v1597
        %1747 = vmatpush2.bf16.msra.mxu0 %v1596
        %1748 = vmatprep.subr.bf16.mxu0 %v1591
        %1749 = vmatpush2.bf16.msra.mxu0 %v1590
        %1750 = vmatprep.subr.bf16.mxu0 %v1585
        %1751 = vmatpush2.bf16.msra.mxu0 %v1584
        %1752 = vmatprep.subr.bf16.mxu0 %v1579
        %1753 = vmatpush2.bf16.msra.mxu0 %v1578
        %1754 = vmatprep.mubr.bf16.mxu0 %v1139
        %1755 = vmatmul.mubr.bf16.gmra.mxu0 %v1138
        %v1756 = vpop.f32.mrf.mxu0
        %v1757 = vadd.f32 0.0, %v1756
        %v1758 = vpop.f32.mrf.mxu0
        %v1759 = vadd.f32 0.0, %v1758
        %v1760 = vpop.f32.mrf.mxu0
        %v1761 = vadd.f32 0.0, %v1760
        %v1762 = vpop.f32.mrf.mxu0
        %v1763 = vadd.f32 0.0, %v1762
        %1764 = vmatprep.mubr.bf16.mxu0 %v1141
        %1765 = vmatmul.mubr.bf16.gmra.mxu0 %v1140
        %v1766 = vpop.f32.mrf.mxu0
        %v1767 = vadd.f32 0.0, %v1766
        %v1768 = vpop.f32.mrf.mxu0
        %v1769 = vadd.f32 0.0, %v1768
        %v1770 = vpop.f32.mrf.mxu0
        %v1771 = vadd.f32 0.0, %v1770
        %v1772 = vpop.f32.mrf.mxu0
        %v1773 = vadd.f32 0.0, %v1772
        %1774 = vmatprep.mubr.bf16.mxu0 %v1143
        %1775 = vmatmul.mubr.bf16.gmra.mxu0 %v1142
        %v1776 = vpop.f32.mrf.mxu0
        %v1777 = vadd.f32 0.0, %v1776
        %v1778 = vpop.f32.mrf.mxu0
        %v1779 = vadd.f32 0.0, %v1778
        %v1780 = vpop.f32.mrf.mxu0
        %v1781 = vadd.f32 0.0, %v1780
        %v1782 = vpop.f32.mrf.mxu0
        %v1783 = vadd.f32 0.0, %v1782
        %1784 = vmatprep.mubr.bf16.mxu0 %v1145
        %1785 = vmatmul.mubr.bf16.gmra.mxu0 %v1144
        %v1786 = vpop.f32.mrf.mxu0
        %v1787 = vadd.f32 0.0, %v1786
        %v1788 = vpop.f32.mrf.mxu0
        %v1789 = vadd.f32 0.0, %v1788
        %v1790 = vpop.f32.mrf.mxu0
        %v1791 = vadd.f32 0.0, %v1790
        %v1792 = vpop.f32.mrf.mxu0
        %v1793 = vadd.f32 0.0, %v1792
        %1794 = vdwg.mxu0
        %1795 = vmatprep.subr.bf16.mxu0 %v1575
        %1796 = vmatpush1.bf16.msra.mxu0 %v1574
        %1797 = vmatprep.subr.bf16.mxu0 %v1569
        %1798 = vmatpush1.bf16.msra.mxu0 %v1568
        %1799 = vmatprep.subr.bf16.mxu0 %v1563
        %1800 = vmatpush1.bf16.msra.mxu0 %v1562
        %1801 = vmatprep.subr.bf16.mxu0 %v1557
        %1802 = vmatpush1.bf16.msra.mxu0 %v1556
        %1803 = vmatprep.subr.bf16.mxu0 %v1551
        %1804 = vmatpush1.bf16.msra.mxu0 %v1550
        %1805 = vmatprep.subr.bf16.mxu0 %v1545
        %1806 = vmatpush1.bf16.msra.mxu0 %v1544
        %1807 = vmatprep.subr.bf16.mxu0 %v1539
        %1808 = vmatpush1.bf16.msra.mxu0 %v1538
        %1809 = vmatprep.subr.bf16.mxu0 %v1533
        %1810 = vmatpush1.bf16.msra.mxu0 %v1532
        %1811 = vmatprep.subr.bf16.mxu0 %v1623
        %1812 = vmatpush2.bf16.msra.mxu0 %v1622
        %1813 = vmatprep.subr.bf16.mxu0 %v1617
        %1814 = vmatpush2.bf16.msra.mxu0 %v1616
        %1815 = vmatprep.subr.bf16.mxu0 %v1611
        %1816 = vmatpush2.bf16.msra.mxu0 %v1610
        %1817 = vmatprep.subr.bf16.mxu0 %v1605
        %1818 = vmatpush2.bf16.msra.mxu0 %v1604
        %1819 = vmatprep.subr.bf16.mxu0 %v1599
        %1820 = vmatpush2.bf16.msra.mxu0 %v1598
        %1821 = vmatprep.subr.bf16.mxu0 %v1593
        %1822 = vmatpush2.bf16.msra.mxu0 %v1592
        %1823 = vmatprep.subr.bf16.mxu0 %v1587
        %1824 = vmatpush2.bf16.msra.mxu0 %v1586
        %1825 = vmatprep.subr.bf16.mxu0 %v1581
        %1826 = vmatpush2.bf16.msra.mxu0 %v1580
        %1827 = vmatprep.mubr.bf16.mxu0 %v1139
        %1828 = vmatmul.mubr.bf16.gmra.mxu0 %v1138
        %v1829 = vpop.f32.mrf.mxu0
        %v1830 = vadd.f32 0.0, %v1829
        %v1831 = vpop.f32.mrf.mxu0
        %v1832 = vadd.f32 0.0, %v1831
        %v1833 = vpop.f32.mrf.mxu0
        %v1834 = vadd.f32 0.0, %v1833
        %v1835 = vpop.f32.mrf.mxu0
        %v1836 = vadd.f32 0.0, %v1835
        %1837 = vmatprep.mubr.bf16.mxu0 %v1141
        %1838 = vmatmul.mubr.bf16.gmra.mxu0 %v1140
        %v1839 = vpop.f32.mrf.mxu0
        %v1840 = vadd.f32 0.0, %v1839
        %v1841 = vpop.f32.mrf.mxu0
        %v1842 = vadd.f32 0.0, %v1841
        %v1843 = vpop.f32.mrf.mxu0
        %v1844 = vadd.f32 0.0, %v1843
        %v1845 = vpop.f32.mrf.mxu0
        %v1846 = vadd.f32 0.0, %v1845
        %1847 = vmatprep.mubr.bf16.mxu0 %v1143
        %1848 = vmatmul.mubr.bf16.gmra.mxu0 %v1142
        %v1849 = vpop.f32.mrf.mxu0
        %v1850 = vadd.f32 0.0, %v1849
        %v1851 = vpop.f32.mrf.mxu0
        %v1852 = vadd.f32 0.0, %v1851
        %v1853 = vpop.f32.mrf.mxu0
        %v1854 = vadd.f32 0.0, %v1853
        %v1855 = vpop.f32.mrf.mxu0
        %v1856 = vadd.f32 0.0, %v1855
        %1857 = vmatprep.mubr.bf16.mxu0 %v1145
        %1858 = vmatmul.mubr.bf16.gmra.mxu0 %v1144
        %v1859 = vpop.f32.mrf.mxu0
        %v1860 = vadd.f32 0.0, %v1859
        %v1861 = vpop.f32.mrf.mxu0
        %v1862 = vadd.f32 0.0, %v1861
        %v1863 = vpop.f32.mrf.mxu0
        %v1864 = vadd.f32 0.0, %v1863
        %v1865 = vpop.f32.mrf.mxu0
        %v1866 = vadd.f32 0.0, %v1865
        %1867 = vdwg.mxu0
        %1868 = vmatprep.subr.bf16.mxu0 %v1577
        %1869 = vmatpush1.bf16.msra.mxu0 %v1576
        %1870 = vmatprep.subr.bf16.mxu0 %v1571
        %1871 = vmatpush1.bf16.msra.mxu0 %v1570
        %1872 = vmatprep.subr.bf16.mxu0 %v1565
        %1873 = vmatpush1.bf16.msra.mxu0 %v1564
        %1874 = vmatprep.subr.bf16.mxu0 %v1559
        %1875 = vmatpush1.bf16.msra.mxu0 %v1558
        %1876 = vmatprep.subr.bf16.mxu0 %v1553
        %1877 = vmatpush1.bf16.msra.mxu0 %v1552
        %1878 = vmatprep.subr.bf16.mxu0 %v1547
        %1879 = vmatpush1.bf16.msra.mxu0 %v1546
        %1880 = vmatprep.subr.bf16.mxu0 %v1541
        %1881 = vmatpush1.bf16.msra.mxu0 %v1540
        %1882 = vmatprep.subr.bf16.mxu0 %v1535
        %1883 = vmatpush1.bf16.msra.mxu0 %v1534
        %1884 = vmatprep.subr.bf16.mxu0 %v1625
        %1885 = vmatpush2.bf16.msra.mxu0 %v1624
        %1886 = vmatprep.subr.bf16.mxu0 %v1619
        %1887 = vmatpush2.bf16.msra.mxu0 %v1618
        %1888 = vmatprep.subr.bf16.mxu0 %v1613
        %1889 = vmatpush2.bf16.msra.mxu0 %v1612
        %1890 = vmatprep.subr.bf16.mxu0 %v1607
        %1891 = vmatpush2.bf16.msra.mxu0 %v1606
        %1892 = vmatprep.subr.bf16.mxu0 %v1601
        %1893 = vmatpush2.bf16.msra.mxu0 %v1600
        %1894 = vmatprep.subr.bf16.mxu0 %v1595
        %1895 = vmatpush2.bf16.msra.mxu0 %v1594
        %1896 = vmatprep.subr.bf16.mxu0 %v1589
        %1897 = vmatpush2.bf16.msra.mxu0 %v1588
        %1898 = vmatprep.subr.bf16.mxu0 %v1583
        %1899 = vmatpush2.bf16.msra.mxu0 %v1582
        %1900 = vmatprep.mubr.bf16.mxu0 %v1139
        %1901 = vmatmul.mubr.bf16.gmra.mxu0 %v1138
        %v1902 = vpop.f32.mrf.mxu0
        %v1903 = vadd.f32 0.0, %v1902
        %v1904 = vpop.f32.mrf.mxu0
        %v1905 = vadd.f32 0.0, %v1904
        %v1906 = vpop.f32.mrf.mxu0
        %v1907 = vadd.f32 0.0, %v1906
        %v1908 = vpop.f32.mrf.mxu0
        %v1909 = vadd.f32 0.0, %v1908
        %1910 = vmatprep.mubr.bf16.mxu0 %v1141
        %1911 = vmatmul.mubr.bf16.gmra.mxu0 %v1140
        %v1912 = vpop.f32.mrf.mxu0
        %v1913 = vadd.f32 0.0, %v1912
        %v1914 = vpop.f32.mrf.mxu0
        %v1915 = vadd.f32 0.0, %v1914
        %v1916 = vpop.f32.mrf.mxu0
        %v1917 = vadd.f32 0.0, %v1916
        %v1918 = vpop.f32.mrf.mxu0
        %v1919 = vadd.f32 0.0, %v1918
        %1920 = vmatprep.mubr.bf16.mxu0 %v1143
        %1921 = vmatmul.mubr.bf16.gmra.mxu0 %v1142
        %v1922 = vpop.f32.mrf.mxu0
        %v1923 = vadd.f32 0.0, %v1922
        %v1924 = vpop.f32.mrf.mxu0
        %v1925 = vadd.f32 0.0, %v1924
        %v1926 = vpop.f32.mrf.mxu0
        %v1927 = vadd.f32 0.0, %v1926
        %v1928 = vpop.f32.mrf.mxu0
        %v1929 = vadd.f32 0.0, %v1928
        %1930 = vmatprep.mubr.bf16.mxu0 %v1145
        %1931 = vmatmul.mubr.bf16.gmra.mxu0 %v1144
        %v1932 = vpop.f32.mrf.mxu0
        %v1933 = vadd.f32 0.0, %v1932
        %v1934 = vpop.f32.mrf.mxu0
        %v1935 = vadd.f32 0.0, %v1934
        %v1936 = vpop.f32.mrf.mxu0
        %v1937 = vadd.f32 0.0, %v1936
        %v1938 = vpop.f32.mrf.mxu0
        %v1939 = vadd.f32 0.0, %v1938
        %1940 = vdwg.mxu0
        %v1941 = vpack.c.bf16 %v1761, %v1757
        %v1942 = vpack.c.bf16 %v1771, %v1767
        %v1943 = vpack.c.bf16 %v1834, %v1830
        %v1944 = vpack.c.bf16 %v1844, %v1840
        %v1945 = vpack.c.bf16 %v1907, %v1903
        %v1946 = vpack.c.bf16 %v1917, %v1913
        %1947 = vmatprep.subr.bf16.mxu0 0
        %1948 = vmatpush1.bf16.xpose.msra.mxu0 0
        %1949 = vmatprep.subr.bf16.mxu0 0
        %1950 = vmatpush1.bf16.xpose.msra.mxu0 0
        %1951 = vmatprep.subr.bf16.mxu0 0
        %1952 = vmatpush1.bf16.xpose.msra.mxu0 0
        %1953 = vmatprep.subr.bf16.mxu0 0
        %1954 = vmatpush1.bf16.xpose.msra.mxu0 0
        %1955 = vmatprep.subr.bf16.mxu0 0
        %1956 = vmatpush1.bf16.xpose.msra.mxu0 0
        %1957 = vmatprep.subr.bf16.mxu0 0
        %1958 = vmatpush1.bf16.xpose.msra.mxu0 0
        %1959 = vmatprep.subr.bf16.mxu0 0
        %1960 = vmatpush1.bf16.xpose.msra.mxu0 %v1944
        %1961 = vmatprep.subr.bf16.mxu0 0
        %1962 = vmatpush1.bf16.xpose.msra.mxu0 %v1943
        %1963 = vmatprep.subr.bf16.mxu0 0
        %1964 = vmatpush2.bf16.xpose.msra.mxu0 0
        %1965 = vmatprep.subr.bf16.mxu0 0
        %1966 = vmatpush2.bf16.xpose.msra.mxu0 0
        %1967 = vmatprep.subr.bf16.mxu0 0
        %1968 = vmatpush2.bf16.xpose.msra.mxu0 0
        %1969 = vmatprep.subr.bf16.mxu0 0
        %1970 = vmatpush2.bf16.xpose.msra.mxu0 0
        %1971 = vmatprep.subr.bf16.mxu0 0
        %1972 = vmatpush2.bf16.xpose.msra.mxu0 0
        %1973 = vmatprep.subr.bf16.mxu0 0
        %1974 = vmatpush2.bf16.xpose.msra.mxu0 0
        %1975 = vmatprep.subr.bf16.mxu0 0
        %1976 = vmatpush2.bf16.xpose.msra.mxu0 0
        %1977 = vmatprep.subr.bf16.mxu0 0
        %1978 = vmatpush2.bf16.xpose.msra.mxu0 0
        %1979 = vmatprep.mubr.bf16.mxu0 0
        %1980 = vmatmul.mubr.bf16.gmra.mxu0 %v1941
        %v1981 = vpop.f32.mrf.mxu0
        %v1982 = vadd.f32 0.0, %v1981
        %v1983 = vpop.f32.mrf.mxu0
        %v1984 = vpop.f32.mrf.mxu0
        %v1985 = vadd.f32 0.0, %v1984
        %v1986 = vpop.f32.mrf.mxu0
        %1987 = vmatprep.mubr.bf16.mxu0 0
        %1988 = vmatmul.mubr.bf16.gmra.mxu0 %v1942
        %v1989 = vpop.f32.mrf.mxu0
        %v1990 = vadd.f32 0.0, %v1989
        %v1991 = vpop.f32.mrf.mxu0
        %v1992 = vpop.f32.mrf.mxu0
        %v1993 = vadd.f32 0.0, %v1992
        %v1994 = vpop.f32.mrf.mxu0
        %1995 = vdwg.mxu0
        %vm1996 = vcmask 261120
        %v1997 = vsel %vm1996, %v1982, -inf
        %1998 = vmax.xlane.f32.xlu0 %v1997
        %v1999 = vpop.xlane.xlu0 %1998
        %v2000 = vsel %vm1996, %v1985, -inf
        %2001 = vmax.xlane.f32.xlu0 %v2000
        %v2002 = vpop.xlane.xlu0 %2001
        %v2003 = vsel %vm1996, %v1990, -inf
        %2004 = vmax.xlane.f32.xlu0 %v2003
        %v2005 = vpop.xlane.xlu0 %2004
        %v2006 = vsel %vm1996, %v1993, -inf
        %2007 = vmax.xlane.f32.xlu0 %v2006
        %v2008 = vpop.xlane.xlu0 %2007
        %v2009 = vsub.f32 %v1982, %v1999
        %v2010 = vsub.f32 %v1985, %v2002
        %v2011 = vsub.f32 %v1990, %v2005
        %v2012 = vsub.f32 %v1993, %v2008
        %v2013 = vmul.f32 %v2009, 1.442695
        %v2014 = vpow.pop %v2013
        %v2015 = vmul.f32 %v2010, 1.442695
        %v2016 = vpow.pop %v2015
        %v2017 = vmul.f32 %v2011, 1.442695
        %v2018 = vpow.pop %v2017
        %v2019 = vmul.f32 %v2012, 1.442695
        %v2020 = vpow.pop %v2019
        %v2021 = vsel %vm1996, %v2014, 0.0
        %2022 = vadd.xlane.f32.xlu0 %v2021
        %v2023 = vpop.xlane.xlu0 %2022
        %v2024 = vsel %vm1996, %v2016, 0.0
        %2025 = vadd.xlane.f32.xlu0 %v2024
        %v2026 = vpop.xlane.xlu0 %2025
        %v2027 = vsel %vm1996, %v2018, 0.0
        %2028 = vadd.xlane.f32.xlu0 %v2027
        %v2029 = vpop.xlane.xlu0 %2028
        %v2030 = vsel %vm1996, %v2020, 0.0
        %2031 = vadd.xlane.f32.xlu0 %v2030
        %v2032 = vpop.xlane.xlu0 %2031
        %v2033 = vrcp.pop %v2023
        %v2034 = vrcp.pop %v2026
        %v2035 = vrcp.pop %v2029
        %v2036 = vrcp.pop %v2032
        %v2037 = vmul.f32 %v2014, %v2033
        %v2038 = vmul.f32 %v2016, %v2034
        %v2039 = vmul.f32 %v2018, %v2035
        %v2040 = vmul.f32 %v2020, %v2036
        %v2041 = vpack.c.bf16 %v2038, %v2037
        %v2042 = vpack.c.bf16 %v2040, %v2039
        %v2044 = vsel %vm1996, %v2041, 0
        %v2047 = vsel %vm1996, %v2042, 0
        %2049 = vmatprep.subr.bf16.mxu0 0
        %2050 = vmatpush1.bf16.msra.mxu0 0
        %2051 = vmatprep.subr.bf16.mxu0 0
        %2052 = vmatpush1.bf16.msra.mxu0 0
        %2053 = vmatprep.subr.bf16.mxu0 0
        %2054 = vmatpush1.bf16.msra.mxu0 0
        %2055 = vmatprep.subr.bf16.mxu0 0
        %2056 = vmatpush1.bf16.msra.mxu0 0
        %2057 = vmatprep.subr.bf16.mxu0 0
        %2058 = vmatpush1.bf16.msra.mxu0 0
        %2059 = vmatprep.subr.bf16.mxu0 0
        %2060 = vmatpush1.bf16.msra.mxu0 0
        %2061 = vmatprep.subr.bf16.mxu0 0
        %2062 = vmatpush1.bf16.msra.mxu0 %v1946
        %2063 = vmatprep.subr.bf16.mxu0 0
        %2064 = vmatpush1.bf16.msra.mxu0 %v1945
        %2065 = vmatprep.subr.bf16.mxu0 0
        %2066 = vmatpush2.bf16.msra.mxu0 0
        %2067 = vmatprep.subr.bf16.mxu0 0
        %2068 = vmatpush2.bf16.msra.mxu0 0
        %2069 = vmatprep.subr.bf16.mxu0 0
        %2070 = vmatpush2.bf16.msra.mxu0 0
        %2071 = vmatprep.subr.bf16.mxu0 0
        %2072 = vmatpush2.bf16.msra.mxu0 0
        %2073 = vmatprep.subr.bf16.mxu0 0
        %2074 = vmatpush2.bf16.msra.mxu0 0
        %2075 = vmatprep.subr.bf16.mxu0 0
        %2076 = vmatpush2.bf16.msra.mxu0 0
        %2077 = vmatprep.subr.bf16.mxu0 0
        %2078 = vmatpush2.bf16.msra.mxu0 0
        %2079 = vmatprep.subr.bf16.mxu0 0
        %2080 = vmatpush2.bf16.msra.mxu0 0
        %2081 = vmatprep.mubr.bf16.mxu0 0
        %2082 = vmatmul.mubr.bf16.gmra.mxu0 %v2044
        %v2083 = vpop.f32.mrf.mxu0
        %v2084 = vadd.f32 0.0, %v2083
        %v2085 = vpop.f32.mrf.mxu0
        %v2086 = vpop.f32.mrf.mxu0
        %v2087 = vadd.f32 0.0, %v2086
        %v2088 = vpop.f32.mrf.mxu0
        %2089 = vmatprep.mubr.bf16.mxu0 0
        %2090 = vmatmul.mubr.bf16.gmra.mxu0 %v2047
        %v2091 = vpop.f32.mrf.mxu0
        %v2092 = vadd.f32 0.0, %v2091
        %v2093 = vpop.f32.mrf.mxu0
        %v2094 = vpop.f32.mrf.mxu0
        %v2095 = vadd.f32 0.0, %v2094
        %v2096 = vpop.f32.mrf.mxu0
        %2097 = vdwg.mxu0
        %v2098 = vpack.c.bf16 %v2087, %v2084
        %v2099 = vpack.c.bf16 %v2095, %v2092
        %v2102 = vunpack.c.l.b16 %v2098
        %v2103 = vunpack.c.h.b16 %v2098
        %v2104 = vunpack.c.l.b16 %v2099
        %v2105 = vunpack.c.h.b16 %v2099
        %v2106 = vpack.c.b16 %v2102, %v2102
        %v2107 = vpack.c.b16 %v2103, %v2103
        %v2108 = vpack.c.b16 %v2104, %v2104
        %v2109 = vpack.c.b16 %v2105, %v2105
        %2114 = vst [vmem:[#allocation3] sm:$0xf] %v2106
        %2115 = vst [vmem:[#allocation3 + $0x8] sm:$0xf] %v2107
        %2116 = vst [vmem:[#allocation3 + $0x10] sm:$0xf] %v2108
        %2117 = vst [vmem:[#allocation3 + $0x18] sm:$0xf] %v2109
        %v2118 = vpack.c.bf16 %v1763, %v1759
        %v2119 = vpack.c.bf16 %v1773, %v1769
        %v2120 = vpack.c.bf16 %v1836, %v1832
        %v2121 = vpack.c.bf16 %v1846, %v1842
        %v2122 = vpack.c.bf16 %v1909, %v1905
        %v2123 = vpack.c.bf16 %v1919, %v1915
        %2124 = vmatprep.subr.bf16.mxu0 0
        %2125 = vmatpush1.bf16.xpose.msra.mxu0 0
        %2126 = vmatprep.subr.bf16.mxu0 0
        %2127 = vmatpush1.bf16.xpose.msra.mxu0 0
        %2128 = vmatprep.subr.bf16.mxu0 0
        %2129 = vmatpush1.bf16.xpose.msra.mxu0 0
        %2130 = vmatprep.subr.bf16.mxu0 0
        %2131 = vmatpush1.bf16.xpose.msra.mxu0 0
        %2132 = vmatprep.subr.bf16.mxu0 0
        %2133 = vmatpush1.bf16.xpose.msra.mxu0 0
        %2134 = vmatprep.subr.bf16.mxu0 0
        %2135 = vmatpush1.bf16.xpose.msra.mxu0 0
        %2136 = vmatprep.subr.bf16.mxu0 0
        %2137 = vmatpush1.bf16.xpose.msra.mxu0 %v2121
        %2138 = vmatprep.subr.bf16.mxu0 0
        %2139 = vmatpush1.bf16.xpose.msra.mxu0 %v2120
        %2140 = vmatprep.subr.bf16.mxu0 0
        %2141 = vmatpush2.bf16.xpose.msra.mxu0 0
        %2142 = vmatprep.subr.bf16.mxu0 0
        %2143 = vmatpush2.bf16.xpose.msra.mxu0 0
        %2144 = vmatprep.subr.bf16.mxu0 0
        %2145 = vmatpush2.bf16.xpose.msra.mxu0 0
        %2146 = vmatprep.subr.bf16.mxu0 0
        %2147 = vmatpush2.bf16.xpose.msra.mxu0 0
        %2148 = vmatprep.subr.bf16.mxu0 0
        %2149 = vmatpush2.bf16.xpose.msra.mxu0 0
        %2150 = vmatprep.subr.bf16.mxu0 0
        %2151 = vmatpush2.bf16.xpose.msra.mxu0 0
        %2152 = vmatprep.subr.bf16.mxu0 0
        %2153 = vmatpush2.bf16.xpose.msra.mxu0 0
        %2154 = vmatprep.subr.bf16.mxu0 0
        %2155 = vmatpush2.bf16.xpose.msra.mxu0 0
        %2156 = vmatprep.mubr.bf16.mxu0 0
        %2157 = vmatmul.mubr.bf16.gmra.mxu0 %v2118
        %v2158 = vpop.f32.mrf.mxu0
        %v2159 = vadd.f32 0.0, %v2158
        %v2160 = vpop.f32.mrf.mxu0
        %v2161 = vpop.f32.mrf.mxu0
        %v2162 = vadd.f32 0.0, %v2161
        %v2163 = vpop.f32.mrf.mxu0
        %2164 = vmatprep.mubr.bf16.mxu0 0
        %2165 = vmatmul.mubr.bf16.gmra.mxu0 %v2119
        %v2166 = vpop.f32.mrf.mxu0
        %v2167 = vadd.f32 0.0, %v2166
        %v2168 = vpop.f32.mrf.mxu0
        %v2169 = vpop.f32.mrf.mxu0
        %v2170 = vadd.f32 0.0, %v2169
        %v2171 = vpop.f32.mrf.mxu0
        %2172 = vdwg.mxu0
        %v2173 = vsel %vm1996, %v2159, -inf
        %2174 = vmax.xlane.f32.xlu0 %v2173
        %v2175 = vpop.xlane.xlu0 %2174
        %v2176 = vsel %vm1996, %v2162, -inf
        %2177 = vmax.xlane.f32.xlu0 %v2176
        %v2178 = vpop.xlane.xlu0 %2177
        %v2179 = vsel %vm1996, %v2167, -inf
        %2180 = vmax.xlane.f32.xlu0 %v2179
        %v2181 = vpop.xlane.xlu0 %2180
        %v2182 = vsel %vm1996, %v2170, -inf
        %2183 = vmax.xlane.f32.xlu0 %v2182
        %v2184 = vpop.xlane.xlu0 %2183
        %v2185 = vsub.f32 %v2159, %v2175
        %v2186 = vsub.f32 %v2162, %v2178
        %v2187 = vsub.f32 %v2167, %v2181
        %v2188 = vsub.f32 %v2170, %v2184
        %v2189 = vmul.f32 %v2185, 1.442695
        %v2190 = vpow.pop %v2189
        %v2191 = vmul.f32 %v2186, 1.442695
        %v2192 = vpow.pop %v2191
        %v2193 = vmul.f32 %v2187, 1.442695
        %v2194 = vpow.pop %v2193
        %v2195 = vmul.f32 %v2188, 1.442695
        %v2196 = vpow.pop %v2195
        %v2197 = vsel %vm1996, %v2190, 0.0
        %2198 = vadd.xlane.f32.xlu0 %v2197
        %v2199 = vpop.xlane.xlu0 %2198
        %v2200 = vsel %vm1996, %v2192, 0.0
        %2201 = vadd.xlane.f32.xlu0 %v2200
        %v2202 = vpop.xlane.xlu0 %2201
        %v2203 = vsel %vm1996, %v2194, 0.0
        %2204 = vadd.xlane.f32.xlu0 %v2203
        %v2205 = vpop.xlane.xlu0 %2204
        %v2206 = vsel %vm1996, %v2196, 0.0
        %2207 = vadd.xlane.f32.xlu0 %v2206
        %v2208 = vpop.xlane.xlu0 %2207
        %v2209 = vrcp.pop %v2199
        %v2210 = vrcp.pop %v2202
        %v2211 = vrcp.pop %v2205
        %v2212 = vrcp.pop %v2208
        %v2213 = vmul.f32 %v2190, %v2209
        %v2214 = vmul.f32 %v2192, %v2210
        %v2215 = vmul.f32 %v2194, %v2211
        %v2216 = vmul.f32 %v2196, %v2212
        %v2217 = vpack.c.bf16 %v2214, %v2213
        %v2218 = vpack.c.bf16 %v2216, %v2215
        %v2220 = vsel %vm1996, %v2217, 0
        %v2223 = vsel %vm1996, %v2218, 0
        %2225 = vmatprep.subr.bf16.mxu0 0
        %2226 = vmatpush1.bf16.msra.mxu0 0
        %2227 = vmatprep.subr.bf16.mxu0 0
        %2228 = vmatpush1.bf16.msra.mxu0 0
        %2229 = vmatprep.subr.bf16.mxu0 0
        %2230 = vmatpush1.bf16.msra.mxu0 0
        %2231 = vmatprep.subr.bf16.mxu0 0
        %2232 = vmatpush1.bf16.msra.mxu0 0
        %2233 = vmatprep.subr.bf16.mxu0 0
        %2234 = vmatpush1.bf16.msra.mxu0 0
        %2235 = vmatprep.subr.bf16.mxu0 0
        %2236 = vmatpush1.bf16.msra.mxu0 0
        %2237 = vmatprep.subr.bf16.mxu0 0
        %2238 = vmatpush1.bf16.msra.mxu0 %v2123
        %2239 = vmatprep.subr.bf16.mxu0 0
        %2240 = vmatpush1.bf16.msra.mxu0 %v2122
        %2241 = vmatprep.subr.bf16.mxu0 0
        %2242 = vmatpush2.bf16.msra.mxu0 0
        %2243 = vmatprep.subr.bf16.mxu0 0
        %2244 = vmatpush2.bf16.msra.mxu0 0
        %2245 = vmatprep.subr.bf16.mxu0 0
        %2246 = vmatpush2.bf16.msra.mxu0 0
        %2247 = vmatprep.subr.bf16.mxu0 0
        %2248 = vmatpush2.bf16.msra.mxu0 0
        %2249 = vmatprep.subr.bf16.mxu0 0
        %2250 = vmatpush2.bf16.msra.mxu0 0
        %2251 = vmatprep.subr.bf16.mxu0 0
        %2252 = vmatpush2.bf16.msra.mxu0 0
        %2253 = vmatprep.subr.bf16.mxu0 0
        %2254 = vmatpush2.bf16.msra.mxu0 0
        %2255 = vmatprep.subr.bf16.mxu0 0
        %2256 = vmatpush2.bf16.msra.mxu0 0
        %2257 = vmatprep.mubr.bf16.mxu0 0
        %2258 = vmatmul.mubr.bf16.gmra.mxu0 %v2220
        %v2259 = vpop.f32.mrf.mxu0
        %v2260 = vadd.f32 0.0, %v2259
        %v2261 = vpop.f32.mrf.mxu0
        %v2262 = vpop.f32.mrf.mxu0
        %v2263 = vadd.f32 0.0, %v2262
        %v2264 = vpop.f32.mrf.mxu0
        %2265 = vmatprep.mubr.bf16.mxu0 0
        %2266 = vmatmul.mubr.bf16.gmra.mxu0 %v2223
        %v2267 = vpop.f32.mrf.mxu0
        %v2268 = vadd.f32 0.0, %v2267
        %v2269 = vpop.f32.mrf.mxu0
        %v2270 = vpop.f32.mrf.mxu0
        %v2271 = vadd.f32 0.0, %v2270
        %v2272 = vpop.f32.mrf.mxu0
        %2273 = vdwg.mxu0
        %v2274 = vpack.c.bf16 %v2263, %v2260
        %v2275 = vpack.c.bf16 %v2271, %v2268
        %v2278 = vunpack.c.l.b16 %v2274
        %v2279 = vunpack.c.h.b16 %v2274
        %v2280 = vunpack.c.l.b16 %v2275
        %v2281 = vunpack.c.h.b16 %v2275
        %v2282 = vpack.c.b16 %v2278, %v2278
        %v2283 = vpack.c.b16 %v2279, %v2279
        %v2284 = vpack.c.b16 %v2280, %v2280
        %v2285 = vpack.c.b16 %v2281, %v2281
        %2290 = vst [vmem:[#allocation3 + $0x4] sm:$0xf] %v2282
        %2291 = vst [vmem:[#allocation3 + $0xc] sm:$0xf] %v2283
        %2292 = vst [vmem:[#allocation3 + $0x14] sm:$0xf] %v2284
        %2293 = vst [vmem:[#allocation3 + $0x1c] sm:$0xf] %v2285
        %v2294 = vpack.c.bf16 %v1781, %v1777
        %v2295 = vpack.c.bf16 %v1791, %v1787
        %v2296 = vpack.c.bf16 %v1854, %v1850
        %v2297 = vpack.c.bf16 %v1864, %v1860
        %v2298 = vpack.c.bf16 %v1927, %v1923
        %v2299 = vpack.c.bf16 %v1937, %v1933
        %2300 = vmatprep.subr.bf16.mxu0 0
        %2301 = vmatpush1.bf16.xpose.msra.mxu0 0
        %2302 = vmatprep.subr.bf16.mxu0 0
        %2303 = vmatpush1.bf16.xpose.msra.mxu0 0
        %2304 = vmatprep.subr.bf16.mxu0 0
        %2305 = vmatpush1.bf16.xpose.msra.mxu0 0
        %2306 = vmatprep.subr.bf16.mxu0 0
        %2307 = vmatpush1.bf16.xpose.msra.mxu0 0
        %2308 = vmatprep.subr.bf16.mxu0 0
        %2309 = vmatpush1.bf16.xpose.msra.mxu0 0
        %2310 = vmatprep.subr.bf16.mxu0 0
        %2311 = vmatpush1.bf16.xpose.msra.mxu0 0
        %2312 = vmatprep.subr.bf16.mxu0 0
        %2313 = vmatpush1.bf16.xpose.msra.mxu0 %v2297
        %2314 = vmatprep.subr.bf16.mxu0 0
        %2315 = vmatpush1.bf16.xpose.msra.mxu0 %v2296
        %2316 = vmatprep.subr.bf16.mxu0 0
        %2317 = vmatpush2.bf16.xpose.msra.mxu0 0
        %2318 = vmatprep.subr.bf16.mxu0 0
        %2319 = vmatpush2.bf16.xpose.msra.mxu0 0
        %2320 = vmatprep.subr.bf16.mxu0 0
        %2321 = vmatpush2.bf16.xpose.msra.mxu0 0
        %2322 = vmatprep.subr.bf16.mxu0 0
        %2323 = vmatpush2.bf16.xpose.msra.mxu0 0
        %2324 = vmatprep.subr.bf16.mxu0 0
        %2325 = vmatpush2.bf16.xpose.msra.mxu0 0
        %2326 = vmatprep.subr.bf16.mxu0 0
        %2327 = vmatpush2.bf16.xpose.msra.mxu0 0
        %2328 = vmatprep.subr.bf16.mxu0 0
        %2329 = vmatpush2.bf16.xpose.msra.mxu0 0
        %2330 = vmatprep.subr.bf16.mxu0 0
        %2331 = vmatpush2.bf16.xpose.msra.mxu0 0
        %2332 = vmatprep.mubr.bf16.mxu0 0
        %2333 = vmatmul.mubr.bf16.gmra.mxu0 %v2294
        %v2334 = vpop.f32.mrf.mxu0
        %v2335 = vadd.f32 0.0, %v2334
        %v2336 = vpop.f32.mrf.mxu0
        %v2337 = vpop.f32.mrf.mxu0
        %v2338 = vadd.f32 0.0, %v2337
        %v2339 = vpop.f32.mrf.mxu0
        %2340 = vmatprep.mubr.bf16.mxu0 0
        %2341 = vmatmul.mubr.bf16.gmra.mxu0 %v2295
        %v2342 = vpop.f32.mrf.mxu0
        %v2343 = vadd.f32 0.0, %v2342
        %v2344 = vpop.f32.mrf.mxu0
        %v2345 = vpop.f32.mrf.mxu0
        %v2346 = vadd.f32 0.0, %v2345
        %v2347 = vpop.f32.mrf.mxu0
        %2348 = vdwg.mxu0
        %v2349 = vsel %vm1996, %v2335, -inf
        %2350 = vmax.xlane.f32.xlu0 %v2349
        %v2351 = vpop.xlane.xlu0 %2350
        %v2352 = vsel %vm1996, %v2338, -inf
        %2353 = vmax.xlane.f32.xlu0 %v2352
        %v2354 = vpop.xlane.xlu0 %2353
        %v2355 = vsel %vm1996, %v2343, -inf
        %2356 = vmax.xlane.f32.xlu0 %v2355
        %v2357 = vpop.xlane.xlu0 %2356
        %v2358 = vsel %vm1996, %v2346, -inf
        %2359 = vmax.xlane.f32.xlu0 %v2358
        %v2360 = vpop.xlane.xlu0 %2359
        %v2361 = vsub.f32 %v2335, %v2351
        %v2362 = vsub.f32 %v2338, %v2354
        %v2363 = vsub.f32 %v2343, %v2357
        %v2364 = vsub.f32 %v2346, %v2360
        %v2365 = vmul.f32 %v2361, 1.442695
        %v2366 = vpow.pop %v2365
        %v2367 = vmul.f32 %v2362, 1.442695
        %v2368 = vpow.pop %v2367
        %v2369 = vmul.f32 %v2363, 1.442695
        %v2370 = vpow.pop %v2369
        %v2371 = vmul.f32 %v2364, 1.442695
        %v2372 = vpow.pop %v2371
        %v2373 = vsel %vm1996, %v2366, 0.0
        %2374 = vadd.xlane.f32.xlu0 %v2373
        %v2375 = vpop.xlane.xlu0 %2374
        %v2376 = vsel %vm1996, %v2368, 0.0
        %2377 = vadd.xlane.f32.xlu0 %v2376
        %v2378 = vpop.xlane.xlu0 %2377
        %v2379 = vsel %vm1996, %v2370, 0.0
        %2380 = vadd.xlane.f32.xlu0 %v2379
        %v2381 = vpop.xlane.xlu0 %2380
        %v2382 = vsel %vm1996, %v2372, 0.0
        %2383 = vadd.xlane.f32.xlu0 %v2382
        %v2384 = vpop.xlane.xlu0 %2383
        %v2385 = vrcp.pop %v2375
        %v2386 = vrcp.pop %v2378
        %v2387 = vrcp.pop %v2381
        %v2388 = vrcp.pop %v2384
        %v2389 = vmul.f32 %v2366, %v2385
        %v2390 = vmul.f32 %v2368, %v2386
        %v2391 = vmul.f32 %v2370, %v2387
        %v2392 = vmul.f32 %v2372, %v2388
        %v2393 = vpack.c.bf16 %v2390, %v2389
        %v2394 = vpack.c.bf16 %v2392, %v2391
        %v2396 = vsel %vm1996, %v2393, 0
        %v2399 = vsel %vm1996, %v2394, 0
        %2401 = vmatprep.subr.bf16.mxu0 0
        %2402 = vmatpush1.bf16.msra.mxu0 0
        %2403 = vmatprep.subr.bf16.mxu0 0
        %2404 = vmatpush1.bf16.msra.mxu0 0
        %2405 = vmatprep.subr.bf16.mxu0 0
        %2406 = vmatpush1.bf16.msra.mxu0 0
        %2407 = vmatprep.subr.bf16.mxu0 0
        %2408 = vmatpush1.bf16.msra.mxu0 0
        %2409 = vmatprep.subr.bf16.mxu0 0
        %2410 = vmatpush1.bf16.msra.mxu0 0
        %2411 = vmatprep.subr.bf16.mxu0 0
        %2412 = vmatpush1.bf16.msra.mxu0 0
        %2413 = vmatprep.subr.bf16.mxu0 0
        %2414 = vmatpush1.bf16.msra.mxu0 %v2299
        %2415 = vmatprep.subr.bf16.mxu0 0
        %2416 = vmatpush1.bf16.msra.mxu0 %v2298
        %2417 = vmatprep.subr.bf16.mxu0 0
        %2418 = vmatpush2.bf16.msra.mxu0 0
        %2419 = vmatprep.subr.bf16.mxu0 0
        %2420 = vmatpush2.bf16.msra.mxu0 0
        %2421 = vmatprep.subr.bf16.mxu0 0
        %2422 = vmatpush2.bf16.msra.mxu0 0
        %2423 = vmatprep.subr.bf16.mxu0 0
        %2424 = vmatpush2.bf16.msra.mxu0 0
        %2425 = vmatprep.subr.bf16.mxu0 0
        %2426 = vmatpush2.bf16.msra.mxu0 0
        %2427 = vmatprep.subr.bf16.mxu0 0
        %2428 = vmatpush2.bf16.msra.mxu0 0
        %2429 = vmatprep.subr.bf16.mxu0 0
        %2430 = vmatpush2.bf16.msra.mxu0 0
        %2431 = vmatprep.subr.bf16.mxu0 0
        %2432 = vmatpush2.bf16.msra.mxu0 0
        %2433 = vmatprep.mubr.bf16.mxu0 0
        %2434 = vmatmul.mubr.bf16.gmra.mxu0 %v2396
        %v2435 = vpop.f32.mrf.mxu0
        %v2436 = vadd.f32 0.0, %v2435
        %v2437 = vpop.f32.mrf.mxu0
        %v2438 = vpop.f32.mrf.mxu0
        %v2439 = vadd.f32 0.0, %v2438
        %v2440 = vpop.f32.mrf.mxu0
        %2441 = vmatprep.mubr.bf16.mxu0 0
        %2442 = vmatmul.mubr.bf16.gmra.mxu0 %v2399
        %v2443 = vpop.f32.mrf.mxu0
        %v2444 = vadd.f32 0.0, %v2443
        %v2445 = vpop.f32.mrf.mxu0
        %v2446 = vpop.f32.mrf.mxu0
        %v2447 = vadd.f32 0.0, %v2446
        %v2448 = vpop.f32.mrf.mxu0
        %2449 = vdwg.mxu0
        %v2450 = vpack.c.bf16 %v2439, %v2436
        %v2451 = vpack.c.bf16 %v2447, %v2444
        %v2454 = vunpack.c.l.b16 %v2450
        %v2455 = vunpack.c.h.b16 %v2450
        %v2456 = vunpack.c.l.b16 %v2451
        %v2457 = vunpack.c.h.b16 %v2451
        %v2458 = vpack.c.b16 %v2454, %v2454
        %v2459 = vpack.c.b16 %v2455, %v2455
        %v2460 = vpack.c.b16 %v2456, %v2456
        %v2461 = vpack.c.b16 %v2457, %v2457
        %2466 = vst [vmem:[#allocation3 + $0x20] sm:$0xf] %v2458
        %2467 = vst [vmem:[#allocation3 + $0x28] sm:$0xf] %v2459
        %2468 = vst [vmem:[#allocation3 + $0x30] sm:$0xf] %v2460
        %2469 = vst [vmem:[#allocation3 + $0x38] sm:$0xf] %v2461
        %v2470 = vpack.c.bf16 %v1783, %v1779
        %v2471 = vpack.c.bf16 %v1793, %v1789
        %v2472 = vpack.c.bf16 %v1856, %v1852
        %v2473 = vpack.c.bf16 %v1866, %v1862
        %v2474 = vpack.c.bf16 %v1929, %v1925
        %v2475 = vpack.c.bf16 %v1939, %v1935
        %2476 = vmatprep.subr.bf16.mxu0 0
        %2477 = vmatpush1.bf16.xpose.msra.mxu0 0
        %2478 = vmatprep.subr.bf16.mxu0 0
        %2479 = vmatpush1.bf16.xpose.msra.mxu0 0
        %2480 = vmatprep.subr.bf16.mxu0 0
        %2481 = vmatpush1.bf16.xpose.msra.mxu0 0
        %2482 = vmatprep.subr.bf16.mxu0 0
        %2483 = vmatpush1.bf16.xpose.msra.mxu0 0
        %2484 = vmatprep.subr.bf16.mxu0 0
        %2485 = vmatpush1.bf16.xpose.msra.mxu0 0
        %2486 = vmatprep.subr.bf16.mxu0 0
        %2487 = vmatpush1.bf16.xpose.msra.mxu0 0
        %2488 = vmatprep.subr.bf16.mxu0 0
        %2489 = vmatpush1.bf16.xpose.msra.mxu0 %v2473
        %2490 = vmatprep.subr.bf16.mxu0 0
        %2491 = vmatpush1.bf16.xpose.msra.mxu0 %v2472
        %2492 = vmatprep.subr.bf16.mxu0 0
        %2493 = vmatpush2.bf16.xpose.msra.mxu0 0
        %2494 = vmatprep.subr.bf16.mxu0 0
        %2495 = vmatpush2.bf16.xpose.msra.mxu0 0
        %2496 = vmatprep.subr.bf16.mxu0 0
        %2497 = vmatpush2.bf16.xpose.msra.mxu0 0
        %2498 = vmatprep.subr.bf16.mxu0 0
        %2499 = vmatpush2.bf16.xpose.msra.mxu0 0
        %2500 = vmatprep.subr.bf16.mxu0 0
        %2501 = vmatpush2.bf16.xpose.msra.mxu0 0
        %2502 = vmatprep.subr.bf16.mxu0 0
        %2503 = vmatpush2.bf16.xpose.msra.mxu0 0
        %2504 = vmatprep.subr.bf16.mxu0 0
        %2505 = vmatpush2.bf16.xpose.msra.mxu0 0
        %2506 = vmatprep.subr.bf16.mxu0 0
        %2507 = vmatpush2.bf16.xpose.msra.mxu0 0
        %2508 = vmatprep.mubr.bf16.mxu0 0
        %2509 = vmatmul.mubr.bf16.gmra.mxu0 %v2470
        %v2510 = vpop.f32.mrf.mxu0
        %v2511 = vadd.f32 0.0, %v2510
        %v2512 = vpop.f32.mrf.mxu0
        %v2513 = vpop.f32.mrf.mxu0
        %v2514 = vadd.f32 0.0, %v2513
        %v2515 = vpop.f32.mrf.mxu0
        %2516 = vmatprep.mubr.bf16.mxu0 0
        %2517 = vmatmul.mubr.bf16.gmra.mxu0 %v2471
        %v2518 = vpop.f32.mrf.mxu0
        %v2519 = vadd.f32 0.0, %v2518
        %v2520 = vpop.f32.mrf.mxu0
        %v2521 = vpop.f32.mrf.mxu0
        %v2522 = vadd.f32 0.0, %v2521
        %v2523 = vpop.f32.mrf.mxu0
        %2524 = vdwg.mxu0
        %v2525 = vsel %vm1996, %v2511, -inf
        %2526 = vmax.xlane.f32.xlu0 %v2525
        %v2527 = vpop.xlane.xlu0 %2526
        %v2528 = vsel %vm1996, %v2514, -inf
        %2529 = vmax.xlane.f32.xlu0 %v2528
        %v2530 = vpop.xlane.xlu0 %2529
        %v2531 = vsel %vm1996, %v2519, -inf
        %2532 = vmax.xlane.f32.xlu0 %v2531
        %v2533 = vpop.xlane.xlu0 %2532
        %v2534 = vsel %vm1996, %v2522, -inf
        %2535 = vmax.xlane.f32.xlu0 %v2534
        %v2536 = vpop.xlane.xlu0 %2535
        %v2537 = vsub.f32 %v2511, %v2527
        %v2538 = vsub.f32 %v2514, %v2530
        %v2539 = vsub.f32 %v2519, %v2533
        %v2540 = vsub.f32 %v2522, %v2536
        %v2541 = vmul.f32 %v2537, 1.442695
        %v2542 = vpow.pop %v2541
        %v2543 = vmul.f32 %v2538, 1.442695
        %v2544 = vpow.pop %v2543
        %v2545 = vmul.f32 %v2539, 1.442695
        %v2546 = vpow.pop %v2545
        %v2547 = vmul.f32 %v2540, 1.442695
        %v2548 = vpow.pop %v2547
        %v2549 = vsel %vm1996, %v2542, 0.0
        %2550 = vadd.xlane.f32.xlu0 %v2549
        %v2551 = vpop.xlane.xlu0 %2550
        %v2552 = vsel %vm1996, %v2544, 0.0
        %2553 = vadd.xlane.f32.xlu0 %v2552
        %v2554 = vpop.xlane.xlu0 %2553
        %v2555 = vsel %vm1996, %v2546, 0.0
        %2556 = vadd.xlane.f32.xlu0 %v2555
        %v2557 = vpop.xlane.xlu0 %2556
        %v2558 = vsel %vm1996, %v2548, 0.0
        %2559 = vadd.xlane.f32.xlu0 %v2558
        %v2560 = vpop.xlane.xlu0 %2559
        %v2561 = vrcp.pop %v2551
        %v2562 = vrcp.pop %v2554
        %v2563 = vrcp.pop %v2557
        %v2564 = vrcp.pop %v2560
        %v2565 = vmul.f32 %v2542, %v2561
        %v2566 = vmul.f32 %v2544, %v2562
        %v2567 = vmul.f32 %v2546, %v2563
        %v2568 = vmul.f32 %v2548, %v2564
        %v2569 = vpack.c.bf16 %v2566, %v2565
        %v2570 = vpack.c.bf16 %v2568, %v2567
        %v2572 = vsel %vm1996, %v2569, 0
        %v2575 = vsel %vm1996, %v2570, 0
        %2577 = vmatprep.subr.bf16.mxu0 0
        %2578 = vmatpush1.bf16.msra.mxu0 0
        %2579 = vmatprep.subr.bf16.mxu0 0
        %2580 = vmatpush1.bf16.msra.mxu0 0
        %2581 = vmatprep.subr.bf16.mxu0 0
        %2582 = vmatpush1.bf16.msra.mxu0 0
        %2583 = vmatprep.subr.bf16.mxu0 0
        %2584 = vmatpush1.bf16.msra.mxu0 0
        %2585 = vmatprep.subr.bf16.mxu0 0
        %2586 = vmatpush1.bf16.msra.mxu0 0
        %2587 = vmatprep.subr.bf16.mxu0 0
        %2588 = vmatpush1.bf16.msra.mxu0 0
        %2589 = vmatprep.subr.bf16.mxu0 0
        %2590 = vmatpush1.bf16.msra.mxu0 %v2475
        %2591 = vmatprep.subr.bf16.mxu0 0
        %2592 = vmatpush1.bf16.msra.mxu0 %v2474
        %2593 = vmatprep.subr.bf16.mxu0 0
        %2594 = vmatpush2.bf16.msra.mxu0 0
        %2595 = vmatprep.subr.bf16.mxu0 0
        %2596 = vmatpush2.bf16.msra.mxu0 0
        %2597 = vmatprep.subr.bf16.mxu0 0
        %2598 = vmatpush2.bf16.msra.mxu0 0
        %2599 = vmatprep.subr.bf16.mxu0 0
        %2600 = vmatpush2.bf16.msra.mxu0 0
        %2601 = vmatprep.subr.bf16.mxu0 0
        %2602 = vmatpush2.bf16.msra.mxu0 0
        %2603 = vmatprep.subr.bf16.mxu0 0
        %2604 = vmatpush2.bf16.msra.mxu0 0
        %2605 = vmatprep.subr.bf16.mxu0 0
        %2606 = vmatpush2.bf16.msra.mxu0 0
        %2607 = vmatprep.subr.bf16.mxu0 0
        %2608 = vmatpush2.bf16.msra.mxu0 0
        %2609 = vmatprep.mubr.bf16.mxu0 0
        %2610 = vmatmul.mubr.bf16.gmra.mxu0 %v2572
        %v2611 = vpop.f32.mrf.mxu0
        %v2612 = vadd.f32 0.0, %v2611
        %v2613 = vpop.f32.mrf.mxu0
        %v2614 = vpop.f32.mrf.mxu0
        %v2615 = vadd.f32 0.0, %v2614
        %v2616 = vpop.f32.mrf.mxu0
        %2617 = vmatprep.mubr.bf16.mxu0 0
        %2618 = vmatmul.mubr.bf16.gmra.mxu0 %v2575
        %v2619 = vpop.f32.mrf.mxu0
        %v2620 = vadd.f32 0.0, %v2619
        %v2621 = vpop.f32.mrf.mxu0
        %v2622 = vpop.f32.mrf.mxu0
        %v2623 = vadd.f32 0.0, %v2622
        %v2624 = vpop.f32.mrf.mxu0
        %2625 = vdwg.mxu0
        %v2626 = vpack.c.bf16 %v2615, %v2612
        %v2627 = vpack.c.bf16 %v2623, %v2620
        %v2630 = vunpack.c.l.b16 %v2626
        %v2631 = vunpack.c.h.b16 %v2626
        %v2632 = vunpack.c.l.b16 %v2627
        %v2633 = vunpack.c.h.b16 %v2627
        %v2634 = vpack.c.b16 %v2630, %v2630
        %v2635 = vpack.c.b16 %v2631, %v2631
        %v2636 = vpack.c.b16 %v2632, %v2632
        %v2637 = vpack.c.b16 %v2633, %v2633
        %2642 = vst [vmem:[#allocation3 + $0x24] sm:$0xf] %v2634
        %2643 = vst [vmem:[#allocation3 + $0x2c] sm:$0xf] %v2635
        %2644 = vst [vmem:[#allocation3 + $0x34] sm:$0xf] %v2636
        %2645 = vst [vmem:[#allocation3 + $0x3c] sm:$0xf] %v2637
        %v2646 = vld [vmem:[#allocation3] sm:$0xff]
        %v2647 = vld [vmem:[#allocation3 + $0x8] sm:$0xff]
        %v2648 = vld [vmem:[#allocation3 + $0x10] sm:$0xff]
        %v2649 = vld [vmem:[#allocation3 + $0x18] sm:$0xff]
        %v2650 = vld [vmem:[#allocation3 + $0x20] sm:$0xff]
        %v2651 = vld [vmem:[#allocation3 + $0x28] sm:$0xff]
        %v2652 = vld [vmem:[#allocation3 + $0x30] sm:$0xff]
        %v2653 = vld [vmem:[#allocation3 + $0x38] sm:$0xff]
        %v2654 = vld [vmem:[%s731] sm:$0xff]
        %v2655 = vld [vmem:[%s731 + $0x8] sm:$0xff]
        %v2656 = vld [vmem:[%s731 + $0x10] sm:$0xff]
        %v2657 = vld [vmem:[%s731 + $0x18] sm:$0xff]
        %v2658 = vld [vmem:[%s731 + $0x20] sm:$0xff]
        %v2659 = vld [vmem:[%s731 + $0x28] sm:$0xff]
        %v2660 = vld [vmem:[%s731 + $0x30] sm:$0xff]
        %v2661 = vld [vmem:[%s731 + $0x38] sm:$0xff]
        %v2662 = vld [vmem:[%s731 + $0x40] sm:$0xff]
        %v2663 = vld [vmem:[%s731 + $0x48] sm:$0xff]
        %v2664 = vld [vmem:[%s731 + $0x50] sm:$0xff]
        %v2665 = vld [vmem:[%s731 + $0x58] sm:$0xff]
        %v2666 = vld [vmem:[%s731 + $0x60] sm:$0xff]
        %v2667 = vld [vmem:[%s731 + $0x68] sm:$0xff]
        %v2668 = vld [vmem:[%s731 + $0x70] sm:$0xff]
        %v2669 = vld [vmem:[%s731 + $0x78] sm:$0xff]
        %v2670 = vld [vmem:[%s731 + $0x80] sm:$0xff]
        %v2671 = vld [vmem:[%s731 + $0x88] sm:$0xff]
        %v2672 = vld [vmem:[%s731 + $0x90] sm:$0xff]
        %v2673 = vld [vmem:[%s731 + $0x98] sm:$0xff]
        %v2674 = vld [vmem:[%s731 + $0xa0] sm:$0xff]
        %v2675 = vld [vmem:[%s731 + $0xa8] sm:$0xff]
        %v2676 = vld [vmem:[%s731 + $0xb0] sm:$0xff]
        %v2677 = vld [vmem:[%s731 + $0xb8] sm:$0xff]
        %v2678 = vld [vmem:[%s731 + $0xc0] sm:$0xff]
        %v2679 = vld [vmem:[%s731 + $0xc8] sm:$0xff]
        %v2680 = vld [vmem:[%s731 + $0xd0] sm:$0xff]
        %v2681 = vld [vmem:[%s731 + $0xd8] sm:$0xff]
        %v2682 = vld [vmem:[%s731 + $0xe0] sm:$0xff]
        %v2683 = vld [vmem:[%s731 + $0xe8] sm:$0xff]
        %v2684 = vld [vmem:[%s731 + $0xf0] sm:$0xff]
        %v2685 = vld [vmem:[%s731 + $0xf8] sm:$0xff]
        %v2694 = vunpack.c.l.b16 %v2646
        %v2695 = vunpack.c.h.b16 %v2646
        %v2696 = vunpack.c.l.b16 %v2647
        %v2697 = vunpack.c.h.b16 %v2647
        %v2698 = vunpack.c.l.b16 %v2648
        %v2699 = vunpack.c.h.b16 %v2648
        %v2700 = vunpack.c.l.b16 %v2649
        %v2701 = vunpack.c.h.b16 %v2649
        %v2702 = vunpack.c.l.b16 %v2650
        %v2703 = vunpack.c.h.b16 %v2650
        %v2704 = vunpack.c.l.b16 %v2651
        %v2705 = vunpack.c.h.b16 %v2651
        %v2706 = vunpack.c.l.b16 %v2652
        %v2707 = vunpack.c.h.b16 %v2652
        %v2708 = vunpack.c.l.b16 %v2653
        %v2709 = vunpack.c.h.b16 %v2653
        %v2710 = vpack.c.b16 %v2696, %v2694
        %v2711 = vpack.c.b16 %v2697, %v2695
        %v2712 = vpack.c.b16 %v2700, %v2698
        %v2713 = vpack.c.b16 %v2701, %v2699
        %v2714 = vpack.c.b16 %v2704, %v2702
        %v2715 = vpack.c.b16 %v2705, %v2703
        %v2716 = vpack.c.b16 %v2708, %v2706
        %v2717 = vpack.c.b16 %v2709, %v2707
        %v2758 = vunpack.c.l.b16 %v2654
        %v2759 = vunpack.c.h.b16 %v2654
        %v2760 = vunpack.c.l.b16 %v2655
        %v2761 = vunpack.c.h.b16 %v2655
        %v2762 = vunpack.c.l.b16 %v2656
        %v2763 = vunpack.c.h.b16 %v2656
        %v2764 = vunpack.c.l.b16 %v2657
        %v2765 = vunpack.c.h.b16 %v2657
        %v2766 = vunpack.c.l.b16 %v2658
        %v2767 = vunpack.c.h.b16 %v2658
        %v2768 = vunpack.c.l.b16 %v2659
        %v2769 = vunpack.c.h.b16 %v2659
        %v2770 = vunpack.c.l.b16 %v2660
        %v2771 = vunpack.c.h.b16 %v2660
        %v2772 = vunpack.c.l.b16 %v2661
        %v2773 = vunpack.c.h.b16 %v2661
        %v2774 = vunpack.c.l.b16 %v2662
        %v2775 = vunpack.c.h.b16 %v2662
        %v2776 = vunpack.c.l.b16 %v2663
        %v2777 = vunpack.c.h.b16 %v2663
        %v2778 = vunpack.c.l.b16 %v2664
        %v2779 = vunpack.c.h.b16 %v2664
        %v2780 = vunpack.c.l.b16 %v2665
        %v2781 = vunpack.c.h.b16 %v2665
        %v2782 = vunpack.c.l.b16 %v2666
        %v2783 = vunpack.c.h.b16 %v2666
        %v2784 = vunpack.c.l.b16 %v2667
        %v2785 = vunpack.c.h.b16 %v2667
        %v2786 = vunpack.c.l.b16 %v2668
        %v2787 = vunpack.c.h.b16 %v2668
        %v2788 = vunpack.c.l.b16 %v2669
        %v2789 = vunpack.c.h.b16 %v2669
        %v2790 = vunpack.c.l.b16 %v2670
        %v2791 = vunpack.c.h.b16 %v2670
        %v2792 = vunpack.c.l.b16 %v2671
        %v2793 = vunpack.c.h.b16 %v2671
        %v2794 = vunpack.c.l.b16 %v2672
        %v2795 = vunpack.c.h.b16 %v2672
        %v2796 = vunpack.c.l.b16 %v2673
        %v2797 = vunpack.c.h.b16 %v2673
        %v2798 = vunpack.c.l.b16 %v2674
        %v2799 = vunpack.c.h.b16 %v2674
        %v2800 = vunpack.c.l.b16 %v2675
        %v2801 = vunpack.c.h.b16 %v2675
        %v2802 = vunpack.c.l.b16 %v2676
        %v2803 = vunpack.c.h.b16 %v2676
        %v2804 = vunpack.c.l.b16 %v2677
        %v2805 = vunpack.c.h.b16 %v2677
        %v2806 = vunpack.c.l.b16 %v2678
        %v2807 = vunpack.c.h.b16 %v2678
        %v2808 = vunpack.c.l.b16 %v2679
        %v2809 = vunpack.c.h.b16 %v2679
        %v2810 = vunpack.c.l.b16 %v2680
        %v2811 = vunpack.c.h.b16 %v2680
        %v2812 = vunpack.c.l.b16 %v2681
        %v2813 = vunpack.c.h.b16 %v2681
        %v2814 = vunpack.c.l.b16 %v2682
        %v2815 = vunpack.c.h.b16 %v2682
        %v2816 = vunpack.c.l.b16 %v2683
        %v2817 = vunpack.c.h.b16 %v2683
        %v2818 = vunpack.c.l.b16 %v2684
        %v2819 = vunpack.c.h.b16 %v2684
        %v2820 = vunpack.c.l.b16 %v2685
        %v2821 = vunpack.c.h.b16 %v2685
        %v2822 = vpack.c.b16 %v2760, %v2758
        %v2823 = vpack.c.b16 %v2761, %v2759
        %v2824 = vpack.c.b16 %v2764, %v2762
        %v2825 = vpack.c.b16 %v2765, %v2763
        %v2826 = vpack.c.b16 %v2768, %v2766
        %v2827 = vpack.c.b16 %v2769, %v2767
        %v2828 = vpack.c.b16 %v2772, %v2770
        %v2829 = vpack.c.b16 %v2773, %v2771
        %v2830 = vpack.c.b16 %v2776, %v2774
        %v2831 = vpack.c.b16 %v2777, %v2775
        %v2832 = vpack.c.b16 %v2780, %v2778
        %v2833 = vpack.c.b16 %v2781, %v2779
        %v2834 = vpack.c.b16 %v2784, %v2782
        %v2835 = vpack.c.b16 %v2785, %v2783
        %v2836 = vpack.c.b16 %v2788, %v2786
        %v2837 = vpack.c.b16 %v2789, %v2787
        %v2838 = vpack.c.b16 %v2792, %v2790
        %v2839 = vpack.c.b16 %v2793, %v2791
        %v2840 = vpack.c.b16 %v2796, %v2794
        %v2841 = vpack.c.b16 %v2797, %v2795
        %v2842 = vpack.c.b16 %v2800, %v2798
        %v2843 = vpack.c.b16 %v2801, %v2799
        %v2844 = vpack.c.b16 %v2804, %v2802
        %v2845 = vpack.c.b16 %v2805, %v2803
        %v2846 = vpack.c.b16 %v2808, %v2806
        %v2847 = vpack.c.b16 %v2809, %v2807
        %v2848 = vpack.c.b16 %v2812, %v2810
        %v2849 = vpack.c.b16 %v2813, %v2811
        %v2850 = vpack.c.b16 %v2816, %v2814
        %v2851 = vpack.c.b16 %v2817, %v2815
        %v2852 = vpack.c.b16 %v2820, %v2818
        %v2853 = vpack.c.b16 %v2821, %v2819
        %2886 = vmatprep.subr.bf16.mxu0 %v2837
        %2887 = vmatpush1.bf16.msra.mxu0 %v2836
        %2888 = vmatprep.subr.bf16.mxu0 %v2835
        %2889 = vmatpush1.bf16.msra.mxu0 %v2834
        %2890 = vmatprep.subr.bf16.mxu0 %v2833
        %2891 = vmatpush1.bf16.msra.mxu0 %v2832
        %2892 = vmatprep.subr.bf16.mxu0 %v2831
        %2893 = vmatpush1.bf16.msra.mxu0 %v2830
        %2894 = vmatprep.subr.bf16.mxu0 %v2829
        %2895 = vmatpush1.bf16.msra.mxu0 %v2828
        %2896 = vmatprep.subr.bf16.mxu0 %v2827
        %2897 = vmatpush1.bf16.msra.mxu0 %v2826
        %2898 = vmatprep.subr.bf16.mxu0 %v2825
        %2899 = vmatpush1.bf16.msra.mxu0 %v2824
        %2900 = vmatprep.subr.bf16.mxu0 %v2823
        %2901 = vmatpush1.bf16.msra.mxu0 %v2822
        %2902 = vmatprep.subr.bf16.mxu0 %v2853
        %2903 = vmatpush2.bf16.msra.mxu0 %v2852
        %2904 = vmatprep.subr.bf16.mxu0 %v2851
        %2905 = vmatpush2.bf16.msra.mxu0 %v2850
        %2906 = vmatprep.subr.bf16.mxu0 %v2849
        %2907 = vmatpush2.bf16.msra.mxu0 %v2848
        %2908 = vmatprep.subr.bf16.mxu0 %v2847
        %2909 = vmatpush2.bf16.msra.mxu0 %v2846
        %2910 = vmatprep.subr.bf16.mxu0 %v2845
        %2911 = vmatpush2.bf16.msra.mxu0 %v2844
        %2912 = vmatprep.subr.bf16.mxu0 %v2843
        %2913 = vmatpush2.bf16.msra.mxu0 %v2842
        %2914 = vmatprep.subr.bf16.mxu0 %v2841
        %2915 = vmatpush2.bf16.msra.mxu0 %v2840
        %2916 = vmatprep.subr.bf16.mxu0 %v2839
        %2917 = vmatpush2.bf16.msra.mxu0 %v2838
        %2918 = vmatprep.mubr.bf16.mxu0 %v2711
        %2919 = vmatmul.mubr.bf16.gmra.mxu0 %v2710
        %v2920 = vpop.f32.mrf.mxu0
        %v2921 = vadd.f32 0.0, %v2920
        %v2922 = vpop.f32.mrf.mxu0
        %v2923 = vadd.f32 0.0, %v2922
        %v2924 = vpop.f32.mrf.mxu0
        %v2925 = vadd.f32 0.0, %v2924
        %v2926 = vpop.f32.mrf.mxu0
        %v2927 = vadd.f32 0.0, %v2926
        %2928 = vmatprep.mubr.bf16.mxu0 %v2713
        %2929 = vmatmul.mubr.bf16.gmra.mxu0 %v2712
        %v2930 = vpop.f32.mrf.mxu0
        %v2931 = vadd.f32 0.0, %v2930
        %v2932 = vpop.f32.mrf.mxu0
        %v2933 = vadd.f32 0.0, %v2932
        %v2934 = vpop.f32.mrf.mxu0
        %v2935 = vadd.f32 0.0, %v2934
        %v2936 = vpop.f32.mrf.mxu0
        %v2937 = vadd.f32 0.0, %v2936
        %2938 = vmatprep.mubr.bf16.mxu0 %v2715
        %2939 = vmatmul.mubr.bf16.gmra.mxu0 %v2714
        %v2940 = vpop.f32.mrf.mxu0
        %v2941 = vadd.f32 0.0, %v2940
        %v2942 = vpop.f32.mrf.mxu0
        %v2943 = vadd.f32 0.0, %v2942
        %v2944 = vpop.f32.mrf.mxu0
        %v2945 = vadd.f32 0.0, %v2944
        %v2946 = vpop.f32.mrf.mxu0
        %v2947 = vadd.f32 0.0, %v2946
        %2948 = vmatprep.mubr.bf16.mxu0 %v2717
        %2949 = vmatmul.mubr.bf16.gmra.mxu0 %v2716
        %v2950 = vpop.f32.mrf.mxu0
        %v2951 = vadd.f32 0.0, %v2950
        %v2952 = vpop.f32.mrf.mxu0
        %v2953 = vadd.f32 0.0, %v2952
        %v2954 = vpop.f32.mrf.mxu0
        %v2955 = vadd.f32 0.0, %v2954
        %v2956 = vpop.f32.mrf.mxu0
        %v2957 = vadd.f32 0.0, %v2956
        %2958 = vdwg.mxu0
        %v2959 = vadd.f32 %v937, %v2921
        %v2960 = vadd.f32 %v938, %v2923
        %v2961 = vadd.f32 %v939, %v2925
        %v2962 = vadd.f32 %v940, %v2927
        %v2963 = vadd.f32 %v941, %v2931
        %v2964 = vadd.f32 %v942, %v2933
        %v2965 = vadd.f32 %v943, %v2935
        %v2966 = vadd.f32 %v944, %v2937
        %v2967 = vadd.f32 %v945, %v2941
        %v2968 = vadd.f32 %v946, %v2943
        %v2969 = vadd.f32 %v947, %v2945
        %v2970 = vadd.f32 %v948, %v2947
        %v2971 = vadd.f32 %v949, %v2951
        %v2972 = vadd.f32 %v950, %v2953
        %v2973 = vadd.f32 %v951, %v2955
        %v2974 = vadd.f32 %v952, %v2957
        %v2975 = vld [vmem:[%s740] sm:$0x3]
        %v2977 = vlaneseq
        %v2978 = vshrl.u32 %v2977, 7
        %v2979 = vsub.s32 0, %v2978
        %v2980 = vrot.slane %v2975, %v2979
        %v2981 = vlaneseq
        %v2982 = vshrl.u32 %v2981, 7
        %v2983 = vsub.s32 1, %v2982
        %v2984 = vrot.slane %v2975, %v2983
        %v2987 = vadd.f32 %v2959, %v2980
        %v2988 = vadd.f32 %v2960, %v2984
        %v2989 = vadd.f32 %v2961, %v2980
        %v2990 = vadd.f32 %v2962, %v2984
        %v2991 = vadd.f32 %v2963, %v2980
        %v2992 = vadd.f32 %v2964, %v2984
        %v2993 = vadd.f32 %v2965, %v2980
        %v2994 = vadd.f32 %v2966, %v2984
        %v2995 = vadd.f32 %v2967, %v2980
        %v2996 = vadd.f32 %v2968, %v2984
        %v2997 = vadd.f32 %v2969, %v2980
        %v2998 = vadd.f32 %v2970, %v2984
        %v2999 = vadd.f32 %v2971, %v2980
        %v3000 = vadd.f32 %v2972, %v2984
        %v3001 = vadd.f32 %v2973, %v2980
        %v3002 = vadd.f32 %v2974, %v2984
        %v3003 = vld [vmem:[%s749] sm:$0x3]
        %v3004 = vld [vmem:[%s758] sm:$0x3]
        %v3005 = vadd.f32 %v2987, %v2988
        %3006 = vadd.xlane.f32.xlu0 %v3005
        %v3007 = vpop.xlane.xlu0 %3006
        %v3008 = vadd.f32 %v2989, %v2990
        %3009 = vadd.xlane.f32.xlu0 %v3008
        %v3010 = vpop.xlane.xlu0 %3009
        %v3011 = vadd.f32 %v2991, %v2992
        %3012 = vadd.xlane.f32.xlu0 %v3011
        %v3013 = vpop.xlane.xlu0 %3012
        %v3014 = vadd.f32 %v2993, %v2994
        %3015 = vadd.xlane.f32.xlu0 %v3014
        %v3016 = vpop.xlane.xlu0 %3015
        %v3017 = vadd.f32 %v2995, %v2996
        %3018 = vadd.xlane.f32.xlu0 %v3017
        %v3019 = vpop.xlane.xlu0 %3018
        %v3020 = vadd.f32 %v2997, %v2998
        %3021 = vadd.xlane.f32.xlu0 %v3020
        %v3022 = vpop.xlane.xlu0 %3021
        %v3023 = vadd.f32 %v2999, %v3000
        %3024 = vadd.xlane.f32.xlu0 %v3023
        %v3025 = vpop.xlane.xlu0 %3024
        %v3026 = vadd.f32 %v3001, %v3002
        %3027 = vadd.xlane.f32.xlu0 %v3026
        %v3028 = vpop.xlane.xlu0 %3027
        %v3029 = vmul.f32 %v3007, %v979
        %v3030 = vmul.f32 %v3010, %v979
        %v3031 = vmul.f32 %v3013, %v979
        %v3032 = vmul.f32 %v3016, %v979
        %v3033 = vmul.f32 %v3019, %v979
        %v3034 = vmul.f32 %v3022, %v979
        %v3035 = vmul.f32 %v3025, %v979
        %v3036 = vmul.f32 %v3028, %v979
        %v3037 = vsub.f32 %v2987, %v3029
        %v3038 = vsub.f32 %v2988, %v3029
        %v3039 = vsub.f32 %v2989, %v3030
        %v3040 = vsub.f32 %v2990, %v3030
        %v3041 = vsub.f32 %v2991, %v3031
        %v3042 = vsub.f32 %v2992, %v3031
        %v3043 = vsub.f32 %v2993, %v3032
        %v3044 = vsub.f32 %v2994, %v3032
        %v3045 = vsub.f32 %v2995, %v3033
        %v3046 = vsub.f32 %v2996, %v3033
        %v3047 = vsub.f32 %v2997, %v3034
        %v3048 = vsub.f32 %v2998, %v3034
        %v3049 = vsub.f32 %v2999, %v3035
        %v3050 = vsub.f32 %v3000, %v3035
        %v3051 = vsub.f32 %v3001, %v3036
        %v3052 = vsub.f32 %v3002, %v3036
        %v3053 = vmul.f32 %v3037, %v3037
        %v3054 = vmul.f32 %v3038, %v3038
        %v3055 = vmul.f32 %v3039, %v3039
        %v3056 = vmul.f32 %v3040, %v3040
        %v3057 = vmul.f32 %v3041, %v3041
        %v3058 = vmul.f32 %v3042, %v3042
        %v3059 = vmul.f32 %v3043, %v3043
        %v3060 = vmul.f32 %v3044, %v3044
        %v3061 = vmul.f32 %v3045, %v3045
        %v3062 = vmul.f32 %v3046, %v3046
        %v3063 = vmul.f32 %v3047, %v3047
        %v3064 = vmul.f32 %v3048, %v3048
        %v3065 = vmul.f32 %v3049, %v3049
        %v3066 = vmul.f32 %v3050, %v3050
        %v3067 = vmul.f32 %v3051, %v3051
        %v3068 = vmul.f32 %v3052, %v3052
        %v3069 = vadd.f32 %v3053, %v3054
        %3070 = vadd.xlane.f32.xlu0 %v3069
        %v3071 = vpop.xlane.xlu0 %3070
        %v3072 = vadd.f32 %v3055, %v3056
        %3073 = vadd.xlane.f32.xlu0 %v3072
        %v3074 = vpop.xlane.xlu0 %3073
        %v3075 = vadd.f32 %v3057, %v3058
        %3076 = vadd.xlane.f32.xlu0 %v3075
        %v3077 = vpop.xlane.xlu0 %3076
        %v3078 = vadd.f32 %v3059, %v3060
        %3079 = vadd.xlane.f32.xlu0 %v3078
        %v3080 = vpop.xlane.xlu0 %3079
        %v3081 = vadd.f32 %v3061, %v3062
        %3082 = vadd.xlane.f32.xlu0 %v3081
        %v3083 = vpop.xlane.xlu0 %3082
        %v3084 = vadd.f32 %v3063, %v3064
        %3085 = vadd.xlane.f32.xlu0 %v3084
        %v3086 = vpop.xlane.xlu0 %3085
        %v3087 = vadd.f32 %v3065, %v3066
        %3088 = vadd.xlane.f32.xlu0 %v3087
        %v3089 = vpop.xlane.xlu0 %3088
        %v3090 = vadd.f32 %v3067, %v3068
        %3091 = vadd.xlane.f32.xlu0 %v3090
        %v3092 = vpop.xlane.xlu0 %3091
        %v3093 = vmul.f32 %v3071, %v979
        %v3094 = vmul.f32 %v3074, %v979
        %v3095 = vmul.f32 %v3077, %v979
        %v3096 = vmul.f32 %v3080, %v979
        %v3097 = vmul.f32 %v3083, %v979
        %v3098 = vmul.f32 %v3086, %v979
        %v3099 = vmul.f32 %v3089, %v979
        %v3100 = vmul.f32 %v3092, %v979
        %v3101 = vadd.f32 %v3093, 1e-05
        %v3102 = vadd.f32 %v3094, 1e-05
        %v3103 = vadd.f32 %v3095, 1e-05
        %v3104 = vadd.f32 %v3096, 1e-05
        %v3105 = vadd.f32 %v3097, 1e-05
        %v3106 = vadd.f32 %v3098, 1e-05
        %v3107 = vadd.f32 %v3099, 1e-05
        %v3108 = vadd.f32 %v3100, 1e-05
        %v3109 = vrsqrt.pop %v3101
        %v3110 = vrsqrt.pop %v3102
        %v3111 = vrsqrt.pop %v3103
        %v3112 = vrsqrt.pop %v3104
        %v3113 = vrsqrt.pop %v3105
        %v3114 = vrsqrt.pop %v3106
        %v3115 = vrsqrt.pop %v3107
        %v3116 = vrsqrt.pop %v3108
        %v3117 = vmul.f32 %v3037, %v3109
        %v3118 = vmul.f32 %v3038, %v3109
        %v3119 = vmul.f32 %v3039, %v3110
        %v3120 = vmul.f32 %v3040, %v3110
        %v3121 = vmul.f32 %v3041, %v3111
        %v3122 = vmul.f32 %v3042, %v3111
        %v3123 = vmul.f32 %v3043, %v3112
        %v3124 = vmul.f32 %v3044, %v3112
        %v3125 = vmul.f32 %v3045, %v3113
        %v3126 = vmul.f32 %v3046, %v3113
        %v3127 = vmul.f32 %v3047, %v3114
        %v3128 = vmul.f32 %v3048, %v3114
        %v3129 = vmul.f32 %v3049, %v3115
        %v3130 = vmul.f32 %v3050, %v3115
        %v3131 = vmul.f32 %v3051, %v3116
        %v3132 = vmul.f32 %v3052, %v3116
        %v3134 = vlaneseq
        %v3135 = vshrl.u32 %v3134, 7
        %v3136 = vsub.s32 0, %v3135
        %v3137 = vrot.slane %v3003, %v3136
        %v3138 = vlaneseq
        %v3139 = vshrl.u32 %v3138, 7
        %v3140 = vsub.s32 1, %v3139
        %v3141 = vrot.slane %v3003, %v3140
        %v3144 = vmul.f32 %v3117, %v3137
        %v3145 = vmul.f32 %v3118, %v3141
        %v3146 = vmul.f32 %v3119, %v3137
        %v3147 = vmul.f32 %v3120, %v3141
        %v3148 = vmul.f32 %v3121, %v3137
        %v3149 = vmul.f32 %v3122, %v3141
        %v3150 = vmul.f32 %v3123, %v3137
        %v3151 = vmul.f32 %v3124, %v3141
        %v3152 = vmul.f32 %v3125, %v3137
        %v3153 = vmul.f32 %v3126, %v3141
        %v3154 = vmul.f32 %v3127, %v3137
        %v3155 = vmul.f32 %v3128, %v3141
        %v3156 = vmul.f32 %v3129, %v3137
        %v3157 = vmul.f32 %v3130, %v3141
        %v3158 = vmul.f32 %v3131, %v3137
        %v3159 = vmul.f32 %v3132, %v3141
        %v3161 = vlaneseq
        %v3162 = vshrl.u32 %v3161, 7
        %v3163 = vsub.s32 0, %v3162
        %v3164 = vrot.slane %v3004, %v3163
        %v3165 = vlaneseq
        %v3166 = vshrl.u32 %v3165, 7
        %v3167 = vsub.s32 1, %v3166
        %v3168 = vrot.slane %v3004, %v3167
        %v3171 = vadd.f32 %v3144, %v3164
        %v3172 = vadd.f32 %v3145, %v3168
        %v3173 = vadd.f32 %v3146, %v3164
        %v3174 = vadd.f32 %v3147, %v3168
        %v3175 = vadd.f32 %v3148, %v3164
        %v3176 = vadd.f32 %v3149, %v3168
        %v3177 = vadd.f32 %v3150, %v3164
        %v3178 = vadd.f32 %v3151, %v3168
        %v3179 = vadd.f32 %v3152, %v3164
        %v3180 = vadd.f32 %v3153, %v3168
        %v3181 = vadd.f32 %v3154, %v3164
        %v3182 = vadd.f32 %v3155, %v3168
        %v3183 = vadd.f32 %v3156, %v3164
        %v3184 = vadd.f32 %v3157, %v3168
        %v3185 = vadd.f32 %v3158, %v3164
        %v3186 = vadd.f32 %v3159, %v3168
        %v3187 = vpack.c.bf16 %v3173, %v3171
        %v3188 = vpack.c.bf16 %v3174, %v3172
        %v3189 = vpack.c.bf16 %v3177, %v3175
        %v3190 = vpack.c.bf16 %v3178, %v3176
        %v3191 = vpack.c.bf16 %v3181, %v3179
        %v3192 = vpack.c.bf16 %v3182, %v3180
        %v3193 = vpack.c.bf16 %v3185, %v3183
        %v3194 = vpack.c.bf16 %v3186, %v3184
        %v3195 = vld [vmem:[%s767] sm:$0xff]
        %v3196 = vld [vmem:[%s767 + $0x8] sm:$0xff]
        %v3197 = vld [vmem:[%s767 + $0x10] sm:$0xff]
        %v3198 = vld [vmem:[%s767 + $0x18] sm:$0xff]
        %v3199 = vld [vmem:[%s767 + $0x20] sm:$0xff]
        %v3200 = vld [vmem:[%s767 + $0x28] sm:$0xff]
        %v3201 = vld [vmem:[%s767 + $0x30] sm:$0xff]
        %v3202 = vld [vmem:[%s767 + $0x38] sm:$0xff]
        %v3203 = vld [vmem:[%s767 + $0x40] sm:$0xff]
        %v3204 = vld [vmem:[%s767 + $0x48] sm:$0xff]
        %v3205 = vld [vmem:[%s767 + $0x50] sm:$0xff]
        %v3206 = vld [vmem:[%s767 + $0x58] sm:$0xff]
        %v3207 = vld [vmem:[%s767 + $0x60] sm:$0xff]
        %v3208 = vld [vmem:[%s767 + $0x68] sm:$0xff]
        %v3209 = vld [vmem:[%s767 + $0x70] sm:$0xff]
        %v3210 = vld [vmem:[%s767 + $0x78] sm:$0xff]
        %v3211 = vld [vmem:[%s767 + $0x80] sm:$0xff]
        %v3212 = vld [vmem:[%s767 + $0x88] sm:$0xff]
        %v3213 = vld [vmem:[%s767 + $0x90] sm:$0xff]
        %v3214 = vld [vmem:[%s767 + $0x98] sm:$0xff]
        %v3215 = vld [vmem:[%s767 + $0xa0] sm:$0xff]
        %v3216 = vld [vmem:[%s767 + $0xa8] sm:$0xff]
        %v3217 = vld [vmem:[%s767 + $0xb0] sm:$0xff]
        %v3218 = vld [vmem:[%s767 + $0xb8] sm:$0xff]
        %v3219 = vld [vmem:[%s767 + $0xc0] sm:$0xff]
        %v3220 = vld [vmem:[%s767 + $0xc8] sm:$0xff]
        %v3221 = vld [vmem:[%s767 + $0xd0] sm:$0xff]
        %v3222 = vld [vmem:[%s767 + $0xd8] sm:$0xff]
        %v3223 = vld [vmem:[%s767 + $0xe0] sm:$0xff]
        %v3224 = vld [vmem:[%s767 + $0xe8] sm:$0xff]
        %v3225 = vld [vmem:[%s767 + $0xf0] sm:$0xff]
        %v3226 = vld [vmem:[%s767 + $0xf8] sm:$0xff]
        %v3227 = vld [vmem:[%s767 + $0x100] sm:$0xff]
        %v3228 = vld [vmem:[%s767 + $0x108] sm:$0xff]
        %v3229 = vld [vmem:[%s767 + $0x110] sm:$0xff]
        %v3230 = vld [vmem:[%s767 + $0x118] sm:$0xff]
        %v3231 = vld [vmem:[%s767 + $0x120] sm:$0xff]
        %v3232 = vld [vmem:[%s767 + $0x128] sm:$0xff]
        %v3233 = vld [vmem:[%s767 + $0x130] sm:$0xff]
        %v3234 = vld [vmem:[%s767 + $0x138] sm:$0xff]
        %v3235 = vld [vmem:[%s767 + $0x140] sm:$0xff]
        %v3236 = vld [vmem:[%s767 + $0x148] sm:$0xff]
        %v3237 = vld [vmem:[%s767 + $0x150] sm:$0xff]
        %v3238 = vld [vmem:[%s767 + $0x158] sm:$0xff]
        %v3239 = vld [vmem:[%s767 + $0x160] sm:$0xff]
        %v3240 = vld [vmem:[%s767 + $0x168] sm:$0xff]
        %v3241 = vld [vmem:[%s767 + $0x170] sm:$0xff]
        %v3242 = vld [vmem:[%s767 + $0x178] sm:$0xff]
        %v3243 = vld [vmem:[%s767 + $0x180] sm:$0xff]
        %v3244 = vld [vmem:[%s767 + $0x188] sm:$0xff]
        %v3245 = vld [vmem:[%s767 + $0x190] sm:$0xff]
        %v3246 = vld [vmem:[%s767 + $0x198] sm:$0xff]
        %v3247 = vld [vmem:[%s767 + $0x1a0] sm:$0xff]
        %v3248 = vld [vmem:[%s767 + $0x1a8] sm:$0xff]
        %v3249 = vld [vmem:[%s767 + $0x1b0] sm:$0xff]
        %v3250 = vld [vmem:[%s767 + $0x1b8] sm:$0xff]
        %v3251 = vld [vmem:[%s767 + $0x1c0] sm:$0xff]
        %v3252 = vld [vmem:[%s767 + $0x1c8] sm:$0xff]
        %v3253 = vld [vmem:[%s767 + $0x1d0] sm:$0xff]
        %v3254 = vld [vmem:[%s767 + $0x1d8] sm:$0xff]
        %v3255 = vld [vmem:[%s767 + $0x1e0] sm:$0xff]
        %v3256 = vld [vmem:[%s767 + $0x1e8] sm:$0xff]
        %v3257 = vld [vmem:[%s767 + $0x1f0] sm:$0xff]
        %v3258 = vld [vmem:[%s767 + $0x1f8] sm:$0xff]
        %v3259 = vld [vmem:[%s767 + $0x200] sm:$0xff]
        %v3260 = vld [vmem:[%s767 + $0x208] sm:$0xff]
        %v3261 = vld [vmem:[%s767 + $0x210] sm:$0xff]
        %v3262 = vld [vmem:[%s767 + $0x218] sm:$0xff]
        %v3263 = vld [vmem:[%s767 + $0x220] sm:$0xff]
        %v3264 = vld [vmem:[%s767 + $0x228] sm:$0xff]
        %v3265 = vld [vmem:[%s767 + $0x230] sm:$0xff]
        %v3266 = vld [vmem:[%s767 + $0x238] sm:$0xff]
        %v3267 = vld [vmem:[%s767 + $0x240] sm:$0xff]
        %v3268 = vld [vmem:[%s767 + $0x248] sm:$0xff]
        %v3269 = vld [vmem:[%s767 + $0x250] sm:$0xff]
        %v3270 = vld [vmem:[%s767 + $0x258] sm:$0xff]
        %v3271 = vld [vmem:[%s767 + $0x260] sm:$0xff]
        %v3272 = vld [vmem:[%s767 + $0x268] sm:$0xff]
        %v3273 = vld [vmem:[%s767 + $0x270] sm:$0xff]
        %v3274 = vld [vmem:[%s767 + $0x278] sm:$0xff]
        %v3275 = vld [vmem:[%s767 + $0x280] sm:$0xff]
        %v3276 = vld [vmem:[%s767 + $0x288] sm:$0xff]
        %v3277 = vld [vmem:[%s767 + $0x290] sm:$0xff]
        %v3278 = vld [vmem:[%s767 + $0x298] sm:$0xff]
        %v3279 = vld [vmem:[%s767 + $0x2a0] sm:$0xff]
        %v3280 = vld [vmem:[%s767 + $0x2a8] sm:$0xff]
        %v3281 = vld [vmem:[%s767 + $0x2b0] sm:$0xff]
        %v3282 = vld [vmem:[%s767 + $0x2b8] sm:$0xff]
        %v3283 = vld [vmem:[%s767 + $0x2c0] sm:$0xff]
        %v3284 = vld [vmem:[%s767 + $0x2c8] sm:$0xff]
        %v3285 = vld [vmem:[%s767 + $0x2d0] sm:$0xff]
        %v3286 = vld [vmem:[%s767 + $0x2d8] sm:$0xff]
        %v3287 = vld [vmem:[%s767 + $0x2e0] sm:$0xff]
        %v3288 = vld [vmem:[%s767 + $0x2e8] sm:$0xff]
        %v3289 = vld [vmem:[%s767 + $0x2f0] sm:$0xff]
        %v3290 = vld [vmem:[%s767 + $0x2f8] sm:$0xff]
        %v3291 = vld [vmem:[%s767 + $0x300] sm:$0xff]
        %v3292 = vld [vmem:[%s767 + $0x308] sm:$0xff]
        %v3293 = vld [vmem:[%s767 + $0x310] sm:$0xff]
        %v3294 = vld [vmem:[%s767 + $0x318] sm:$0xff]
        %v3295 = vld [vmem:[%s767 + $0x320] sm:$0xff]
        %v3296 = vld [vmem:[%s767 + $0x328] sm:$0xff]
        %v3297 = vld [vmem:[%s767 + $0x330] sm:$0xff]
        %v3298 = vld [vmem:[%s767 + $0x338] sm:$0xff]
        %v3299 = vld [vmem:[%s767 + $0x340] sm:$0xff]
        %v3300 = vld [vmem:[%s767 + $0x348] sm:$0xff]
        %v3301 = vld [vmem:[%s767 + $0x350] sm:$0xff]
        %v3302 = vld [vmem:[%s767 + $0x358] sm:$0xff]
        %v3303 = vld [vmem:[%s767 + $0x360] sm:$0xff]
        %v3304 = vld [vmem:[%s767 + $0x368] sm:$0xff]
        %v3305 = vld [vmem:[%s767 + $0x370] sm:$0xff]
        %v3306 = vld [vmem:[%s767 + $0x378] sm:$0xff]
        %v3307 = vld [vmem:[%s767 + $0x380] sm:$0xff]
        %v3308 = vld [vmem:[%s767 + $0x388] sm:$0xff]
        %v3309 = vld [vmem:[%s767 + $0x390] sm:$0xff]
        %v3310 = vld [vmem:[%s767 + $0x398] sm:$0xff]
        %v3311 = vld [vmem:[%s767 + $0x3a0] sm:$0xff]
        %v3312 = vld [vmem:[%s767 + $0x3a8] sm:$0xff]
        %v3313 = vld [vmem:[%s767 + $0x3b0] sm:$0xff]
        %v3314 = vld [vmem:[%s767 + $0x3b8] sm:$0xff]
        %v3315 = vld [vmem:[%s767 + $0x3c0] sm:$0xff]
        %v3316 = vld [vmem:[%s767 + $0x3c8] sm:$0xff]
        %v3317 = vld [vmem:[%s767 + $0x3d0] sm:$0xff]
        %v3318 = vld [vmem:[%s767 + $0x3d8] sm:$0xff]
        %v3319 = vld [vmem:[%s767 + $0x3e0] sm:$0xff]
        %v3320 = vld [vmem:[%s767 + $0x3e8] sm:$0xff]
        %v3321 = vld [vmem:[%s767 + $0x3f0] sm:$0xff]
        %v3322 = vld [vmem:[%s767 + $0x3f8] sm:$0xff]
        %v3323 = vld [vmem:[%s870] sm:$0xff]
        %v3325 = vlaneseq
        %v3326 = vshrl.u32 %v3325, 7
        %v3327 = vsub.s32 0, %v3326
        %v3328 = vrot.slane %v3323, %v3327
        %v3329 = vlaneseq
        %v3330 = vshrl.u32 %v3329, 7
        %v3331 = vsub.s32 1, %v3330
        %v3332 = vrot.slane %v3323, %v3331
        %v3333 = vlaneseq
        %v3334 = vshrl.u32 %v3333, 7
        %v3335 = vsub.s32 2, %v3334
        %v3336 = vrot.slane %v3323, %v3335
        %v3337 = vlaneseq
        %v3338 = vshrl.u32 %v3337, 7
        %v3339 = vsub.s32 3, %v3338
        %v3340 = vrot.slane %v3323, %v3339
        %v3341 = vlaneseq
        %v3342 = vshrl.u32 %v3341, 7
        %v3343 = vsub.s32 4, %v3342
        %v3344 = vrot.slane %v3323, %v3343
        %v3345 = vlaneseq
        %v3346 = vshrl.u32 %v3345, 7
        %v3347 = vsub.s32 5, %v3346
        %v3348 = vrot.slane %v3323, %v3347
        %v3349 = vlaneseq
        %v3350 = vshrl.u32 %v3349, 7
        %v3351 = vsub.s32 6, %v3350
        %v3352 = vrot.slane %v3323, %v3351
        %v3353 = vlaneseq
        %v3354 = vshrl.u32 %v3353, 7
        %v3355 = vsub.s32 7, %v3354
        %v3356 = vrot.slane %v3323, %v3355
        %v3493 = vunpack.c.l.b16 %v3195
        %v3494 = vunpack.c.h.b16 %v3195
        %v3495 = vunpack.c.l.b16 %v3196
        %v3496 = vunpack.c.h.b16 %v3196
        %v3497 = vunpack.c.l.b16 %v3197
        %v3498 = vunpack.c.h.b16 %v3197
        %v3499 = vunpack.c.l.b16 %v3198
        %v3500 = vunpack.c.h.b16 %v3198
        %v3501 = vunpack.c.l.b16 %v3199
        %v3502 = vunpack.c.h.b16 %v3199
        %v3503 = vunpack.c.l.b16 %v3200
        %v3504 = vunpack.c.h.b16 %v3200
        %v3505 = vunpack.c.l.b16 %v3201
        %v3506 = vunpack.c.h.b16 %v3201
        %v3507 = vunpack.c.l.b16 %v3202
        %v3508 = vunpack.c.h.b16 %v3202
        %v3509 = vunpack.c.l.b16 %v3203
        %v3510 = vunpack.c.h.b16 %v3203
        %v3511 = vunpack.c.l.b16 %v3204
        %v3512 = vunpack.c.h.b16 %v3204
        %v3513 = vunpack.c.l.b16 %v3205
        %v3514 = vunpack.c.h.b16 %v3205
        %v3515 = vunpack.c.l.b16 %v3206
        %v3516 = vunpack.c.h.b16 %v3206
        %v3517 = vunpack.c.l.b16 %v3207
        %v3518 = vunpack.c.h.b16 %v3207
        %v3519 = vunpack.c.l.b16 %v3208
        %v3520 = vunpack.c.h.b16 %v3208
        %v3521 = vunpack.c.l.b16 %v3209
        %v3522 = vunpack.c.h.b16 %v3209
        %v3523 = vunpack.c.l.b16 %v3210
        %v3524 = vunpack.c.h.b16 %v3210
        %v3525 = vunpack.c.l.b16 %v3211
        %v3526 = vunpack.c.h.b16 %v3211
        %v3527 = vunpack.c.l.b16 %v3212
        %v3528 = vunpack.c.h.b16 %v3212
        %v3529 = vunpack.c.l.b16 %v3213
        %v3530 = vunpack.c.h.b16 %v3213
        %v3531 = vunpack.c.l.b16 %v3214
        %v3532 = vunpack.c.h.b16 %v3214
        %v3533 = vunpack.c.l.b16 %v3215
        %v3534 = vunpack.c.h.b16 %v3215
        %v3535 = vunpack.c.l.b16 %v3216
        %v3536 = vunpack.c.h.b16 %v3216
        %v3537 = vunpack.c.l.b16 %v3217
        %v3538 = vunpack.c.h.b16 %v3217
        %v3539 = vunpack.c.l.b16 %v3218
        %v3540 = vunpack.c.h.b16 %v3218
        %v3541 = vunpack.c.l.b16 %v3219
        %v3542 = vunpack.c.h.b16 %v3219
        %v3543 = vunpack.c.l.b16 %v3220
        %v3544 = vunpack.c.h.b16 %v3220
        %v3545 = vunpack.c.l.b16 %v3221
        %v3546 = vunpack.c.h.b16 %v3221
        %v3547 = vunpack.c.l.b16 %v3222
        %v3548 = vunpack.c.h.b16 %v3222
        %v3549 = vunpack.c.l.b16 %v3223
        %v3550 = vunpack.c.h.b16 %v3223
        %v3551 = vunpack.c.l.b16 %v3224
        %v3552 = vunpack.c.h.b16 %v3224
        %v3553 = vunpack.c.l.b16 %v3225
        %v3554 = vunpack.c.h.b16 %v3225
        %v3555 = vunpack.c.l.b16 %v3226
        %v3556 = vunpack.c.h.b16 %v3226
        %v3557 = vunpack.c.l.b16 %v3227
        %v3558 = vunpack.c.h.b16 %v3227
        %v3559 = vunpack.c.l.b16 %v3228
        %v3560 = vunpack.c.h.b16 %v3228
        %v3561 = vunpack.c.l.b16 %v3229
        %v3562 = vunpack.c.h.b16 %v3229
        %v3563 = vunpack.c.l.b16 %v3230
        %v3564 = vunpack.c.h.b16 %v3230
        %v3565 = vunpack.c.l.b16 %v3231
        %v3566 = vunpack.c.h.b16 %v3231
        %v3567 = vunpack.c.l.b16 %v3232
        %v3568 = vunpack.c.h.b16 %v3232
        %v3569 = vunpack.c.l.b16 %v3233
        %v3570 = vunpack.c.h.b16 %v3233
        %v3571 = vunpack.c.l.b16 %v3234
        %v3572 = vunpack.c.h.b16 %v3234
        %v3573 = vunpack.c.l.b16 %v3235
        %v3574 = vunpack.c.h.b16 %v3235
        %v3575 = vunpack.c.l.b16 %v3236
        %v3576 = vunpack.c.h.b16 %v3236
        %v3577 = vunpack.c.l.b16 %v3237
        %v3578 = vunpack.c.h.b16 %v3237
        %v3579 = vunpack.c.l.b16 %v3238
        %v3580 = vunpack.c.h.b16 %v3238
        %v3581 = vunpack.c.l.b16 %v3239
        %v3582 = vunpack.c.h.b16 %v3239
        %v3583 = vunpack.c.l.b16 %v3240
        %v3584 = vunpack.c.h.b16 %v3240
        %v3585 = vunpack.c.l.b16 %v3241
        %v3586 = vunpack.c.h.b16 %v3241
        %v3587 = vunpack.c.l.b16 %v3242
        %v3588 = vunpack.c.h.b16 %v3242
        %v3589 = vunpack.c.l.b16 %v3243
        %v3590 = vunpack.c.h.b16 %v3243
        %v3591 = vunpack.c.l.b16 %v3244
        %v3592 = vunpack.c.h.b16 %v3244
        %v3593 = vunpack.c.l.b16 %v3245
        %v3594 = vunpack.c.h.b16 %v3245
        %v3595 = vunpack.c.l.b16 %v3246
        %v3596 = vunpack.c.h.b16 %v3246
        %v3597 = vunpack.c.l.b16 %v3247
        %v3598 = vunpack.c.h.b16 %v3247
        %v3599 = vunpack.c.l.b16 %v3248
        %v3600 = vunpack.c.h.b16 %v3248
        %v3601 = vunpack.c.l.b16 %v3249
        %v3602 = vunpack.c.h.b16 %v3249
        %v3603 = vunpack.c.l.b16 %v3250
        %v3604 = vunpack.c.h.b16 %v3250
        %v3605 = vunpack.c.l.b16 %v3251
        %v3606 = vunpack.c.h.b16 %v3251
        %v3607 = vunpack.c.l.b16 %v3252
        %v3608 = vunpack.c.h.b16 %v3252
        %v3609 = vunpack.c.l.b16 %v3253
        %v3610 = vunpack.c.h.b16 %v3253
        %v3611 = vunpack.c.l.b16 %v3254
        %v3612 = vunpack.c.h.b16 %v3254
        %v3613 = vunpack.c.l.b16 %v3255
        %v3614 = vunpack.c.h.b16 %v3255
        %v3615 = vunpack.c.l.b16 %v3256
        %v3616 = vunpack.c.h.b16 %v3256
        %v3617 = vunpack.c.l.b16 %v3257
        %v3618 = vunpack.c.h.b16 %v3257
        %v3619 = vunpack.c.l.b16 %v3258
        %v3620 = vunpack.c.h.b16 %v3258
        %v3621 = vunpack.c.l.b16 %v3259
        %v3622 = vunpack.c.h.b16 %v3259
        %v3623 = vunpack.c.l.b16 %v3260
        %v3624 = vunpack.c.h.b16 %v3260
        %v3625 = vunpack.c.l.b16 %v3261
        %v3626 = vunpack.c.h.b16 %v3261
        %v3627 = vunpack.c.l.b16 %v3262
        %v3628 = vunpack.c.h.b16 %v3262
        %v3629 = vunpack.c.l.b16 %v3263
        %v3630 = vunpack.c.h.b16 %v3263
        %v3631 = vunpack.c.l.b16 %v3264
        %v3632 = vunpack.c.h.b16 %v3264
        %v3633 = vunpack.c.l.b16 %v3265
        %v3634 = vunpack.c.h.b16 %v3265
        %v3635 = vunpack.c.l.b16 %v3266
        %v3636 = vunpack.c.h.b16 %v3266
        %v3637 = vunpack.c.l.b16 %v3267
        %v3638 = vunpack.c.h.b16 %v3267
        %v3639 = vunpack.c.l.b16 %v3268
        %v3640 = vunpack.c.h.b16 %v3268
        %v3641 = vunpack.c.l.b16 %v3269
        %v3642 = vunpack.c.h.b16 %v3269
        %v3643 = vunpack.c.l.b16 %v3270
        %v3644 = vunpack.c.h.b16 %v3270
        %v3645 = vunpack.c.l.b16 %v3271
        %v3646 = vunpack.c.h.b16 %v3271
        %v3647 = vunpack.c.l.b16 %v3272
        %v3648 = vunpack.c.h.b16 %v3272
        %v3649 = vunpack.c.l.b16 %v3273
        %v3650 = vunpack.c.h.b16 %v3273
        %v3651 = vunpack.c.l.b16 %v3274
        %v3652 = vunpack.c.h.b16 %v3274
        %v3653 = vunpack.c.l.b16 %v3275
        %v3654 = vunpack.c.h.b16 %v3275
        %v3655 = vunpack.c.l.b16 %v3276
        %v3656 = vunpack.c.h.b16 %v3276
        %v3657 = vunpack.c.l.b16 %v3277
        %v3658 = vunpack.c.h.b16 %v3277
        %v3659 = vunpack.c.l.b16 %v3278
        %v3660 = vunpack.c.h.b16 %v3278
        %v3661 = vunpack.c.l.b16 %v3279
        %v3662 = vunpack.c.h.b16 %v3279
        %v3663 = vunpack.c.l.b16 %v3280
        %v3664 = vunpack.c.h.b16 %v3280
        %v3665 = vunpack.c.l.b16 %v3281
        %v3666 = vunpack.c.h.b16 %v3281
        %v3667 = vunpack.c.l.b16 %v3282
        %v3668 = vunpack.c.h.b16 %v3282
        %v3669 = vunpack.c.l.b16 %v3283
        %v3670 = vunpack.c.h.b16 %v3283
        %v3671 = vunpack.c.l.b16 %v3284
        %v3672 = vunpack.c.h.b16 %v3284
        %v3673 = vunpack.c.l.b16 %v3285
        %v3674 = vunpack.c.h.b16 %v3285
        %v3675 = vunpack.c.l.b16 %v3286
        %v3676 = vunpack.c.h.b16 %v3286
        %v3677 = vunpack.c.l.b16 %v3287
        %v3678 = vunpack.c.h.b16 %v3287
        %v3679 = vunpack.c.l.b16 %v3288
        %v3680 = vunpack.c.h.b16 %v3288
        %v3681 = vunpack.c.l.b16 %v3289
        %v3682 = vunpack.c.h.b16 %v3289
        %v3683 = vunpack.c.l.b16 %v3290
        %v3684 = vunpack.c.h.b16 %v3290
        %v3685 = vunpack.c.l.b16 %v3291
        %v3686 = vunpack.c.h.b16 %v3291
        %v3687 = vunpack.c.l.b16 %v3292
        %v3688 = vunpack.c.h.b16 %v3292
        %v3689 = vunpack.c.l.b16 %v3293
        %v3690 = vunpack.c.h.b16 %v3293
        %v3691 = vunpack.c.l.b16 %v3294
        %v3692 = vunpack.c.h.b16 %v3294
        %v3693 = vunpack.c.l.b16 %v3295
        %v3694 = vunpack.c.h.b16 %v3295
        %v3695 = vunpack.c.l.b16 %v3296
        %v3696 = vunpack.c.h.b16 %v3296
        %v3697 = vunpack.c.l.b16 %v3297
        %v3698 = vunpack.c.h.b16 %v3297
        %v3699 = vunpack.c.l.b16 %v3298
        %v3700 = vunpack.c.h.b16 %v3298
        %v3701 = vunpack.c.l.b16 %v3299
        %v3702 = vunpack.c.h.b16 %v3299
        %v3703 = vunpack.c.l.b16 %v3300
        %v3704 = vunpack.c.h.b16 %v3300
        %v3705 = vunpack.c.l.b16 %v3301
        %v3706 = vunpack.c.h.b16 %v3301
        %v3707 = vunpack.c.l.b16 %v3302
        %v3708 = vunpack.c.h.b16 %v3302
        %v3709 = vunpack.c.l.b16 %v3303
        %v3710 = vunpack.c.h.b16 %v3303
        %v3711 = vunpack.c.l.b16 %v3304
        %v3712 = vunpack.c.h.b16 %v3304
        %v3713 = vunpack.c.l.b16 %v3305
        %v3714 = vunpack.c.h.b16 %v3305
        %v3715 = vunpack.c.l.b16 %v3306
        %v3716 = vunpack.c.h.b16 %v3306
        %v3717 = vunpack.c.l.b16 %v3307
        %v3718 = vunpack.c.h.b16 %v3307
        %v3719 = vunpack.c.l.b16 %v3308
        %v3720 = vunpack.c.h.b16 %v3308
        %v3721 = vunpack.c.l.b16 %v3309
        %v3722 = vunpack.c.h.b16 %v3309
        %v3723 = vunpack.c.l.b16 %v3310
        %v3724 = vunpack.c.h.b16 %v3310
        %v3725 = vunpack.c.l.b16 %v3311
        %v3726 = vunpack.c.h.b16 %v3311
        %v3727 = vunpack.c.l.b16 %v3312
        %v3728 = vunpack.c.h.b16 %v3312
        %v3729 = vunpack.c.l.b16 %v3313
        %v3730 = vunpack.c.h.b16 %v3313
        %v3731 = vunpack.c.l.b16 %v3314
        %v3732 = vunpack.c.h.b16 %v3314
        %v3733 = vunpack.c.l.b16 %v3315
        %v3734 = vunpack.c.h.b16 %v3315
        %v3735 = vunpack.c.l.b16 %v3316
        %v3736 = vunpack.c.h.b16 %v3316
        %v3737 = vunpack.c.l.b16 %v3317
        %v3738 = vunpack.c.h.b16 %v3317
        %v3739 = vunpack.c.l.b16 %v3318
        %v3740 = vunpack.c.h.b16 %v3318
        %v3741 = vunpack.c.l.b16 %v3319
        %v3742 = vunpack.c.h.b16 %v3319
        %v3743 = vunpack.c.l.b16 %v3320
        %v3744 = vunpack.c.h.b16 %v3320
        %v3745 = vunpack.c.l.b16 %v3321
        %v3746 = vunpack.c.h.b16 %v3321
        %v3747 = vunpack.c.l.b16 %v3322
        %v3748 = vunpack.c.h.b16 %v3322
        %v3749 = vpack.c.b16 %v3501, %v3493
        %v3750 = vpack.c.b16 %v3502, %v3494
        %v3751 = vpack.c.b16 %v3503, %v3495
        %v3752 = vpack.c.b16 %v3504, %v3496
        %v3753 = vpack.c.b16 %v3505, %v3497
        %v3754 = vpack.c.b16 %v3506, %v3498
        %v3755 = vpack.c.b16 %v3507, %v3499
        %v3756 = vpack.c.b16 %v3508, %v3500
        %v3757 = vpack.c.b16 %v3517, %v3509
        %v3758 = vpack.c.b16 %v3518, %v3510
        %v3759 = vpack.c.b16 %v3519, %v3511
        %v3760 = vpack.c.b16 %v3520, %v3512
        %v3761 = vpack.c.b16 %v3521, %v3513
        %v3762 = vpack.c.b16 %v3522, %v3514
        %v3763 = vpack.c.b16 %v3523, %v3515
        %v3764 = vpack.c.b16 %v3524, %v3516
        %v3765 = vpack.c.b16 %v3533, %v3525
        %v3766 = vpack.c.b16 %v3534, %v3526
        %v3767 = vpack.c.b16 %v3535, %v3527
        %v3768 = vpack.c.b16 %v3536, %v3528
        %v3769 = vpack.c.b16 %v3537, %v3529
        %v3770 = vpack.c.b16 %v3538, %v3530
        %v3771 = vpack.c.b16 %v3539, %v3531
        %v3772 = vpack.c.b16 %v3540, %v3532
        %v3773 = vpack.c.b16 %v3549, %v3541
        %v3774 = vpack.c.b16 %v3550, %v3542
        %v3775 = vpack.c.b16 %v3551, %v3543
        %v3776 = vpack.c.b16 %v3552, %v3544
        %v3777 = vpack.c.b16 %v3553, %v3545
        %v3778 = vpack.c.b16 %v3554, %v3546
        %v3779 = vpack.c.b16 %v3555, %v3547
        %v3780 = vpack.c.b16 %v3556, %v3548
        %v3781 = vpack.c.b16 %v3565, %v3557
        %v3782 = vpack.c.b16 %v3566, %v3558
        %v3783 = vpack.c.b16 %v3567, %v3559
        %v3784 = vpack.c.b16 %v3568, %v3560
        %v3785 = vpack.c.b16 %v3569, %v3561
        %v3786 = vpack.c.b16 %v3570, %v3562
        %v3787 = vpack.c.b16 %v3571, %v3563
        %v3788 = vpack.c.b16 %v3572, %v3564
        %v3789 = vpack.c.b16 %v3581, %v3573
        %v3790 = vpack.c.b16 %v3582, %v3574
        %v3791 = vpack.c.b16 %v3583, %v3575
        %v3792 = vpack.c.b16 %v3584, %v3576
        %v3793 = vpack.c.b16 %v3585, %v3577
        %v3794 = vpack.c.b16 %v3586, %v3578
        %v3795 = vpack.c.b16 %v3587, %v3579
        %v3796 = vpack.c.b16 %v3588, %v3580
        %v3797 = vpack.c.b16 %v3597, %v3589
        %v3798 = vpack.c.b16 %v3598, %v3590
        %v3799 = vpack.c.b16 %v3599, %v3591
        %v3800 = vpack.c.b16 %v3600, %v3592
        %v3801 = vpack.c.b16 %v3601, %v3593
        %v3802 = vpack.c.b16 %v3602, %v3594
        %v3803 = vpack.c.b16 %v3603, %v3595
        %v3804 = vpack.c.b16 %v3604, %v3596
        %v3805 = vpack.c.b16 %v3613, %v3605
        %v3806 = vpack.c.b16 %v3614, %v3606
        %v3807 = vpack.c.b16 %v3615, %v3607
        %v3808 = vpack.c.b16 %v3616, %v3608
        %v3809 = vpack.c.b16 %v3617, %v3609
        %v3810 = vpack.c.b16 %v3618, %v3610
        %v3811 = vpack.c.b16 %v3619, %v3611
        %v3812 = vpack.c.b16 %v3620, %v3612
        %v3813 = vpack.c.b16 %v3629, %v3621
        %v3814 = vpack.c.b16 %v3630, %v3622
        %v3815 = vpack.c.b16 %v3631, %v3623
        %v3816 = vpack.c.b16 %v3632, %v3624
        %v3817 = vpack.c.b16 %v3633, %v3625
        %v3818 = vpack.c.b16 %v3634, %v3626
        %v3819 = vpack.c.b16 %v3635, %v3627
        %v3820 = vpack.c.b16 %v3636, %v3628
        %v3821 = vpack.c.b16 %v3645, %v3637
        %v3822 = vpack.c.b16 %v3646, %v3638
        %v3823 = vpack.c.b16 %v3647, %v3639
        %v3824 = vpack.c.b16 %v3648, %v3640
        %v3825 = vpack.c.b16 %v3649, %v3641
        %v3826 = vpack.c.b16 %v3650, %v3642
        %v3827 = vpack.c.b16 %v3651, %v3643
        %v3828 = vpack.c.b16 %v3652, %v3644
        %v3829 = vpack.c.b16 %v3661, %v3653
        %v3830 = vpack.c.b16 %v3662, %v3654
        %v3831 = vpack.c.b16 %v3663, %v3655
        %v3832 = vpack.c.b16 %v3664, %v3656
        %v3833 = vpack.c.b16 %v3665, %v3657
        %v3834 = vpack.c.b16 %v3666, %v3658
        %v3835 = vpack.c.b16 %v3667, %v3659
        %v3836 = vpack.c.b16 %v3668, %v3660
        %v3837 = vpack.c.b16 %v3677, %v3669
        %v3838 = vpack.c.b16 %v3678, %v3670
        %v3839 = vpack.c.b16 %v3679, %v3671
        %v3840 = vpack.c.b16 %v3680, %v3672
        %v3841 = vpack.c.b16 %v3681, %v3673
        %v3842 = vpack.c.b16 %v3682, %v3674
        %v3843 = vpack.c.b16 %v3683, %v3675
        %v3844 = vpack.c.b16 %v3684, %v3676
        %v3845 = vpack.c.b16 %v3693, %v3685
        %v3846 = vpack.c.b16 %v3694, %v3686
        %v3847 = vpack.c.b16 %v3695, %v3687
        %v3848 = vpack.c.b16 %v3696, %v3688
        %v3849 = vpack.c.b16 %v3697, %v3689
        %v3850 = vpack.c.b16 %v3698, %v3690
        %v3851 = vpack.c.b16 %v3699, %v3691
        %v3852 = vpack.c.b16 %v3700, %v3692
        %v3853 = vpack.c.b16 %v3709, %v3701
        %v3854 = vpack.c.b16 %v3710, %v3702
        %v3855 = vpack.c.b16 %v3711, %v3703
        %v3856 = vpack.c.b16 %v3712, %v3704
        %v3857 = vpack.c.b16 %v3713, %v3705
        %v3858 = vpack.c.b16 %v3714, %v3706
        %v3859 = vpack.c.b16 %v3715, %v3707
        %v3860 = vpack.c.b16 %v3716, %v3708
        %v3861 = vpack.c.b16 %v3725, %v3717
        %v3862 = vpack.c.b16 %v3726, %v3718
        %v3863 = vpack.c.b16 %v3727, %v3719
        %v3864 = vpack.c.b16 %v3728, %v3720
        %v3865 = vpack.c.b16 %v3729, %v3721
        %v3866 = vpack.c.b16 %v3730, %v3722
        %v3867 = vpack.c.b16 %v3731, %v3723
        %v3868 = vpack.c.b16 %v3732, %v3724
        %v3869 = vpack.c.b16 %v3741, %v3733
        %v3870 = vpack.c.b16 %v3742, %v3734
        %v3871 = vpack.c.b16 %v3743, %v3735
        %v3872 = vpack.c.b16 %v3744, %v3736
        %v3873 = vpack.c.b16 %v3745, %v3737
        %v3874 = vpack.c.b16 %v3746, %v3738
        %v3875 = vpack.c.b16 %v3747, %v3739
        %v3876 = vpack.c.b16 %v3748, %v3740
        %4005 = vmatprep.subr.bf16.mxu0 %v3806
        %4006 = vmatpush1.bf16.msra.mxu0 %v3805
        %4007 = vmatprep.subr.bf16.mxu0 %v3798
        %4008 = vmatpush1.bf16.msra.mxu0 %v3797
        %4009 = vmatprep.subr.bf16.mxu0 %v3790
        %4010 = vmatpush1.bf16.msra.mxu0 %v3789
        %4011 = vmatprep.subr.bf16.mxu0 %v3782
        %4012 = vmatpush1.bf16.msra.mxu0 %v3781
        %4013 = vmatprep.subr.bf16.mxu0 %v3774
        %4014 = vmatpush1.bf16.msra.mxu0 %v3773
        %4015 = vmatprep.subr.bf16.mxu0 %v3766
        %4016 = vmatpush1.bf16.msra.mxu0 %v3765
        %4017 = vmatprep.subr.bf16.mxu0 %v3758
        %4018 = vmatpush1.bf16.msra.mxu0 %v3757
        %4019 = vmatprep.subr.bf16.mxu0 %v3750
        %4020 = vmatpush1.bf16.msra.mxu0 %v3749
        %4021 = vmatprep.subr.bf16.mxu0 %v3870
        %4022 = vmatpush2.bf16.msra.mxu0 %v3869
        %4023 = vmatprep.subr.bf16.mxu0 %v3862
        %4024 = vmatpush2.bf16.msra.mxu0 %v3861
        %4025 = vmatprep.subr.bf16.mxu0 %v3854
        %4026 = vmatpush2.bf16.msra.mxu0 %v3853
        %4027 = vmatprep.subr.bf16.mxu0 %v3846
        %4028 = vmatpush2.bf16.msra.mxu0 %v3845
        %4029 = vmatprep.subr.bf16.mxu0 %v3838
        %4030 = vmatpush2.bf16.msra.mxu0 %v3837
        %4031 = vmatprep.subr.bf16.mxu0 %v3830
        %4032 = vmatpush2.bf16.msra.mxu0 %v3829
        %4033 = vmatprep.subr.bf16.mxu0 %v3822
        %4034 = vmatpush2.bf16.msra.mxu0 %v3821
        %4035 = vmatprep.subr.bf16.mxu0 %v3814
        %4036 = vmatpush2.bf16.msra.mxu0 %v3813
        %4037 = vmatprep.mubr.bf16.mxu0 %v3188
        %4038 = vmatmul.mubr.bf16.gmra.mxu0 %v3187
        %v4039 = vpop.f32.mrf.mxu0
        %v4040 = vadd.f32 %v3328, %v4039
        %v4041 = vpop.f32.mrf.mxu0
        %v4042 = vadd.f32 %v3332, %v4041
        %v4043 = vpop.f32.mrf.mxu0
        %v4044 = vadd.f32 %v3328, %v4043
        %v4045 = vpop.f32.mrf.mxu0
        %v4046 = vadd.f32 %v3332, %v4045
        %4047 = vmatprep.mubr.bf16.mxu0 %v3190
        %4048 = vmatmul.mubr.bf16.gmra.mxu0 %v3189
        %v4049 = vpop.f32.mrf.mxu0
        %v4050 = vadd.f32 %v3328, %v4049
        %v4051 = vpop.f32.mrf.mxu0
        %v4052 = vadd.f32 %v3332, %v4051
        %v4053 = vpop.f32.mrf.mxu0
        %v4054 = vadd.f32 %v3328, %v4053
        %v4055 = vpop.f32.mrf.mxu0
        %v4056 = vadd.f32 %v3332, %v4055
        %4057 = vmatprep.mubr.bf16.mxu0 %v3192
        %4058 = vmatmul.mubr.bf16.gmra.mxu0 %v3191
        %v4059 = vpop.f32.mrf.mxu0
        %v4060 = vadd.f32 %v3328, %v4059
        %v4061 = vpop.f32.mrf.mxu0
        %v4062 = vadd.f32 %v3332, %v4061
        %v4063 = vpop.f32.mrf.mxu0
        %v4064 = vadd.f32 %v3328, %v4063
        %v4065 = vpop.f32.mrf.mxu0
        %v4066 = vadd.f32 %v3332, %v4065
        %4067 = vmatprep.mubr.bf16.mxu0 %v3194
        %4068 = vmatmul.mubr.bf16.gmra.mxu0 %v3193
        %v4069 = vpop.f32.mrf.mxu0
        %v4070 = vadd.f32 %v3328, %v4069
        %v4071 = vpop.f32.mrf.mxu0
        %v4072 = vadd.f32 %v3332, %v4071
        %v4073 = vpop.f32.mrf.mxu0
        %v4074 = vadd.f32 %v3328, %v4073
        %v4075 = vpop.f32.mrf.mxu0
        %v4076 = vadd.f32 %v3332, %v4075
        %4077 = vdwg.mxu0
        %4078 = vmatprep.subr.bf16.mxu0 %v3808
        %4079 = vmatpush1.bf16.msra.mxu0 %v3807
        %4080 = vmatprep.subr.bf16.mxu0 %v3800
        %4081 = vmatpush1.bf16.msra.mxu0 %v3799
        %4082 = vmatprep.subr.bf16.mxu0 %v3792
        %4083 = vmatpush1.bf16.msra.mxu0 %v3791
        %4084 = vmatprep.subr.bf16.mxu0 %v3784
        %4085 = vmatpush1.bf16.msra.mxu0 %v3783
        %4086 = vmatprep.subr.bf16.mxu0 %v3776
        %4087 = vmatpush1.bf16.msra.mxu0 %v3775
        %4088 = vmatprep.subr.bf16.mxu0 %v3768
        %4089 = vmatpush1.bf16.msra.mxu0 %v3767
        %4090 = vmatprep.subr.bf16.mxu0 %v3760
        %4091 = vmatpush1.bf16.msra.mxu0 %v3759
        %4092 = vmatprep.subr.bf16.mxu0 %v3752
        %4093 = vmatpush1.bf16.msra.mxu0 %v3751
        %4094 = vmatprep.subr.bf16.mxu0 %v3872
        %4095 = vmatpush2.bf16.msra.mxu0 %v3871
        %4096 = vmatprep.subr.bf16.mxu0 %v3864
        %4097 = vmatpush2.bf16.msra.mxu0 %v3863
        %4098 = vmatprep.subr.bf16.mxu0 %v3856
        %4099 = vmatpush2.bf16.msra.mxu0 %v3855
        %4100 = vmatprep.subr.bf16.mxu0 %v3848
        %4101 = vmatpush2.bf16.msra.mxu0 %v3847
        %4102 = vmatprep.subr.bf16.mxu0 %v3840
        %4103 = vmatpush2.bf16.msra.mxu0 %v3839
        %4104 = vmatprep.subr.bf16.mxu0 %v3832
        %4105 = vmatpush2.bf16.msra.mxu0 %v3831
        %4106 = vmatprep.subr.bf16.mxu0 %v3824
        %4107 = vmatpush2.bf16.msra.mxu0 %v3823
        %4108 = vmatprep.subr.bf16.mxu0 %v3816
        %4109 = vmatpush2.bf16.msra.mxu0 %v3815
        %4110 = vmatprep.mubr.bf16.mxu0 %v3188
        %4111 = vmatmul.mubr.bf16.gmra.mxu0 %v3187
        %v4112 = vpop.f32.mrf.mxu0
        %v4113 = vadd.f32 %v3336, %v4112
        %v4114 = vpop.f32.mrf.mxu0
        %v4115 = vadd.f32 %v3340, %v4114
        %v4116 = vpop.f32.mrf.mxu0
        %v4117 = vadd.f32 %v3336, %v4116
        %v4118 = vpop.f32.mrf.mxu0
        %v4119 = vadd.f32 %v3340, %v4118
        %4120 = vmatprep.mubr.bf16.mxu0 %v3190
        %4121 = vmatmul.mubr.bf16.gmra.mxu0 %v3189
        %v4122 = vpop.f32.mrf.mxu0
        %v4123 = vadd.f32 %v3336, %v4122
        %v4124 = vpop.f32.mrf.mxu0
        %v4125 = vadd.f32 %v3340, %v4124
        %v4126 = vpop.f32.mrf.mxu0
        %v4127 = vadd.f32 %v3336, %v4126
        %v4128 = vpop.f32.mrf.mxu0
        %v4129 = vadd.f32 %v3340, %v4128
        %4130 = vmatprep.mubr.bf16.mxu0 %v3192
        %4131 = vmatmul.mubr.bf16.gmra.mxu0 %v3191
        %v4132 = vpop.f32.mrf.mxu0
        %v4133 = vadd.f32 %v3336, %v4132
        %v4134 = vpop.f32.mrf.mxu0
        %v4135 = vadd.f32 %v3340, %v4134
        %v4136 = vpop.f32.mrf.mxu0
        %v4137 = vadd.f32 %v3336, %v4136
        %v4138 = vpop.f32.mrf.mxu0
        %v4139 = vadd.f32 %v3340, %v4138
        %4140 = vmatprep.mubr.bf16.mxu0 %v3194
        %4141 = vmatmul.mubr.bf16.gmra.mxu0 %v3193
        %v4142 = vpop.f32.mrf.mxu0
        %v4143 = vadd.f32 %v3336, %v4142
        %v4144 = vpop.f32.mrf.mxu0
        %v4145 = vadd.f32 %v3340, %v4144
        %v4146 = vpop.f32.mrf.mxu0
        %v4147 = vadd.f32 %v3336, %v4146
        %v4148 = vpop.f32.mrf.mxu0
        %v4149 = vadd.f32 %v3340, %v4148
        %4150 = vdwg.mxu0
        %4151 = vmatprep.subr.bf16.mxu0 %v3810
        %4152 = vmatpush1.bf16.msra.mxu0 %v3809
        %4153 = vmatprep.subr.bf16.mxu0 %v3802
        %4154 = vmatpush1.bf16.msra.mxu0 %v3801
        %4155 = vmatprep.subr.bf16.mxu0 %v3794
        %4156 = vmatpush1.bf16.msra.mxu0 %v3793
        %4157 = vmatprep.subr.bf16.mxu0 %v3786
        %4158 = vmatpush1.bf16.msra.mxu0 %v3785
        %4159 = vmatprep.subr.bf16.mxu0 %v3778
        %4160 = vmatpush1.bf16.msra.mxu0 %v3777
        %4161 = vmatprep.subr.bf16.mxu0 %v3770
        %4162 = vmatpush1.bf16.msra.mxu0 %v3769
        %4163 = vmatprep.subr.bf16.mxu0 %v3762
        %4164 = vmatpush1.bf16.msra.mxu0 %v3761
        %4165 = vmatprep.subr.bf16.mxu0 %v3754
        %4166 = vmatpush1.bf16.msra.mxu0 %v3753
        %4167 = vmatprep.subr.bf16.mxu0 %v3874
        %4168 = vmatpush2.bf16.msra.mxu0 %v3873
        %4169 = vmatprep.subr.bf16.mxu0 %v3866
        %4170 = vmatpush2.bf16.msra.mxu0 %v3865
        %4171 = vmatprep.subr.bf16.mxu0 %v3858
        %4172 = vmatpush2.bf16.msra.mxu0 %v3857
        %4173 = vmatprep.subr.bf16.mxu0 %v3850
        %4174 = vmatpush2.bf16.msra.mxu0 %v3849
        %4175 = vmatprep.subr.bf16.mxu0 %v3842
        %4176 = vmatpush2.bf16.msra.mxu0 %v3841
        %4177 = vmatprep.subr.bf16.mxu0 %v3834
        %4178 = vmatpush2.bf16.msra.mxu0 %v3833
        %4179 = vmatprep.subr.bf16.mxu0 %v3826
        %4180 = vmatpush2.bf16.msra.mxu0 %v3825
        %4181 = vmatprep.subr.bf16.mxu0 %v3818
        %4182 = vmatpush2.bf16.msra.mxu0 %v3817
        %4183 = vmatprep.mubr.bf16.mxu0 %v3188
        %4184 = vmatmul.mubr.bf16.gmra.mxu0 %v3187
        %v4185 = vpop.f32.mrf.mxu0
        %v4186 = vadd.f32 %v3344, %v4185
        %v4187 = vpop.f32.mrf.mxu0
        %v4188 = vadd.f32 %v3348, %v4187
        %v4189 = vpop.f32.mrf.mxu0
        %v4190 = vadd.f32 %v3344, %v4189
        %v4191 = vpop.f32.mrf.mxu0
        %v4192 = vadd.f32 %v3348, %v4191
        %4193 = vmatprep.mubr.bf16.mxu0 %v3190
        %4194 = vmatmul.mubr.bf16.gmra.mxu0 %v3189
        %v4195 = vpop.f32.mrf.mxu0
        %v4196 = vadd.f32 %v3344, %v4195
        %v4197 = vpop.f32.mrf.mxu0
        %v4198 = vadd.f32 %v3348, %v4197
        %v4199 = vpop.f32.mrf.mxu0
        %v4200 = vadd.f32 %v3344, %v4199
        %v4201 = vpop.f32.mrf.mxu0
        %v4202 = vadd.f32 %v3348, %v4201
        %4203 = vmatprep.mubr.bf16.mxu0 %v3192
        %4204 = vmatmul.mubr.bf16.gmra.mxu0 %v3191
        %v4205 = vpop.f32.mrf.mxu0
        %v4206 = vadd.f32 %v3344, %v4205
        %v4207 = vpop.f32.mrf.mxu0
        %v4208 = vadd.f32 %v3348, %v4207
        %v4209 = vpop.f32.mrf.mxu0
        %v4210 = vadd.f32 %v3344, %v4209
        %v4211 = vpop.f32.mrf.mxu0
        %v4212 = vadd.f32 %v3348, %v4211
        %4213 = vmatprep.mubr.bf16.mxu0 %v3194
        %4214 = vmatmul.mubr.bf16.gmra.mxu0 %v3193
        %v4215 = vpop.f32.mrf.mxu0
        %v4216 = vadd.f32 %v3344, %v4215
        %v4217 = vpop.f32.mrf.mxu0
        %v4218 = vadd.f32 %v3348, %v4217
        %v4219 = vpop.f32.mrf.mxu0
        %v4220 = vadd.f32 %v3344, %v4219
        %v4221 = vpop.f32.mrf.mxu0
        %v4222 = vadd.f32 %v3348, %v4221
        %4223 = vdwg.mxu0
        %4224 = vmatprep.subr.bf16.mxu0 %v3812
        %4225 = vmatpush1.bf16.msra.mxu0 %v3811
        %4226 = vmatprep.subr.bf16.mxu0 %v3804
        %4227 = vmatpush1.bf16.msra.mxu0 %v3803
        %4228 = vmatprep.subr.bf16.mxu0 %v3796
        %4229 = vmatpush1.bf16.msra.mxu0 %v3795
        %4230 = vmatprep.subr.bf16.mxu0 %v3788
        %4231 = vmatpush1.bf16.msra.mxu0 %v3787
        %4232 = vmatprep.subr.bf16.mxu0 %v3780
        %4233 = vmatpush1.bf16.msra.mxu0 %v3779
        %4234 = vmatprep.subr.bf16.mxu0 %v3772
        %4235 = vmatpush1.bf16.msra.mxu0 %v3771
        %4236 = vmatprep.subr.bf16.mxu0 %v3764
        %4237 = vmatpush1.bf16.msra.mxu0 %v3763
        %4238 = vmatprep.subr.bf16.mxu0 %v3756
        %4239 = vmatpush1.bf16.msra.mxu0 %v3755
        %4240 = vmatprep.subr.bf16.mxu0 %v3876
        %4241 = vmatpush2.bf16.msra.mxu0 %v3875
        %4242 = vmatprep.subr.bf16.mxu0 %v3868
        %4243 = vmatpush2.bf16.msra.mxu0 %v3867
        %4244 = vmatprep.subr.bf16.mxu0 %v3860
        %4245 = vmatpush2.bf16.msra.mxu0 %v3859
        %4246 = vmatprep.subr.bf16.mxu0 %v3852
        %4247 = vmatpush2.bf16.msra.mxu0 %v3851
        %4248 = vmatprep.subr.bf16.mxu0 %v3844
        %4249 = vmatpush2.bf16.msra.mxu0 %v3843
        %4250 = vmatprep.subr.bf16.mxu0 %v3836
        %4251 = vmatpush2.bf16.msra.mxu0 %v3835
        %4252 = vmatprep.subr.bf16.mxu0 %v3828
        %4253 = vmatpush2.bf16.msra.mxu0 %v3827
        %4254 = vmatprep.subr.bf16.mxu0 %v3820
        %4255 = vmatpush2.bf16.msra.mxu0 %v3819
        %4256 = vmatprep.mubr.bf16.mxu0 %v3188
        %4257 = vmatmul.mubr.bf16.gmra.mxu0 %v3187
        %v4258 = vpop.f32.mrf.mxu0
        %v4259 = vadd.f32 %v3352, %v4258
        %v4260 = vpop.f32.mrf.mxu0
        %v4261 = vadd.f32 %v3356, %v4260
        %v4262 = vpop.f32.mrf.mxu0
        %v4263 = vadd.f32 %v3352, %v4262
        %v4264 = vpop.f32.mrf.mxu0
        %v4265 = vadd.f32 %v3356, %v4264
        %4266 = vmatprep.mubr.bf16.mxu0 %v3190
        %4267 = vmatmul.mubr.bf16.gmra.mxu0 %v3189
        %v4268 = vpop.f32.mrf.mxu0
        %v4269 = vadd.f32 %v3352, %v4268
        %v4270 = vpop.f32.mrf.mxu0
        %v4271 = vadd.f32 %v3356, %v4270
        %v4272 = vpop.f32.mrf.mxu0
        %v4273 = vadd.f32 %v3352, %v4272
        %v4274 = vpop.f32.mrf.mxu0
        %v4275 = vadd.f32 %v3356, %v4274
        %4276 = vmatprep.mubr.bf16.mxu0 %v3192
        %4277 = vmatmul.mubr.bf16.gmra.mxu0 %v3191
        %v4278 = vpop.f32.mrf.mxu0
        %v4279 = vadd.f32 %v3352, %v4278
        %v4280 = vpop.f32.mrf.mxu0
        %v4281 = vadd.f32 %v3356, %v4280
        %v4282 = vpop.f32.mrf.mxu0
        %v4283 = vadd.f32 %v3352, %v4282
        %v4284 = vpop.f32.mrf.mxu0
        %v4285 = vadd.f32 %v3356, %v4284
        %4286 = vmatprep.mubr.bf16.mxu0 %v3194
        %4287 = vmatmul.mubr.bf16.gmra.mxu0 %v3193
        %v4288 = vpop.f32.mrf.mxu0
        %v4289 = vadd.f32 %v3352, %v4288
        %v4290 = vpop.f32.mrf.mxu0
        %v4291 = vadd.f32 %v3356, %v4290
        %v4292 = vpop.f32.mrf.mxu0
        %v4293 = vadd.f32 %v3352, %v4292
        %v4294 = vpop.f32.mrf.mxu0
        %v4295 = vadd.f32 %v3356, %v4294
        %4296 = vdwg.mxu0
        %v4297 = vmul.f32 %v4040, %v4040
        %v4298 = vmul.f32 %v4042, %v4042
        %v4299 = vmul.f32 %v4113, %v4113
        %v4300 = vmul.f32 %v4115, %v4115
        %v4301 = vmul.f32 %v4186, %v4186
        %v4302 = vmul.f32 %v4188, %v4188
        %v4303 = vmul.f32 %v4259, %v4259
        %v4304 = vmul.f32 %v4261, %v4261
        %v4305 = vmul.f32 %v4044, %v4044
        %v4306 = vmul.f32 %v4046, %v4046
        %v4307 = vmul.f32 %v4117, %v4117
        %v4308 = vmul.f32 %v4119, %v4119
        %v4309 = vmul.f32 %v4190, %v4190
        %v4310 = vmul.f32 %v4192, %v4192
        %v4311 = vmul.f32 %v4263, %v4263
        %v4312 = vmul.f32 %v4265, %v4265
        %v4313 = vmul.f32 %v4050, %v4050
        %v4314 = vmul.f32 %v4052, %v4052
        %v4315 = vmul.f32 %v4123, %v4123
        %v4316 = vmul.f32 %v4125, %v4125
        %v4317 = vmul.f32 %v4196, %v4196
        %v4318 = vmul.f32 %v4198, %v4198
        %v4319 = vmul.f32 %v4269, %v4269
        %v4320 = vmul.f32 %v4271, %v4271
        %v4321 = vmul.f32 %v4054, %v4054
        %v4322 = vmul.f32 %v4056, %v4056
        %v4323 = vmul.f32 %v4127, %v4127
        %v4324 = vmul.f32 %v4129, %v4129
        %v4325 = vmul.f32 %v4200, %v4200
        %v4326 = vmul.f32 %v4202, %v4202
        %v4327 = vmul.f32 %v4273, %v4273
        %v4328 = vmul.f32 %v4275, %v4275
        %v4329 = vmul.f32 %v4060, %v4060
        %v4330 = vmul.f32 %v4062, %v4062
        %v4331 = vmul.f32 %v4133, %v4133
        %v4332 = vmul.f32 %v4135, %v4135
        %v4333 = vmul.f32 %v4206, %v4206
        %v4334 = vmul.f32 %v4208, %v4208
        %v4335 = vmul.f32 %v4279, %v4279
        %v4336 = vmul.f32 %v4281, %v4281
        %v4337 = vmul.f32 %v4064, %v4064
        %v4338 = vmul.f32 %v4066, %v4066
        %v4339 = vmul.f32 %v4137, %v4137
        %v4340 = vmul.f32 %v4139, %v4139
        %v4341 = vmul.f32 %v4210, %v4210
        %v4342 = vmul.f32 %v4212, %v4212
        %v4343 = vmul.f32 %v4283, %v4283
        %v4344 = vmul.f32 %v4285, %v4285
        %v4345 = vmul.f32 %v4070, %v4070
        %v4346 = vmul.f32 %v4072, %v4072
        %v4347 = vmul.f32 %v4143, %v4143
        %v4348 = vmul.f32 %v4145, %v4145
        %v4349 = vmul.f32 %v4216, %v4216
        %v4350 = vmul.f32 %v4218, %v4218
        %v4351 = vmul.f32 %v4289, %v4289
        %v4352 = vmul.f32 %v4291, %v4291
        %v4353 = vmul.f32 %v4074, %v4074
        %v4354 = vmul.f32 %v4076, %v4076
        %v4355 = vmul.f32 %v4147, %v4147
        %v4356 = vmul.f32 %v4149, %v4149
        %v4357 = vmul.f32 %v4220, %v4220
        %v4358 = vmul.f32 %v4222, %v4222
        %v4359 = vmul.f32 %v4293, %v4293
        %v4360 = vmul.f32 %v4295, %v4295
        %v4361 = vmul.f32 %v4040, %v4297
        %v4362 = vmul.f32 %v4042, %v4298
        %v4363 = vmul.f32 %v4113, %v4299
        %v4364 = vmul.f32 %v4115, %v4300
        %v4365 = vmul.f32 %v4186, %v4301
        %v4366 = vmul.f32 %v4188, %v4302
        %v4367 = vmul.f32 %v4259, %v4303
        %v4368 = vmul.f32 %v4261, %v4304
        %v4369 = vmul.f32 %v4044, %v4305
        %v4370 = vmul.f32 %v4046, %v4306
        %v4371 = vmul.f32 %v4117, %v4307
        %v4372 = vmul.f32 %v4119, %v4308
        %v4373 = vmul.f32 %v4190, %v4309
        %v4374 = vmul.f32 %v4192, %v4310
        %v4375 = vmul.f32 %v4263, %v4311
        %v4376 = vmul.f32 %v4265, %v4312
        %v4377 = vmul.f32 %v4050, %v4313
        %v4378 = vmul.f32 %v4052, %v4314
        %v4379 = vmul.f32 %v4123, %v4315
        %v4380 = vmul.f32 %v4125, %v4316
        %v4381 = vmul.f32 %v4196, %v4317
        %v4382 = vmul.f32 %v4198, %v4318
        %v4383 = vmul.f32 %v4269, %v4319
        %v4384 = vmul.f32 %v4271, %v4320
        %v4385 = vmul.f32 %v4054, %v4321
        %v4386 = vmul.f32 %v4056, %v4322
        %v4387 = vmul.f32 %v4127, %v4323
        %v4388 = vmul.f32 %v4129, %v4324
        %v4389 = vmul.f32 %v4200, %v4325
        %v4390 = vmul.f32 %v4202, %v4326
        %v4391 = vmul.f32 %v4273, %v4327
        %v4392 = vmul.f32 %v4275, %v4328
        %v4393 = vmul.f32 %v4060, %v4329
        %v4394 = vmul.f32 %v4062, %v4330
        %v4395 = vmul.f32 %v4133, %v4331
        %v4396 = vmul.f32 %v4135, %v4332
        %v4397 = vmul.f32 %v4206, %v4333
        %v4398 = vmul.f32 %v4208, %v4334
        %v4399 = vmul.f32 %v4279, %v4335
        %v4400 = vmul.f32 %v4281, %v4336
        %v4401 = vmul.f32 %v4064, %v4337
        %v4402 = vmul.f32 %v4066, %v4338
        %v4403 = vmul.f32 %v4137, %v4339
        %v4404 = vmul.f32 %v4139, %v4340
        %v4405 = vmul.f32 %v4210, %v4341
        %v4406 = vmul.f32 %v4212, %v4342
        %v4407 = vmul.f32 %v4283, %v4343
        %v4408 = vmul.f32 %v4285, %v4344
        %v4409 = vmul.f32 %v4070, %v4345
        %v4410 = vmul.f32 %v4072, %v4346
        %v4411 = vmul.f32 %v4143, %v4347
        %v4412 = vmul.f32 %v4145, %v4348
        %v4413 = vmul.f32 %v4216, %v4349
        %v4414 = vmul.f32 %v4218, %v4350
        %v4415 = vmul.f32 %v4289, %v4351
        %v4416 = vmul.f32 %v4291, %v4352
        %v4417 = vmul.f32 %v4074, %v4353
        %v4418 = vmul.f32 %v4076, %v4354
        %v4419 = vmul.f32 %v4147, %v4355
        %v4420 = vmul.f32 %v4149, %v4356
        %v4421 = vmul.f32 %v4220, %v4357
        %v4422 = vmul.f32 %v4222, %v4358
        %v4423 = vmul.f32 %v4293, %v4359
        %v4424 = vmul.f32 %v4295, %v4360
        %v4425 = vmul.f32 %v4361, 0.044715
        %v4426 = vmul.f32 %v4362, 0.044715
        %v4427 = vmul.f32 %v4363, 0.044715
        %v4428 = vmul.f32 %v4364, 0.044715
        %v4429 = vmul.f32 %v4365, 0.044715
        %v4430 = vmul.f32 %v4366, 0.044715
        %v4431 = vmul.f32 %v4367, 0.044715
        %v4432 = vmul.f32 %v4368, 0.044715
        %v4433 = vmul.f32 %v4369, 0.044715
        %v4434 = vmul.f32 %v4370, 0.044715
        %v4435 = vmul.f32 %v4371, 0.044715
        %v4436 = vmul.f32 %v4372, 0.044715
        %v4437 = vmul.f32 %v4373, 0.044715
        %v4438 = vmul.f32 %v4374, 0.044715
        %v4439 = vmul.f32 %v4375, 0.044715
        %v4440 = vmul.f32 %v4376, 0.044715
        %v4441 = vmul.f32 %v4377, 0.044715
        %v4442 = vmul.f32 %v4378, 0.044715
        %v4443 = vmul.f32 %v4379, 0.044715
        %v4444 = vmul.f32 %v4380, 0.044715
        %v4445 = vmul.f32 %v4381, 0.044715
        %v4446 = vmul.f32 %v4382, 0.044715
        %v4447 = vmul.f32 %v4383, 0.044715
        %v4448 = vmul.f32 %v4384, 0.044715
        %v4449 = vmul.f32 %v4385, 0.044715
        %v4450 = vmul.f32 %v4386, 0.044715
        %v4451 = vmul.f32 %v4387, 0.044715
        %v4452 = vmul.f32 %v4388, 0.044715
        %v4453 = vmul.f32 %v4389, 0.044715
        %v4454 = vmul.f32 %v4390, 0.044715
        %v4455 = vmul.f32 %v4391, 0.044715
        %v4456 = vmul.f32 %v4392, 0.044715
        %v4457 = vmul.f32 %v4393, 0.044715
        %v4458 = vmul.f32 %v4394, 0.044715
        %v4459 = vmul.f32 %v4395, 0.044715
        %v4460 = vmul.f32 %v4396, 0.044715
        %v4461 = vmul.f32 %v4397, 0.044715
        %v4462 = vmul.f32 %v4398, 0.044715
        %v4463 = vmul.f32 %v4399, 0.044715
        %v4464 = vmul.f32 %v4400, 0.044715
        %v4465 = vmul.f32 %v4401, 0.044715
        %v4466 = vmul.f32 %v4402, 0.044715
        %v4467 = vmul.f32 %v4403, 0.044715
        %v4468 = vmul.f32 %v4404, 0.044715
        %v4469 = vmul.f32 %v4405, 0.044715
        %v4470 = vmul.f32 %v4406, 0.044715
        %v4471 = vmul.f32 %v4407, 0.044715
        %v4472 = vmul.f32 %v4408, 0.044715
        %v4473 = vmul.f32 %v4409, 0.044715
        %v4474 = vmul.f32 %v4410, 0.044715
        %v4475 = vmul.f32 %v4411, 0.044715
        %v4476 = vmul.f32 %v4412, 0.044715
        %v4477 = vmul.f32 %v4413, 0.044715
        %v4478 = vmul.f32 %v4414, 0.044715
        %v4479 = vmul.f32 %v4415, 0.044715
        %v4480 = vmul.f32 %v4416, 0.044715
        %v4481 = vmul.f32 %v4417, 0.044715
        %v4482 = vmul.f32 %v4418, 0.044715
        %v4483 = vmul.f32 %v4419, 0.044715
        %v4484 = vmul.f32 %v4420, 0.044715
        %v4485 = vmul.f32 %v4421, 0.044715
        %v4486 = vmul.f32 %v4422, 0.044715
        %v4487 = vmul.f32 %v4423, 0.044715
        %v4488 = vmul.f32 %v4424, 0.044715
        %v4489 = vadd.f32 %v4040, %v4425
        %v4490 = vadd.f32 %v4042, %v4426
        %v4491 = vadd.f32 %v4113, %v4427
        %v4492 = vadd.f32 %v4115, %v4428
        %v4493 = vadd.f32 %v4186, %v4429
        %v4494 = vadd.f32 %v4188, %v4430
        %v4495 = vadd.f32 %v4259, %v4431
        %v4496 = vadd.f32 %v4261, %v4432
        %v4497 = vadd.f32 %v4044, %v4433
        %v4498 = vadd.f32 %v4046, %v4434
        %v4499 = vadd.f32 %v4117, %v4435
        %v4500 = vadd.f32 %v4119, %v4436
        %v4501 = vadd.f32 %v4190, %v4437
        %v4502 = vadd.f32 %v4192, %v4438
        %v4503 = vadd.f32 %v4263, %v4439
        %v4504 = vadd.f32 %v4265, %v4440
        %v4505 = vadd.f32 %v4050, %v4441
        %v4506 = vadd.f32 %v4052, %v4442
        %v4507 = vadd.f32 %v4123, %v4443
        %v4508 = vadd.f32 %v4125, %v4444
        %v4509 = vadd.f32 %v4196, %v4445
        %v4510 = vadd.f32 %v4198, %v4446
        %v4511 = vadd.f32 %v4269, %v4447
        %v4512 = vadd.f32 %v4271, %v4448
        %v4513 = vadd.f32 %v4054, %v4449
        %v4514 = vadd.f32 %v4056, %v4450
        %v4515 = vadd.f32 %v4127, %v4451
        %v4516 = vadd.f32 %v4129, %v4452
        %v4517 = vadd.f32 %v4200, %v4453
        %v4518 = vadd.f32 %v4202, %v4454
        %v4519 = vadd.f32 %v4273, %v4455
        %v4520 = vadd.f32 %v4275, %v4456
        %v4521 = vadd.f32 %v4060, %v4457
        %v4522 = vadd.f32 %v4062, %v4458
        %v4523 = vadd.f32 %v4133, %v4459
        %v4524 = vadd.f32 %v4135, %v4460
        %v4525 = vadd.f32 %v4206, %v4461
        %v4526 = vadd.f32 %v4208, %v4462
        %v4527 = vadd.f32 %v4279, %v4463
        %v4528 = vadd.f32 %v4281, %v4464
        %v4529 = vadd.f32 %v4064, %v4465
        %v4530 = vadd.f32 %v4066, %v4466
        %v4531 = vadd.f32 %v4137, %v4467
        %v4532 = vadd.f32 %v4139, %v4468
        %v4533 = vadd.f32 %v4210, %v4469
        %v4534 = vadd.f32 %v4212, %v4470
        %v4535 = vadd.f32 %v4283, %v4471
        %v4536 = vadd.f32 %v4285, %v4472
        %v4537 = vadd.f32 %v4070, %v4473
        %v4538 = vadd.f32 %v4072, %v4474
        %v4539 = vadd.f32 %v4143, %v4475
        %v4540 = vadd.f32 %v4145, %v4476
        %v4541 = vadd.f32 %v4216, %v4477
        %v4542 = vadd.f32 %v4218, %v4478
        %v4543 = vadd.f32 %v4289, %v4479
        %v4544 = vadd.f32 %v4291, %v4480
        %v4545 = vadd.f32 %v4074, %v4481
        %v4546 = vadd.f32 %v4076, %v4482
        %v4547 = vadd.f32 %v4147, %v4483
        %v4548 = vadd.f32 %v4149, %v4484
        %v4549 = vadd.f32 %v4220, %v4485
        %v4550 = vadd.f32 %v4222, %v4486
        %v4551 = vadd.f32 %v4293, %v4487
        %v4552 = vadd.f32 %v4295, %v4488
        %v4553 = vmul.f32 %v4489, 0.7978846
        %v4554 = vmul.f32 %v4490, 0.7978846
        %v4555 = vmul.f32 %v4491, 0.7978846
        %v4556 = vmul.f32 %v4492, 0.7978846
        %v4557 = vmul.f32 %v4493, 0.7978846
        %v4558 = vmul.f32 %v4494, 0.7978846
        %v4559 = vmul.f32 %v4495, 0.7978846
        %v4560 = vmul.f32 %v4496, 0.7978846
        %v4561 = vmul.f32 %v4497, 0.7978846
        %v4562 = vmul.f32 %v4498, 0.7978846
        %v4563 = vmul.f32 %v4499, 0.7978846
        %v4564 = vmul.f32 %v4500, 0.7978846
        %v4565 = vmul.f32 %v4501, 0.7978846
        %v4566 = vmul.f32 %v4502, 0.7978846
        %v4567 = vmul.f32 %v4503, 0.7978846
        %v4568 = vmul.f32 %v4504, 0.7978846
        %v4569 = vmul.f32 %v4505, 0.7978846
        %v4570 = vmul.f32 %v4506, 0.7978846
        %v4571 = vmul.f32 %v4507, 0.7978846
        %v4572 = vmul.f32 %v4508, 0.7978846
        %v4573 = vmul.f32 %v4509, 0.7978846
        %v4574 = vmul.f32 %v4510, 0.7978846
        %v4575 = vmul.f32 %v4511, 0.7978846
        %v4576 = vmul.f32 %v4512, 0.7978846
        %v4577 = vmul.f32 %v4513, 0.7978846
        %v4578 = vmul.f32 %v4514, 0.7978846
        %v4579 = vmul.f32 %v4515, 0.7978846
        %v4580 = vmul.f32 %v4516, 0.7978846
        %v4581 = vmul.f32 %v4517, 0.7978846
        %v4582 = vmul.f32 %v4518, 0.7978846
        %v4583 = vmul.f32 %v4519, 0.7978846
        %v4584 = vmul.f32 %v4520, 0.7978846
        %v4585 = vmul.f32 %v4521, 0.7978846
        %v4586 = vmul.f32 %v4522, 0.7978846
        %v4587 = vmul.f32 %v4523, 0.7978846
        %v4588 = vmul.f32 %v4524, 0.7978846
        %v4589 = vmul.f32 %v4525, 0.7978846
        %v4590 = vmul.f32 %v4526, 0.7978846
        %v4591 = vmul.f32 %v4527, 0.7978846
        %v4592 = vmul.f32 %v4528, 0.7978846
        %v4593 = vmul.f32 %v4529, 0.7978846
        %v4594 = vmul.f32 %v4530, 0.7978846
        %v4595 = vmul.f32 %v4531, 0.7978846
        %v4596 = vmul.f32 %v4532, 0.7978846
        %v4597 = vmul.f32 %v4533, 0.7978846
        %v4598 = vmul.f32 %v4534, 0.7978846
        %v4599 = vmul.f32 %v4535, 0.7978846
        %v4600 = vmul.f32 %v4536, 0.7978846
        %v4601 = vmul.f32 %v4537, 0.7978846
        %v4602 = vmul.f32 %v4538, 0.7978846
        %v4603 = vmul.f32 %v4539, 0.7978846
        %v4604 = vmul.f32 %v4540, 0.7978846
        %v4605 = vmul.f32 %v4541, 0.7978846
        %v4606 = vmul.f32 %v4542, 0.7978846
        %v4607 = vmul.f32 %v4543, 0.7978846
        %v4608 = vmul.f32 %v4544, 0.7978846
        %v4609 = vmul.f32 %v4545, 0.7978846
        %v4610 = vmul.f32 %v4546, 0.7978846
        %v4611 = vmul.f32 %v4547, 0.7978846
        %v4612 = vmul.f32 %v4548, 0.7978846
        %v4613 = vmul.f32 %v4549, 0.7978846
        %v4614 = vmul.f32 %v4550, 0.7978846
        %v4615 = vmul.f32 %v4551, 0.7978846
        %v4616 = vmul.f32 %v4552, 0.7978846
        %v4617 = vtanh.pop %v4553
        %v4618 = vtanh.pop %v4554
        %v4619 = vtanh.pop %v4555
        %v4620 = vtanh.pop %v4556
        %v4621 = vtanh.pop %v4557
        %v4622 = vtanh.pop %v4558
        %v4623 = vtanh.pop %v4559
        %v4624 = vtanh.pop %v4560
        %v4625 = vtanh.pop %v4561
        %v4626 = vtanh.pop %v4562
        %v4627 = vtanh.pop %v4563
        %v4628 = vtanh.pop %v4564
        %v4629 = vtanh.pop %v4565
        %v4630 = vtanh.pop %v4566
        %v4631 = vtanh.pop %v4567
        %v4632 = vtanh.pop %v4568
        %v4633 = vtanh.pop %v4569
        %v4634 = vtanh.pop %v4570
        %v4635 = vtanh.pop %v4571
        %v4636 = vtanh.pop %v4572
        %v4637 = vtanh.pop %v4573
        %v4638 = vtanh.pop %v4574
        %v4639 = vtanh.pop %v4575
        %v4640 = vtanh.pop %v4576
        %v4641 = vtanh.pop %v4577
        %v4642 = vtanh.pop %v4578
        %v4643 = vtanh.pop %v4579
        %v4644 = vtanh.pop %v4580
        %v4645 = vtanh.pop %v4581
        %v4646 = vtanh.pop %v4582
        %v4647 = vtanh.pop %v4583
        %v4648 = vtanh.pop %v4584
        %v4649 = vtanh.pop %v4585
        %v4650 = vtanh.pop %v4586
        %v4651 = vtanh.pop %v4587
        %v4652 = vtanh.pop %v4588
        %v4653 = vtanh.pop %v4589
        %v4654 = vtanh.pop %v4590
        %v4655 = vtanh.pop %v4591
        %v4656 = vtanh.pop %v4592
        %v4657 = vtanh.pop %v4593
        %v4658 = vtanh.pop %v4594
        %v4659 = vtanh.pop %v4595
        %v4660 = vtanh.pop %v4596
        %v4661 = vtanh.pop %v4597
        %v4662 = vtanh.pop %v4598
        %v4663 = vtanh.pop %v4599
        %v4664 = vtanh.pop %v4600
        %v4665 = vtanh.pop %v4601
        %v4666 = vtanh.pop %v4602
        %v4667 = vtanh.pop %v4603
        %v4668 = vtanh.pop %v4604
        %v4669 = vtanh.pop %v4605
        %v4670 = vtanh.pop %v4606
        %v4671 = vtanh.pop %v4607
        %v4672 = vtanh.pop %v4608
        %v4673 = vtanh.pop %v4609
        %v4674 = vtanh.pop %v4610
        %v4675 = vtanh.pop %v4611
        %v4676 = vtanh.pop %v4612
        %v4677 = vtanh.pop %v4613
        %v4678 = vtanh.pop %v4614
        %v4679 = vtanh.pop %v4615
        %v4680 = vtanh.pop %v4616
        %v4681 = vadd.f32 %v4617, 1.0
        %v4682 = vadd.f32 %v4618, 1.0
        %v4683 = vadd.f32 %v4619, 1.0
        %v4684 = vadd.f32 %v4620, 1.0
        %v4685 = vadd.f32 %v4621, 1.0
        %v4686 = vadd.f32 %v4622, 1.0
        %v4687 = vadd.f32 %v4623, 1.0
        %v4688 = vadd.f32 %v4624, 1.0
        %v4689 = vadd.f32 %v4625, 1.0
        %v4690 = vadd.f32 %v4626, 1.0
        %v4691 = vadd.f32 %v4627, 1.0
        %v4692 = vadd.f32 %v4628, 1.0
        %v4693 = vadd.f32 %v4629, 1.0
        %v4694 = vadd.f32 %v4630, 1.0
        %v4695 = vadd.f32 %v4631, 1.0
        %v4696 = vadd.f32 %v4632, 1.0
        %v4697 = vadd.f32 %v4633, 1.0
        %v4698 = vadd.f32 %v4634, 1.0
        %v4699 = vadd.f32 %v4635, 1.0
        %v4700 = vadd.f32 %v4636, 1.0
        %v4701 = vadd.f32 %v4637, 1.0
        %v4702 = vadd.f32 %v4638, 1.0
        %v4703 = vadd.f32 %v4639, 1.0
        %v4704 = vadd.f32 %v4640, 1.0
        %v4705 = vadd.f32 %v4641, 1.0
        %v4706 = vadd.f32 %v4642, 1.0
        %v4707 = vadd.f32 %v4643, 1.0
        %v4708 = vadd.f32 %v4644, 1.0
        %v4709 = vadd.f32 %v4645, 1.0
        %v4710 = vadd.f32 %v4646, 1.0
        %v4711 = vadd.f32 %v4647, 1.0
        %v4712 = vadd.f32 %v4648, 1.0
        %v4713 = vadd.f32 %v4649, 1.0
        %v4714 = vadd.f32 %v4650, 1.0
        %v4715 = vadd.f32 %v4651, 1.0
        %v4716 = vadd.f32 %v4652, 1.0
        %v4717 = vadd.f32 %v4653, 1.0
        %v4718 = vadd.f32 %v4654, 1.0
        %v4719 = vadd.f32 %v4655, 1.0
        %v4720 = vadd.f32 %v4656, 1.0
        %v4721 = vadd.f32 %v4657, 1.0
        %v4722 = vadd.f32 %v4658, 1.0
        %v4723 = vadd.f32 %v4659, 1.0
        %v4724 = vadd.f32 %v4660, 1.0
        %v4725 = vadd.f32 %v4661, 1.0
        %v4726 = vadd.f32 %v4662, 1.0
        %v4727 = vadd.f32 %v4663, 1.0
        %v4728 = vadd.f32 %v4664, 1.0
        %v4729 = vadd.f32 %v4665, 1.0
        %v4730 = vadd.f32 %v4666, 1.0
        %v4731 = vadd.f32 %v4667, 1.0
        %v4732 = vadd.f32 %v4668, 1.0
        %v4733 = vadd.f32 %v4669, 1.0
        %v4734 = vadd.f32 %v4670, 1.0
        %v4735 = vadd.f32 %v4671, 1.0
        %v4736 = vadd.f32 %v4672, 1.0
        %v4737 = vadd.f32 %v4673, 1.0
        %v4738 = vadd.f32 %v4674, 1.0
        %v4739 = vadd.f32 %v4675, 1.0
        %v4740 = vadd.f32 %v4676, 1.0
        %v4741 = vadd.f32 %v4677, 1.0
        %v4742 = vadd.f32 %v4678, 1.0
        %v4743 = vadd.f32 %v4679, 1.0
        %v4744 = vadd.f32 %v4680, 1.0
        %v4745 = vmul.f32 %v4681, 0.5
        %v4746 = vmul.f32 %v4682, 0.5
        %v4747 = vmul.f32 %v4683, 0.5
        %v4748 = vmul.f32 %v4684, 0.5
        %v4749 = vmul.f32 %v4685, 0.5
        %v4750 = vmul.f32 %v4686, 0.5
        %v4751 = vmul.f32 %v4687, 0.5
        %v4752 = vmul.f32 %v4688, 0.5
        %v4753 = vmul.f32 %v4689, 0.5
        %v4754 = vmul.f32 %v4690, 0.5
        %v4755 = vmul.f32 %v4691, 0.5
        %v4756 = vmul.f32 %v4692, 0.5
        %v4757 = vmul.f32 %v4693, 0.5
        %v4758 = vmul.f32 %v4694, 0.5
        %v4759 = vmul.f32 %v4695, 0.5
        %v4760 = vmul.f32 %v4696, 0.5
        %v4761 = vmul.f32 %v4697, 0.5
        %v4762 = vmul.f32 %v4698, 0.5
        %v4763 = vmul.f32 %v4699, 0.5
        %v4764 = vmul.f32 %v4700, 0.5
        %v4765 = vmul.f32 %v4701, 0.5
        %v4766 = vmul.f32 %v4702, 0.5
        %v4767 = vmul.f32 %v4703, 0.5
        %v4768 = vmul.f32 %v4704, 0.5
        %v4769 = vmul.f32 %v4705, 0.5
        %v4770 = vmul.f32 %v4706, 0.5
        %v4771 = vmul.f32 %v4707, 0.5
        %v4772 = vmul.f32 %v4708, 0.5
        %v4773 = vmul.f32 %v4709, 0.5
        %v4774 = vmul.f32 %v4710, 0.5
        %v4775 = vmul.f32 %v4711, 0.5
        %v4776 = vmul.f32 %v4712, 0.5
        %v4777 = vmul.f32 %v4713, 0.5
        %v4778 = vmul.f32 %v4714, 0.5
        %v4779 = vmul.f32 %v4715, 0.5
        %v4780 = vmul.f32 %v4716, 0.5
        %v4781 = vmul.f32 %v4717, 0.5
        %v4782 = vmul.f32 %v4718, 0.5
        %v4783 = vmul.f32 %v4719, 0.5
        %v4784 = vmul.f32 %v4720, 0.5
        %v4785 = vmul.f32 %v4721, 0.5
        %v4786 = vmul.f32 %v4722, 0.5
        %v4787 = vmul.f32 %v4723, 0.5
        %v4788 = vmul.f32 %v4724, 0.5
        %v4789 = vmul.f32 %v4725, 0.5
        %v4790 = vmul.f32 %v4726, 0.5
        %v4791 = vmul.f32 %v4727, 0.5
        %v4792 = vmul.f32 %v4728, 0.5
        %v4793 = vmul.f32 %v4729, 0.5
        %v4794 = vmul.f32 %v4730, 0.5
        %v4795 = vmul.f32 %v4731, 0.5
        %v4796 = vmul.f32 %v4732, 0.5
        %v4797 = vmul.f32 %v4733, 0.5
        %v4798 = vmul.f32 %v4734, 0.5
        %v4799 = vmul.f32 %v4735, 0.5
        %v4800 = vmul.f32 %v4736, 0.5
        %v4801 = vmul.f32 %v4737, 0.5
        %v4802 = vmul.f32 %v4738, 0.5
        %v4803 = vmul.f32 %v4739, 0.5
        %v4804 = vmul.f32 %v4740, 0.5
        %v4805 = vmul.f32 %v4741, 0.5
        %v4806 = vmul.f32 %v4742, 0.5
        %v4807 = vmul.f32 %v4743, 0.5
        %v4808 = vmul.f32 %v4744, 0.5
        %v4809 = vmul.f32 %v4040, %v4745
        %v4810 = vmul.f32 %v4042, %v4746
        %v4811 = vmul.f32 %v4113, %v4747
        %v4812 = vmul.f32 %v4115, %v4748
        %v4813 = vmul.f32 %v4186, %v4749
        %v4814 = vmul.f32 %v4188, %v4750
        %v4815 = vmul.f32 %v4259, %v4751
        %v4816 = vmul.f32 %v4261, %v4752
        %v4817 = vmul.f32 %v4044, %v4753
        %v4818 = vmul.f32 %v4046, %v4754
        %v4819 = vmul.f32 %v4117, %v4755
        %v4820 = vmul.f32 %v4119, %v4756
        %v4821 = vmul.f32 %v4190, %v4757
        %v4822 = vmul.f32 %v4192, %v4758
        %v4823 = vmul.f32 %v4263, %v4759
        %v4824 = vmul.f32 %v4265, %v4760
        %v4825 = vmul.f32 %v4050, %v4761
        %v4826 = vmul.f32 %v4052, %v4762
        %v4827 = vmul.f32 %v4123, %v4763
        %v4828 = vmul.f32 %v4125, %v4764
        %v4829 = vmul.f32 %v4196, %v4765
        %v4830 = vmul.f32 %v4198, %v4766
        %v4831 = vmul.f32 %v4269, %v4767
        %v4832 = vmul.f32 %v4271, %v4768
        %v4833 = vmul.f32 %v4054, %v4769
        %v4834 = vmul.f32 %v4056, %v4770
        %v4835 = vmul.f32 %v4127, %v4771
        %v4836 = vmul.f32 %v4129, %v4772
        %v4837 = vmul.f32 %v4200, %v4773
        %v4838 = vmul.f32 %v4202, %v4774
        %v4839 = vmul.f32 %v4273, %v4775
        %v4840 = vmul.f32 %v4275, %v4776
        %v4841 = vmul.f32 %v4060, %v4777
        %v4842 = vmul.f32 %v4062, %v4778
        %v4843 = vmul.f32 %v4133, %v4779
        %v4844 = vmul.f32 %v4135, %v4780
        %v4845 = vmul.f32 %v4206, %v4781
        %v4846 = vmul.f32 %v4208, %v4782
        %v4847 = vmul.f32 %v4279, %v4783
        %v4848 = vmul.f32 %v4281, %v4784
        %v4849 = vmul.f32 %v4064, %v4785
        %v4850 = vmul.f32 %v4066, %v4786
        %v4851 = vmul.f32 %v4137, %v4787
        %v4852 = vmul.f32 %v4139, %v4788
        %v4853 = vmul.f32 %v4210, %v4789
        %v4854 = vmul.f32 %v4212, %v4790
        %v4855 = vmul.f32 %v4283, %v4791
        %v4856 = vmul.f32 %v4285, %v4792
        %v4857 = vmul.f32 %v4070, %v4793
        %v4858 = vmul.f32 %v4072, %v4794
        %v4859 = vmul.f32 %v4143, %v4795
        %v4860 = vmul.f32 %v4145, %v4796
        %v4861 = vmul.f32 %v4216, %v4797
        %v4862 = vmul.f32 %v4218, %v4798
        %v4863 = vmul.f32 %v4289, %v4799
        %v4864 = vmul.f32 %v4291, %v4800
        %v4865 = vmul.f32 %v4074, %v4801
        %v4866 = vmul.f32 %v4076, %v4802
        %v4867 = vmul.f32 %v4147, %v4803
        %v4868 = vmul.f32 %v4149, %v4804
        %v4869 = vmul.f32 %v4220, %v4805
        %v4870 = vmul.f32 %v4222, %v4806
        %v4871 = vmul.f32 %v4293, %v4807
        %v4872 = vmul.f32 %v4295, %v4808
        %v4873 = vpack.c.bf16 %v4817, %v4809
        %v4874 = vpack.c.bf16 %v4818, %v4810
        %v4875 = vpack.c.bf16 %v4819, %v4811
        %v4876 = vpack.c.bf16 %v4820, %v4812
        %v4877 = vpack.c.bf16 %v4821, %v4813
        %v4878 = vpack.c.bf16 %v4822, %v4814
        %v4879 = vpack.c.bf16 %v4823, %v4815
        %v4880 = vpack.c.bf16 %v4824, %v4816
        %v4881 = vpack.c.bf16 %v4833, %v4825
        %v4882 = vpack.c.bf16 %v4834, %v4826
        %v4883 = vpack.c.bf16 %v4835, %v4827
        %v4884 = vpack.c.bf16 %v4836, %v4828
        %v4885 = vpack.c.bf16 %v4837, %v4829
        %v4886 = vpack.c.bf16 %v4838, %v4830
        %v4887 = vpack.c.bf16 %v4839, %v4831
        %v4888 = vpack.c.bf16 %v4840, %v4832
        %v4889 = vpack.c.bf16 %v4849, %v4841
        %v4890 = vpack.c.bf16 %v4850, %v4842
        %v4891 = vpack.c.bf16 %v4851, %v4843
        %v4892 = vpack.c.bf16 %v4852, %v4844
        %v4893 = vpack.c.bf16 %v4853, %v4845
        %v4894 = vpack.c.bf16 %v4854, %v4846
        %v4895 = vpack.c.bf16 %v4855, %v4847
        %v4896 = vpack.c.bf16 %v4856, %v4848
        %v4897 = vpack.c.bf16 %v4865, %v4857
        %v4898 = vpack.c.bf16 %v4866, %v4858
        %v4899 = vpack.c.bf16 %v4867, %v4859
        %v4900 = vpack.c.bf16 %v4868, %v4860
        %v4901 = vpack.c.bf16 %v4869, %v4861
        %v4902 = vpack.c.bf16 %v4870, %v4862
        %v4903 = vpack.c.bf16 %v4871, %v4863
        %v4904 = vpack.c.bf16 %v4872, %v4864
        %v4905 = vld [vmem:[%s776] sm:$0xff]
        %v4906 = vld [vmem:[%s776 + $0x8] sm:$0xff]
        %v4907 = vld [vmem:[%s776 + $0x10] sm:$0xff]
        %v4908 = vld [vmem:[%s776 + $0x18] sm:$0xff]
        %v4909 = vld [vmem:[%s776 + $0x20] sm:$0xff]
        %v4910 = vld [vmem:[%s776 + $0x28] sm:$0xff]
        %v4911 = vld [vmem:[%s776 + $0x30] sm:$0xff]
        %v4912 = vld [vmem:[%s776 + $0x38] sm:$0xff]
        %v4913 = vld [vmem:[%s776 + $0x40] sm:$0xff]
        %v4914 = vld [vmem:[%s776 + $0x48] sm:$0xff]
        %v4915 = vld [vmem:[%s776 + $0x50] sm:$0xff]
        %v4916 = vld [vmem:[%s776 + $0x58] sm:$0xff]
        %v4917 = vld [vmem:[%s776 + $0x60] sm:$0xff]
        %v4918 = vld [vmem:[%s776 + $0x68] sm:$0xff]
        %v4919 = vld [vmem:[%s776 + $0x70] sm:$0xff]
        %v4920 = vld [vmem:[%s776 + $0x78] sm:$0xff]
        %v4921 = vld [vmem:[%s776 + $0x80] sm:$0xff]
        %v4922 = vld [vmem:[%s776 + $0x88] sm:$0xff]
        %v4923 = vld [vmem:[%s776 + $0x90] sm:$0xff]
        %v4924 = vld [vmem:[%s776 + $0x98] sm:$0xff]
        %v4925 = vld [vmem:[%s776 + $0xa0] sm:$0xff]
        %v4926 = vld [vmem:[%s776 + $0xa8] sm:$0xff]
        %v4927 = vld [vmem:[%s776 + $0xb0] sm:$0xff]
        %v4928 = vld [vmem:[%s776 + $0xb8] sm:$0xff]
        %v4929 = vld [vmem:[%s776 + $0xc0] sm:$0xff]
        %v4930 = vld [vmem:[%s776 + $0xc8] sm:$0xff]
        %v4931 = vld [vmem:[%s776 + $0xd0] sm:$0xff]
        %v4932 = vld [vmem:[%s776 + $0xd8] sm:$0xff]
        %v4933 = vld [vmem:[%s776 + $0xe0] sm:$0xff]
        %v4934 = vld [vmem:[%s776 + $0xe8] sm:$0xff]
        %v4935 = vld [vmem:[%s776 + $0xf0] sm:$0xff]
        %v4936 = vld [vmem:[%s776 + $0xf8] sm:$0xff]
        %v4937 = vld [vmem:[%s776 + $0x100] sm:$0xff]
        %v4938 = vld [vmem:[%s776 + $0x108] sm:$0xff]
        %v4939 = vld [vmem:[%s776 + $0x110] sm:$0xff]
        %v4940 = vld [vmem:[%s776 + $0x118] sm:$0xff]
        %v4941 = vld [vmem:[%s776 + $0x120] sm:$0xff]
        %v4942 = vld [vmem:[%s776 + $0x128] sm:$0xff]
        %v4943 = vld [vmem:[%s776 + $0x130] sm:$0xff]
        %v4944 = vld [vmem:[%s776 + $0x138] sm:$0xff]
        %v4945 = vld [vmem:[%s776 + $0x140] sm:$0xff]
        %v4946 = vld [vmem:[%s776 + $0x148] sm:$0xff]
        %v4947 = vld [vmem:[%s776 + $0x150] sm:$0xff]
        %v4948 = vld [vmem:[%s776 + $0x158] sm:$0xff]
        %v4949 = vld [vmem:[%s776 + $0x160] sm:$0xff]
        %v4950 = vld [vmem:[%s776 + $0x168] sm:$0xff]
        %v4951 = vld [vmem:[%s776 + $0x170] sm:$0xff]
        %v4952 = vld [vmem:[%s776 + $0x178] sm:$0xff]
        %v4953 = vld [vmem:[%s776 + $0x180] sm:$0xff]
        %v4954 = vld [vmem:[%s776 + $0x188] sm:$0xff]
        %v4955 = vld [vmem:[%s776 + $0x190] sm:$0xff]
        %v4956 = vld [vmem:[%s776 + $0x198] sm:$0xff]
        %v4957 = vld [vmem:[%s776 + $0x1a0] sm:$0xff]
        %v4958 = vld [vmem:[%s776 + $0x1a8] sm:$0xff]
        %v4959 = vld [vmem:[%s776 + $0x1b0] sm:$0xff]
        %v4960 = vld [vmem:[%s776 + $0x1b8] sm:$0xff]
        %v4961 = vld [vmem:[%s776 + $0x1c0] sm:$0xff]
        %v4962 = vld [vmem:[%s776 + $0x1c8] sm:$0xff]
        %v4963 = vld [vmem:[%s776 + $0x1d0] sm:$0xff]
        %v4964 = vld [vmem:[%s776 + $0x1d8] sm:$0xff]
        %v4965 = vld [vmem:[%s776 + $0x1e0] sm:$0xff]
        %v4966 = vld [vmem:[%s776 + $0x1e8] sm:$0xff]
        %v4967 = vld [vmem:[%s776 + $0x1f0] sm:$0xff]
        %v4968 = vld [vmem:[%s776 + $0x1f8] sm:$0xff]
        %v4969 = vld [vmem:[%s776 + $0x200] sm:$0xff]
        %v4970 = vld [vmem:[%s776 + $0x208] sm:$0xff]
        %v4971 = vld [vmem:[%s776 + $0x210] sm:$0xff]
        %v4972 = vld [vmem:[%s776 + $0x218] sm:$0xff]
        %v4973 = vld [vmem:[%s776 + $0x220] sm:$0xff]
        %v4974 = vld [vmem:[%s776 + $0x228] sm:$0xff]
        %v4975 = vld [vmem:[%s776 + $0x230] sm:$0xff]
        %v4976 = vld [vmem:[%s776 + $0x238] sm:$0xff]
        %v4977 = vld [vmem:[%s776 + $0x240] sm:$0xff]
        %v4978 = vld [vmem:[%s776 + $0x248] sm:$0xff]
        %v4979 = vld [vmem:[%s776 + $0x250] sm:$0xff]
        %v4980 = vld [vmem:[%s776 + $0x258] sm:$0xff]
        %v4981 = vld [vmem:[%s776 + $0x260] sm:$0xff]
        %v4982 = vld [vmem:[%s776 + $0x268] sm:$0xff]
        %v4983 = vld [vmem:[%s776 + $0x270] sm:$0xff]
        %v4984 = vld [vmem:[%s776 + $0x278] sm:$0xff]
        %v4985 = vld [vmem:[%s776 + $0x280] sm:$0xff]
        %v4986 = vld [vmem:[%s776 + $0x288] sm:$0xff]
        %v4987 = vld [vmem:[%s776 + $0x290] sm:$0xff]
        %v4988 = vld [vmem:[%s776 + $0x298] sm:$0xff]
        %v4989 = vld [vmem:[%s776 + $0x2a0] sm:$0xff]
        %v4990 = vld [vmem:[%s776 + $0x2a8] sm:$0xff]
        %v4991 = vld [vmem:[%s776 + $0x2b0] sm:$0xff]
        %v4992 = vld [vmem:[%s776 + $0x2b8] sm:$0xff]
        %v4993 = vld [vmem:[%s776 + $0x2c0] sm:$0xff]
        %v4994 = vld [vmem:[%s776 + $0x2c8] sm:$0xff]
        %v4995 = vld [vmem:[%s776 + $0x2d0] sm:$0xff]
        %v4996 = vld [vmem:[%s776 + $0x2d8] sm:$0xff]
        %v4997 = vld [vmem:[%s776 + $0x2e0] sm:$0xff]
        %v4998 = vld [vmem:[%s776 + $0x2e8] sm:$0xff]
        %v4999 = vld [vmem:[%s776 + $0x2f0] sm:$0xff]
        %v5000 = vld [vmem:[%s776 + $0x2f8] sm:$0xff]
        %v5001 = vld [vmem:[%s776 + $0x300] sm:$0xff]
        %v5002 = vld [vmem:[%s776 + $0x308] sm:$0xff]
        %v5003 = vld [vmem:[%s776 + $0x310] sm:$0xff]
        %v5004 = vld [vmem:[%s776 + $0x318] sm:$0xff]
        %v5005 = vld [vmem:[%s776 + $0x320] sm:$0xff]
        %v5006 = vld [vmem:[%s776 + $0x328] sm:$0xff]
        %v5007 = vld [vmem:[%s776 + $0x330] sm:$0xff]
        %v5008 = vld [vmem:[%s776 + $0x338] sm:$0xff]
        %v5009 = vld [vmem:[%s776 + $0x340] sm:$0xff]
        %v5010 = vld [vmem:[%s776 + $0x348] sm:$0xff]
        %v5011 = vld [vmem:[%s776 + $0x350] sm:$0xff]
        %v5012 = vld [vmem:[%s776 + $0x358] sm:$0xff]
        %v5013 = vld [vmem:[%s776 + $0x360] sm:$0xff]
        %v5014 = vld [vmem:[%s776 + $0x368] sm:$0xff]
        %v5015 = vld [vmem:[%s776 + $0x370] sm:$0xff]
        %v5016 = vld [vmem:[%s776 + $0x378] sm:$0xff]
        %v5017 = vld [vmem:[%s776 + $0x380] sm:$0xff]
        %v5018 = vld [vmem:[%s776 + $0x388] sm:$0xff]
        %v5019 = vld [vmem:[%s776 + $0x390] sm:$0xff]
        %v5020 = vld [vmem:[%s776 + $0x398] sm:$0xff]
        %v5021 = vld [vmem:[%s776 + $0x3a0] sm:$0xff]
        %v5022 = vld [vmem:[%s776 + $0x3a8] sm:$0xff]
        %v5023 = vld [vmem:[%s776 + $0x3b0] sm:$0xff]
        %v5024 = vld [vmem:[%s776 + $0x3b8] sm:$0xff]
        %v5025 = vld [vmem:[%s776 + $0x3c0] sm:$0xff]
        %v5026 = vld [vmem:[%s776 + $0x3c8] sm:$0xff]
        %v5027 = vld [vmem:[%s776 + $0x3d0] sm:$0xff]
        %v5028 = vld [vmem:[%s776 + $0x3d8] sm:$0xff]
        %v5029 = vld [vmem:[%s776 + $0x3e0] sm:$0xff]
        %v5030 = vld [vmem:[%s776 + $0x3e8] sm:$0xff]
        %v5031 = vld [vmem:[%s776 + $0x3f0] sm:$0xff]
        %v5032 = vld [vmem:[%s776 + $0x3f8] sm:$0xff]
        %v5033 = vld [vmem:[%s874] sm:$0x3]
        %v5035 = vlaneseq
        %v5036 = vshrl.u32 %v5035, 7
        %v5037 = vsub.s32 0, %v5036
        %v5038 = vrot.slane %v5033, %v5037
        %v5039 = vlaneseq
        %v5040 = vshrl.u32 %v5039, 7
        %v5041 = vsub.s32 1, %v5040
        %v5042 = vrot.slane %v5033, %v5041
        %v5173 = vunpack.c.l.b16 %v4905
        %v5174 = vunpack.c.h.b16 %v4905
        %v5175 = vunpack.c.l.b16 %v4906
        %v5176 = vunpack.c.h.b16 %v4906
        %v5177 = vunpack.c.l.b16 %v4907
        %v5178 = vunpack.c.h.b16 %v4907
        %v5179 = vunpack.c.l.b16 %v4908
        %v5180 = vunpack.c.h.b16 %v4908
        %v5181 = vunpack.c.l.b16 %v4909
        %v5182 = vunpack.c.h.b16 %v4909
        %v5183 = vunpack.c.l.b16 %v4910
        %v5184 = vunpack.c.h.b16 %v4910
        %v5185 = vunpack.c.l.b16 %v4911
        %v5186 = vunpack.c.h.b16 %v4911
        %v5187 = vunpack.c.l.b16 %v4912
        %v5188 = vunpack.c.h.b16 %v4912
        %v5189 = vunpack.c.l.b16 %v4913
        %v5190 = vunpack.c.h.b16 %v4913
        %v5191 = vunpack.c.l.b16 %v4914
        %v5192 = vunpack.c.h.b16 %v4914
        %v5193 = vunpack.c.l.b16 %v4915
        %v5194 = vunpack.c.h.b16 %v4915
        %v5195 = vunpack.c.l.b16 %v4916
        %v5196 = vunpack.c.h.b16 %v4916
        %v5197 = vunpack.c.l.b16 %v4917
        %v5198 = vunpack.c.h.b16 %v4917
        %v5199 = vunpack.c.l.b16 %v4918
        %v5200 = vunpack.c.h.b16 %v4918
        %v5201 = vunpack.c.l.b16 %v4919
        %v5202 = vunpack.c.h.b16 %v4919
        %v5203 = vunpack.c.l.b16 %v4920
        %v5204 = vunpack.c.h.b16 %v4920
        %v5205 = vunpack.c.l.b16 %v4921
        %v5206 = vunpack.c.h.b16 %v4921
        %v5207 = vunpack.c.l.b16 %v4922
        %v5208 = vunpack.c.h.b16 %v4922
        %v5209 = vunpack.c.l.b16 %v4923
        %v5210 = vunpack.c.h.b16 %v4923
        %v5211 = vunpack.c.l.b16 %v4924
        %v5212 = vunpack.c.h.b16 %v4924
        %v5213 = vunpack.c.l.b16 %v4925
        %v5214 = vunpack.c.h.b16 %v4925
        %v5215 = vunpack.c.l.b16 %v4926
        %v5216 = vunpack.c.h.b16 %v4926
        %v5217 = vunpack.c.l.b16 %v4927
        %v5218 = vunpack.c.h.b16 %v4927
        %v5219 = vunpack.c.l.b16 %v4928
        %v5220 = vunpack.c.h.b16 %v4928
        %v5221 = vunpack.c.l.b16 %v4929
        %v5222 = vunpack.c.h.b16 %v4929
        %v5223 = vunpack.c.l.b16 %v4930
        %v5224 = vunpack.c.h.b16 %v4930
        %v5225 = vunpack.c.l.b16 %v4931
        %v5226 = vunpack.c.h.b16 %v4931
        %v5227 = vunpack.c.l.b16 %v4932
        %v5228 = vunpack.c.h.b16 %v4932
        %v5229 = vunpack.c.l.b16 %v4933
        %v5230 = vunpack.c.h.b16 %v4933
        %v5231 = vunpack.c.l.b16 %v4934
        %v5232 = vunpack.c.h.b16 %v4934
        %v5233 = vunpack.c.l.b16 %v4935
        %v5234 = vunpack.c.h.b16 %v4935
        %v5235 = vunpack.c.l.b16 %v4936
        %v5236 = vunpack.c.h.b16 %v4936
        %v5237 = vunpack.c.l.b16 %v4937
        %v5238 = vunpack.c.h.b16 %v4937
        %v5239 = vunpack.c.l.b16 %v4938
        %v5240 = vunpack.c.h.b16 %v4938
        %v5241 = vunpack.c.l.b16 %v4939
        %v5242 = vunpack.c.h.b16 %v4939
        %v5243 = vunpack.c.l.b16 %v4940
        %v5244 = vunpack.c.h.b16 %v4940
        %v5245 = vunpack.c.l.b16 %v4941
        %v5246 = vunpack.c.h.b16 %v4941
        %v5247 = vunpack.c.l.b16 %v4942
        %v5248 = vunpack.c.h.b16 %v4942
        %v5249 = vunpack.c.l.b16 %v4943
        %v5250 = vunpack.c.h.b16 %v4943
        %v5251 = vunpack.c.l.b16 %v4944
        %v5252 = vunpack.c.h.b16 %v4944
        %v5253 = vunpack.c.l.b16 %v4945
        %v5254 = vunpack.c.h.b16 %v4945
        %v5255 = vunpack.c.l.b16 %v4946
        %v5256 = vunpack.c.h.b16 %v4946
        %v5257 = vunpack.c.l.b16 %v4947
        %v5258 = vunpack.c.h.b16 %v4947
        %v5259 = vunpack.c.l.b16 %v4948
        %v5260 = vunpack.c.h.b16 %v4948
        %v5261 = vunpack.c.l.b16 %v4949
        %v5262 = vunpack.c.h.b16 %v4949
        %v5263 = vunpack.c.l.b16 %v4950
        %v5264 = vunpack.c.h.b16 %v4950
        %v5265 = vunpack.c.l.b16 %v4951
        %v5266 = vunpack.c.h.b16 %v4951
        %v5267 = vunpack.c.l.b16 %v4952
        %v5268 = vunpack.c.h.b16 %v4952
        %v5269 = vunpack.c.l.b16 %v4953
        %v5270 = vunpack.c.h.b16 %v4953
        %v5271 = vunpack.c.l.b16 %v4954
        %v5272 = vunpack.c.h.b16 %v4954
        %v5273 = vunpack.c.l.b16 %v4955
        %v5274 = vunpack.c.h.b16 %v4955
        %v5275 = vunpack.c.l.b16 %v4956
        %v5276 = vunpack.c.h.b16 %v4956
        %v5277 = vunpack.c.l.b16 %v4957
        %v5278 = vunpack.c.h.b16 %v4957
        %v5279 = vunpack.c.l.b16 %v4958
        %v5280 = vunpack.c.h.b16 %v4958
        %v5281 = vunpack.c.l.b16 %v4959
        %v5282 = vunpack.c.h.b16 %v4959
        %v5283 = vunpack.c.l.b16 %v4960
        %v5284 = vunpack.c.h.b16 %v4960
        %v5285 = vunpack.c.l.b16 %v4961
        %v5286 = vunpack.c.h.b16 %v4961
        %v5287 = vunpack.c.l.b16 %v4962
        %v5288 = vunpack.c.h.b16 %v4962
        %v5289 = vunpack.c.l.b16 %v4963
        %v5290 = vunpack.c.h.b16 %v4963
        %v5291 = vunpack.c.l.b16 %v4964
        %v5292 = vunpack.c.h.b16 %v4964
        %v5293 = vunpack.c.l.b16 %v4965
        %v5294 = vunpack.c.h.b16 %v4965
        %v5295 = vunpack.c.l.b16 %v4966
        %v5296 = vunpack.c.h.b16 %v4966
        %v5297 = vunpack.c.l.b16 %v4967
        %v5298 = vunpack.c.h.b16 %v4967
        %v5299 = vunpack.c.l.b16 %v4968
        %v5300 = vunpack.c.h.b16 %v4968
        %v5301 = vunpack.c.l.b16 %v4969
        %v5302 = vunpack.c.h.b16 %v4969
        %v5303 = vunpack.c.l.b16 %v4970
        %v5304 = vunpack.c.h.b16 %v4970
        %v5305 = vunpack.c.l.b16 %v4971
        %v5306 = vunpack.c.h.b16 %v4971
        %v5307 = vunpack.c.l.b16 %v4972
        %v5308 = vunpack.c.h.b16 %v4972
        %v5309 = vunpack.c.l.b16 %v4973
        %v5310 = vunpack.c.h.b16 %v4973
        %v5311 = vunpack.c.l.b16 %v4974
        %v5312 = vunpack.c.h.b16 %v4974
        %v5313 = vunpack.c.l.b16 %v4975
        %v5314 = vunpack.c.h.b16 %v4975
        %v5315 = vunpack.c.l.b16 %v4976
        %v5316 = vunpack.c.h.b16 %v4976
        %v5317 = vunpack.c.l.b16 %v4977
        %v5318 = vunpack.c.h.b16 %v4977
        %v5319 = vunpack.c.l.b16 %v4978
        %v5320 = vunpack.c.h.b16 %v4978
        %v5321 = vunpack.c.l.b16 %v4979
        %v5322 = vunpack.c.h.b16 %v4979
        %v5323 = vunpack.c.l.b16 %v4980
        %v5324 = vunpack.c.h.b16 %v4980
        %v5325 = vunpack.c.l.b16 %v4981
        %v5326 = vunpack.c.h.b16 %v4981
        %v5327 = vunpack.c.l.b16 %v4982
        %v5328 = vunpack.c.h.b16 %v4982
        %v5329 = vunpack.c.l.b16 %v4983
        %v5330 = vunpack.c.h.b16 %v4983
        %v5331 = vunpack.c.l.b16 %v4984
        %v5332 = vunpack.c.h.b16 %v4984
        %v5333 = vunpack.c.l.b16 %v4985
        %v5334 = vunpack.c.h.b16 %v4985
        %v5335 = vunpack.c.l.b16 %v4986
        %v5336 = vunpack.c.h.b16 %v4986
        %v5337 = vunpack.c.l.b16 %v4987
        %v5338 = vunpack.c.h.b16 %v4987
        %v5339 = vunpack.c.l.b16 %v4988
        %v5340 = vunpack.c.h.b16 %v4988
        %v5341 = vunpack.c.l.b16 %v4989
        %v5342 = vunpack.c.h.b16 %v4989
        %v5343 = vunpack.c.l.b16 %v4990
        %v5344 = vunpack.c.h.b16 %v4990
        %v5345 = vunpack.c.l.b16 %v4991
        %v5346 = vunpack.c.h.b16 %v4991
        %v5347 = vunpack.c.l.b16 %v4992
        %v5348 = vunpack.c.h.b16 %v4992
        %v5349 = vunpack.c.l.b16 %v4993
        %v5350 = vunpack.c.h.b16 %v4993
        %v5351 = vunpack.c.l.b16 %v4994
        %v5352 = vunpack.c.h.b16 %v4994
        %v5353 = vunpack.c.l.b16 %v4995
        %v5354 = vunpack.c.h.b16 %v4995
        %v5355 = vunpack.c.l.b16 %v4996
        %v5356 = vunpack.c.h.b16 %v4996
        %v5357 = vunpack.c.l.b16 %v4997
        %v5358 = vunpack.c.h.b16 %v4997
        %v5359 = vunpack.c.l.b16 %v4998
        %v5360 = vunpack.c.h.b16 %v4998
        %v5361 = vunpack.c.l.b16 %v4999
        %v5362 = vunpack.c.h.b16 %v4999
        %v5363 = vunpack.c.l.b16 %v5000
        %v5364 = vunpack.c.h.b16 %v5000
        %v5365 = vunpack.c.l.b16 %v5001
        %v5366 = vunpack.c.h.b16 %v5001
        %v5367 = vunpack.c.l.b16 %v5002
        %v5368 = vunpack.c.h.b16 %v5002
        %v5369 = vunpack.c.l.b16 %v5003
        %v5370 = vunpack.c.h.b16 %v5003
        %v5371 = vunpack.c.l.b16 %v5004
        %v5372 = vunpack.c.h.b16 %v5004
        %v5373 = vunpack.c.l.b16 %v5005
        %v5374 = vunpack.c.h.b16 %v5005
        %v5375 = vunpack.c.l.b16 %v5006
        %v5376 = vunpack.c.h.b16 %v5006
        %v5377 = vunpack.c.l.b16 %v5007
        %v5378 = vunpack.c.h.b16 %v5007
        %v5379 = vunpack.c.l.b16 %v5008
        %v5380 = vunpack.c.h.b16 %v5008
        %v5381 = vunpack.c.l.b16 %v5009
        %v5382 = vunpack.c.h.b16 %v5009
        %v5383 = vunpack.c.l.b16 %v5010
        %v5384 = vunpack.c.h.b16 %v5010
        %v5385 = vunpack.c.l.b16 %v5011
        %v5386 = vunpack.c.h.b16 %v5011
        %v5387 = vunpack.c.l.b16 %v5012
        %v5388 = vunpack.c.h.b16 %v5012
        %v5389 = vunpack.c.l.b16 %v5013
        %v5390 = vunpack.c.h.b16 %v5013
        %v5391 = vunpack.c.l.b16 %v5014
        %v5392 = vunpack.c.h.b16 %v5014
        %v5393 = vunpack.c.l.b16 %v5015
        %v5394 = vunpack.c.h.b16 %v5015
        %v5395 = vunpack.c.l.b16 %v5016
        %v5396 = vunpack.c.h.b16 %v5016
        %v5397 = vunpack.c.l.b16 %v5017
        %v5398 = vunpack.c.h.b16 %v5017
        %v5399 = vunpack.c.l.b16 %v5018
        %v5400 = vunpack.c.h.b16 %v5018
        %v5401 = vunpack.c.l.b16 %v5019
        %v5402 = vunpack.c.h.b16 %v5019
        %v5403 = vunpack.c.l.b16 %v5020
        %v5404 = vunpack.c.h.b16 %v5020
        %v5405 = vunpack.c.l.b16 %v5021
        %v5406 = vunpack.c.h.b16 %v5021
        %v5407 = vunpack.c.l.b16 %v5022
        %v5408 = vunpack.c.h.b16 %v5022
        %v5409 = vunpack.c.l.b16 %v5023
        %v5410 = vunpack.c.h.b16 %v5023
        %v5411 = vunpack.c.l.b16 %v5024
        %v5412 = vunpack.c.h.b16 %v5024
        %v5413 = vunpack.c.l.b16 %v5025
        %v5414 = vunpack.c.h.b16 %v5025
        %v5415 = vunpack.c.l.b16 %v5026
        %v5416 = vunpack.c.h.b16 %v5026
        %v5417 = vunpack.c.l.b16 %v5027
        %v5418 = vunpack.c.h.b16 %v5027
        %v5419 = vunpack.c.l.b16 %v5028
        %v5420 = vunpack.c.h.b16 %v5028
        %v5421 = vunpack.c.l.b16 %v5029
        %v5422 = vunpack.c.h.b16 %v5029
        %v5423 = vunpack.c.l.b16 %v5030
        %v5424 = vunpack.c.h.b16 %v5030
        %v5425 = vunpack.c.l.b16 %v5031
        %v5426 = vunpack.c.h.b16 %v5031
        %v5427 = vunpack.c.l.b16 %v5032
        %v5428 = vunpack.c.h.b16 %v5032
        %v5429 = vpack.c.b16 %v5175, %v5173
        %v5430 = vpack.c.b16 %v5176, %v5174
        %v5431 = vpack.c.b16 %v5179, %v5177
        %v5432 = vpack.c.b16 %v5180, %v5178
        %v5433 = vpack.c.b16 %v5183, %v5181
        %v5434 = vpack.c.b16 %v5184, %v5182
        %v5435 = vpack.c.b16 %v5187, %v5185
        %v5436 = vpack.c.b16 %v5188, %v5186
        %v5437 = vpack.c.b16 %v5191, %v5189
        %v5438 = vpack.c.b16 %v5192, %v5190
        %v5439 = vpack.c.b16 %v5195, %v5193
        %v5440 = vpack.c.b16 %v5196, %v5194
        %v5441 = vpack.c.b16 %v5199, %v5197
        %v5442 = vpack.c.b16 %v5200, %v5198
        %v5443 = vpack.c.b16 %v5203, %v5201
        %v5444 = vpack.c.b16 %v5204, %v5202
        %v5445 = vpack.c.b16 %v5207, %v5205
        %v5446 = vpack.c.b16 %v5208, %v5206
        %v5447 = vpack.c.b16 %v5211, %v5209
        %v5448 = vpack.c.b16 %v5212, %v5210
        %v5449 = vpack.c.b16 %v5215, %v5213
        %v5450 = vpack.c.b16 %v5216, %v5214
        %v5451 = vpack.c.b16 %v5219, %v5217
        %v5452 = vpack.c.b16 %v5220, %v5218
        %v5453 = vpack.c.b16 %v5223, %v5221
        %v5454 = vpack.c.b16 %v5224, %v5222
        %v5455 = vpack.c.b16 %v5227, %v5225
        %v5456 = vpack.c.b16 %v5228, %v5226
        %v5457 = vpack.c.b16 %v5231, %v5229
        %v5458 = vpack.c.b16 %v5232, %v5230
        %v5459 = vpack.c.b16 %v5235, %v5233
        %v5460 = vpack.c.b16 %v5236, %v5234
        %v5461 = vpack.c.b16 %v5239, %v5237
        %v5462 = vpack.c.b16 %v5240, %v5238
        %v5463 = vpack.c.b16 %v5243, %v5241
        %v5464 = vpack.c.b16 %v5244, %v5242
        %v5465 = vpack.c.b16 %v5247, %v5245
        %v5466 = vpack.c.b16 %v5248, %v5246
        %v5467 = vpack.c.b16 %v5251, %v5249
        %v5468 = vpack.c.b16 %v5252, %v5250
        %v5469 = vpack.c.b16 %v5255, %v5253
        %v5470 = vpack.c.b16 %v5256, %v5254
        %v5471 = vpack.c.b16 %v5259, %v5257
        %v5472 = vpack.c.b16 %v5260, %v5258
        %v5473 = vpack.c.b16 %v5263, %v5261
        %v5474 = vpack.c.b16 %v5264, %v5262
        %v5475 = vpack.c.b16 %v5267, %v5265
        %v5476 = vpack.c.b16 %v5268, %v5266
        %v5477 = vpack.c.b16 %v5271, %v5269
        %v5478 = vpack.c.b16 %v5272, %v5270
        %v5479 = vpack.c.b16 %v5275, %v5273
        %v5480 = vpack.c.b16 %v5276, %v5274
        %v5481 = vpack.c.b16 %v5279, %v5277
        %v5482 = vpack.c.b16 %v5280, %v5278
        %v5483 = vpack.c.b16 %v5283, %v5281
        %v5484 = vpack.c.b16 %v5284, %v5282
        %v5485 = vpack.c.b16 %v5287, %v5285
        %v5486 = vpack.c.b16 %v5288, %v5286
        %v5487 = vpack.c.b16 %v5291, %v5289
        %v5488 = vpack.c.b16 %v5292, %v5290
        %v5489 = vpack.c.b16 %v5295, %v5293
        %v5490 = vpack.c.b16 %v5296, %v5294
        %v5491 = vpack.c.b16 %v5299, %v5297
        %v5492 = vpack.c.b16 %v5300, %v5298
        %v5493 = vpack.c.b16 %v5303, %v5301
        %v5494 = vpack.c.b16 %v5304, %v5302
        %v5495 = vpack.c.b16 %v5307, %v5305
        %v5496 = vpack.c.b16 %v5308, %v5306
        %v5497 = vpack.c.b16 %v5311, %v5309
        %v5498 = vpack.c.b16 %v5312, %v5310
        %v5499 = vpack.c.b16 %v5315, %v5313
        %v5500 = vpack.c.b16 %v5316, %v5314
        %v5501 = vpack.c.b16 %v5319, %v5317
        %v5502 = vpack.c.b16 %v5320, %v5318
        %v5503 = vpack.c.b16 %v5323, %v5321
        %v5504 = vpack.c.b16 %v5324, %v5322
        %v5505 = vpack.c.b16 %v5327, %v5325
        %v5506 = vpack.c.b16 %v5328, %v5326
        %v5507 = vpack.c.b16 %v5331, %v5329
        %v5508 = vpack.c.b16 %v5332, %v5330
        %v5509 = vpack.c.b16 %v5335, %v5333
        %v5510 = vpack.c.b16 %v5336, %v5334
        %v5511 = vpack.c.b16 %v5339, %v5337
        %v5512 = vpack.c.b16 %v5340, %v5338
        %v5513 = vpack.c.b16 %v5343, %v5341
        %v5514 = vpack.c.b16 %v5344, %v5342
        %v5515 = vpack.c.b16 %v5347, %v5345
        %v5516 = vpack.c.b16 %v5348, %v5346
        %v5517 = vpack.c.b16 %v5351, %v5349
        %v5518 = vpack.c.b16 %v5352, %v5350
        %v5519 = vpack.c.b16 %v5355, %v5353
        %v5520 = vpack.c.b16 %v5356, %v5354
        %v5521 = vpack.c.b16 %v5359, %v5357
        %v5522 = vpack.c.b16 %v5360, %v5358
        %v5523 = vpack.c.b16 %v5363, %v5361
        %v5524 = vpack.c.b16 %v5364, %v5362
        %v5525 = vpack.c.b16 %v5367, %v5365
        %v5526 = vpack.c.b16 %v5368, %v5366
        %v5527 = vpack.c.b16 %v5371, %v5369
        %v5528 = vpack.c.b16 %v5372, %v5370
        %v5529 = vpack.c.b16 %v5375, %v5373
        %v5530 = vpack.c.b16 %v5376, %v5374
        %v5531 = vpack.c.b16 %v5379, %v5377
        %v5532 = vpack.c.b16 %v5380, %v5378
        %v5533 = vpack.c.b16 %v5383, %v5381
        %v5534 = vpack.c.b16 %v5384, %v5382
        %v5535 = vpack.c.b16 %v5387, %v5385
        %v5536 = vpack.c.b16 %v5388, %v5386
        %v5537 = vpack.c.b16 %v5391, %v5389
        %v5538 = vpack.c.b16 %v5392, %v5390
        %v5539 = vpack.c.b16 %v5395, %v5393
        %v5540 = vpack.c.b16 %v5396, %v5394
        %v5541 = vpack.c.b16 %v5399, %v5397
        %v5542 = vpack.c.b16 %v5400, %v5398
        %v5543 = vpack.c.b16 %v5403, %v5401
        %v5544 = vpack.c.b16 %v5404, %v5402
        %v5545 = vpack.c.b16 %v5407, %v5405
        %v5546 = vpack.c.b16 %v5408, %v5406
        %v5547 = vpack.c.b16 %v5411, %v5409
        %v5548 = vpack.c.b16 %v5412, %v5410
        %v5549 = vpack.c.b16 %v5415, %v5413
        %v5550 = vpack.c.b16 %v5416, %v5414
        %v5551 = vpack.c.b16 %v5419, %v5417
        %v5552 = vpack.c.b16 %v5420, %v5418
        %v5553 = vpack.c.b16 %v5423, %v5421
        %v5554 = vpack.c.b16 %v5424, %v5422
        %v5555 = vpack.c.b16 %v5427, %v5425
        %v5556 = vpack.c.b16 %v5428, %v5426
        %5685 = vmatprep.subr.bf16.mxu0 %v5444
        %5686 = vmatpush1.bf16.msra.mxu0 %v5443
        %5687 = vmatprep.subr.bf16.mxu0 %v5442
        %5688 = vmatpush1.bf16.msra.mxu0 %v5441
        %5689 = vmatprep.subr.bf16.mxu0 %v5440
        %5690 = vmatpush1.bf16.msra.mxu0 %v5439
        %5691 = vmatprep.subr.bf16.mxu0 %v5438
        %5692 = vmatpush1.bf16.msra.mxu0 %v5437
        %5693 = vmatprep.subr.bf16.mxu0 %v5436
        %5694 = vmatpush1.bf16.msra.mxu0 %v5435
        %5695 = vmatprep.subr.bf16.mxu0 %v5434
        %5696 = vmatpush1.bf16.msra.mxu0 %v5433
        %5697 = vmatprep.subr.bf16.mxu0 %v5432
        %5698 = vmatpush1.bf16.msra.mxu0 %v5431
        %5699 = vmatprep.subr.bf16.mxu0 %v5430
        %5700 = vmatpush1.bf16.msra.mxu0 %v5429
        %5701 = vmatprep.subr.bf16.mxu0 %v5460
        %5702 = vmatpush2.bf16.msra.mxu0 %v5459
        %5703 = vmatprep.subr.bf16.mxu0 %v5458
        %5704 = vmatpush2.bf16.msra.mxu0 %v5457
        %5705 = vmatprep.subr.bf16.mxu0 %v5456
        %5706 = vmatpush2.bf16.msra.mxu0 %v5455
        %5707 = vmatprep.subr.bf16.mxu0 %v5454
        %5708 = vmatpush2.bf16.msra.mxu0 %v5453
        %5709 = vmatprep.subr.bf16.mxu0 %v5452
        %5710 = vmatpush2.bf16.msra.mxu0 %v5451
        %5711 = vmatprep.subr.bf16.mxu0 %v5450
        %5712 = vmatpush2.bf16.msra.mxu0 %v5449
        %5713 = vmatprep.subr.bf16.mxu0 %v5448
        %5714 = vmatpush2.bf16.msra.mxu0 %v5447
        %5715 = vmatprep.subr.bf16.mxu0 %v5446
        %5716 = vmatpush2.bf16.msra.mxu0 %v5445
        %5717 = vmatprep.mubr.bf16.mxu0 %v4874
        %5718 = vmatmul.mubr.bf16.gmra.mxu0 %v4873
        %v5719 = vpop.f32.mrf.mxu0
        %v5720 = vadd.f32 %v5038, %v5719
        %v5721 = vpop.f32.mrf.mxu0
        %v5722 = vadd.f32 %v5042, %v5721
        %v5723 = vpop.f32.mrf.mxu0
        %v5724 = vadd.f32 %v5038, %v5723
        %v5725 = vpop.f32.mrf.mxu0
        %v5726 = vadd.f32 %v5042, %v5725
        %5727 = vmatprep.mubr.bf16.mxu0 %v4882
        %5728 = vmatmul.mubr.bf16.gmra.mxu0 %v4881
        %v5729 = vpop.f32.mrf.mxu0
        %v5730 = vadd.f32 %v5038, %v5729
        %v5731 = vpop.f32.mrf.mxu0
        %v5732 = vadd.f32 %v5042, %v5731
        %v5733 = vpop.f32.mrf.mxu0
        %v5734 = vadd.f32 %v5038, %v5733
        %v5735 = vpop.f32.mrf.mxu0
        %v5736 = vadd.f32 %v5042, %v5735
        %5737 = vmatprep.mubr.bf16.mxu0 %v4890
        %5738 = vmatmul.mubr.bf16.gmra.mxu0 %v4889
        %v5739 = vpop.f32.mrf.mxu0
        %v5740 = vadd.f32 %v5038, %v5739
        %v5741 = vpop.f32.mrf.mxu0
        %v5742 = vadd.f32 %v5042, %v5741
        %v5743 = vpop.f32.mrf.mxu0
        %v5744 = vadd.f32 %v5038, %v5743
        %v5745 = vpop.f32.mrf.mxu0
        %v5746 = vadd.f32 %v5042, %v5745
        %5747 = vmatprep.mubr.bf16.mxu0 %v4898
        %5748 = vmatmul.mubr.bf16.gmra.mxu0 %v4897
        %v5749 = vpop.f32.mrf.mxu0
        %v5750 = vadd.f32 %v5038, %v5749
        %v5751 = vpop.f32.mrf.mxu0
        %v5752 = vadd.f32 %v5042, %v5751
        %v5753 = vpop.f32.mrf.mxu0
        %v5754 = vadd.f32 %v5038, %v5753
        %v5755 = vpop.f32.mrf.mxu0
        %v5756 = vadd.f32 %v5042, %v5755
        %5757 = vdwg.mxu0
        %5758 = vmatprep.subr.bf16.mxu0 %v5476
        %5759 = vmatpush1.bf16.msra.mxu0 %v5475
        %5760 = vmatprep.subr.bf16.mxu0 %v5474
        %5761 = vmatpush1.bf16.msra.mxu0 %v5473
        %5762 = vmatprep.subr.bf16.mxu0 %v5472
        %5763 = vmatpush1.bf16.msra.mxu0 %v5471
        %5764 = vmatprep.subr.bf16.mxu0 %v5470
        %5765 = vmatpush1.bf16.msra.mxu0 %v5469
        %5766 = vmatprep.subr.bf16.mxu0 %v5468
        %5767 = vmatpush1.bf16.msra.mxu0 %v5467
        %5768 = vmatprep.subr.bf16.mxu0 %v5466
        %5769 = vmatpush1.bf16.msra.mxu0 %v5465
        %5770 = vmatprep.subr.bf16.mxu0 %v5464
        %5771 = vmatpush1.bf16.msra.mxu0 %v5463
        %5772 = vmatprep.subr.bf16.mxu0 %v5462
        %5773 = vmatpush1.bf16.msra.mxu0 %v5461
        %5774 = vmatprep.subr.bf16.mxu0 %v5492
        %5775 = vmatpush2.bf16.msra.mxu0 %v5491
        %5776 = vmatprep.subr.bf16.mxu0 %v5490
        %5777 = vmatpush2.bf16.msra.mxu0 %v5489
        %5778 = vmatprep.subr.bf16.mxu0 %v5488
        %5779 = vmatpush2.bf16.msra.mxu0 %v5487
        %5780 = vmatprep.subr.bf16.mxu0 %v5486
        %5781 = vmatpush2.bf16.msra.mxu0 %v5485
        %5782 = vmatprep.subr.bf16.mxu0 %v5484
        %5783 = vmatpush2.bf16.msra.mxu0 %v5483
        %5784 = vmatprep.subr.bf16.mxu0 %v5482
        %5785 = vmatpush2.bf16.msra.mxu0 %v5481
        %5786 = vmatprep.subr.bf16.mxu0 %v5480
        %5787 = vmatpush2.bf16.msra.mxu0 %v5479
        %5788 = vmatprep.subr.bf16.mxu0 %v5478
        %5789 = vmatpush2.bf16.msra.mxu0 %v5477
        %5790 = vmatprep.mubr.bf16.mxu0 %v4876
        %5791 = vmatmul.mubr.bf16.gmra.mxu0 %v4875
        %v5792 = vpop.f32.mrf.mxu0
        %v5793 = vadd.f32 %v5720, %v5792
        %v5794 = vpop.f32.mrf.mxu0
        %v5795 = vadd.f32 %v5722, %v5794
        %v5796 = vpop.f32.mrf.mxu0
        %v5797 = vadd.f32 %v5724, %v5796
        %v5798 = vpop.f32.mrf.mxu0
        %v5799 = vadd.f32 %v5726, %v5798
        %5800 = vmatprep.mubr.bf16.mxu0 %v4884
        %5801 = vmatmul.mubr.bf16.gmra.mxu0 %v4883
        %v5802 = vpop.f32.mrf.mxu0
        %v5803 = vadd.f32 %v5730, %v5802
        %v5804 = vpop.f32.mrf.mxu0
        %v5805 = vadd.f32 %v5732, %v5804
        %v5806 = vpop.f32.mrf.mxu0
        %v5807 = vadd.f32 %v5734, %v5806
        %v5808 = vpop.f32.mrf.mxu0
        %v5809 = vadd.f32 %v5736, %v5808
        %5810 = vmatprep.mubr.bf16.mxu0 %v4892
        %5811 = vmatmul.mubr.bf16.gmra.mxu0 %v4891
        %v5812 = vpop.f32.mrf.mxu0
        %v5813 = vadd.f32 %v5740, %v5812
        %v5814 = vpop.f32.mrf.mxu0
        %v5815 = vadd.f32 %v5742, %v5814
        %v5816 = vpop.f32.mrf.mxu0
        %v5817 = vadd.f32 %v5744, %v5816
        %v5818 = vpop.f32.mrf.mxu0
        %v5819 = vadd.f32 %v5746, %v5818
        %5820 = vmatprep.mubr.bf16.mxu0 %v4900
        %5821 = vmatmul.mubr.bf16.gmra.mxu0 %v4899
        %v5822 = vpop.f32.mrf.mxu0
        %v5823 = vadd.f32 %v5750, %v5822
        %v5824 = vpop.f32.mrf.mxu0
        %v5825 = vadd.f32 %v5752, %v5824
        %v5826 = vpop.f32.mrf.mxu0
        %v5827 = vadd.f32 %v5754, %v5826
        %v5828 = vpop.f32.mrf.mxu0
        %v5829 = vadd.f32 %v5756, %v5828
        %5830 = vdwg.mxu0
        %5831 = vmatprep.subr.bf16.mxu0 %v5508
        %5832 = vmatpush1.bf16.msra.mxu0 %v5507
        %5833 = vmatprep.subr.bf16.mxu0 %v5506
        %5834 = vmatpush1.bf16.msra.mxu0 %v5505
        %5835 = vmatprep.subr.bf16.mxu0 %v5504
        %5836 = vmatpush1.bf16.msra.mxu0 %v5503
        %5837 = vmatprep.subr.bf16.mxu0 %v5502
        %5838 = vmatpush1.bf16.msra.mxu0 %v5501
        %5839 = vmatprep.subr.bf16.mxu0 %v5500
        %5840 = vmatpush1.bf16.msra.mxu0 %v5499
        %5841 = vmatprep.subr.bf16.mxu0 %v5498
        %5842 = vmatpush1.bf16.msra.mxu0 %v5497
        %5843 = vmatprep.subr.bf16.mxu0 %v5496
        %5844 = vmatpush1.bf16.msra.mxu0 %v5495
        %5845 = vmatprep.subr.bf16.mxu0 %v5494
        %5846 = vmatpush1.bf16.msra.mxu0 %v5493
        %5847 = vmatprep.subr.bf16.mxu0 %v5524
        %5848 = vmatpush2.bf16.msra.mxu0 %v5523
        %5849 = vmatprep.subr.bf16.mxu0 %v5522
        %5850 = vmatpush2.bf16.msra.mxu0 %v5521
        %5851 = vmatprep.subr.bf16.mxu0 %v5520
        %5852 = vmatpush2.bf16.msra.mxu0 %v5519
        %5853 = vmatprep.subr.bf16.mxu0 %v5518
        %5854 = vmatpush2.bf16.msra.mxu0 %v5517
        %5855 = vmatprep.subr.bf16.mxu0 %v5516
        %5856 = vmatpush2.bf16.msra.mxu0 %v5515
        %5857 = vmatprep.subr.bf16.mxu0 %v5514
        %5858 = vmatpush2.bf16.msra.mxu0 %v5513
        %5859 = vmatprep.subr.bf16.mxu0 %v5512
        %5860 = vmatpush2.bf16.msra.mxu0 %v5511
        %5861 = vmatprep.subr.bf16.mxu0 %v5510
        %5862 = vmatpush2.bf16.msra.mxu0 %v5509
        %5863 = vmatprep.mubr.bf16.mxu0 %v4878
        %5864 = vmatmul.mubr.bf16.gmra.mxu0 %v4877
        %v5865 = vpop.f32.mrf.mxu0
        %v5866 = vadd.f32 %v5793, %v5865
        %v5867 = vpop.f32.mrf.mxu0
        %v5868 = vadd.f32 %v5795, %v5867
        %v5869 = vpop.f32.mrf.mxu0
        %v5870 = vadd.f32 %v5797, %v5869
        %v5871 = vpop.f32.mrf.mxu0
        %v5872 = vadd.f32 %v5799, %v5871
        %5873 = vmatprep.mubr.bf16.mxu0 %v4886
        %5874 = vmatmul.mubr.bf16.gmra.mxu0 %v4885
        %v5875 = vpop.f32.mrf.mxu0
        %v5876 = vadd.f32 %v5803, %v5875
        %v5877 = vpop.f32.mrf.mxu0
        %v5878 = vadd.f32 %v5805, %v5877
        %v5879 = vpop.f32.mrf.mxu0
        %v5880 = vadd.f32 %v5807, %v5879
        %v5881 = vpop.f32.mrf.mxu0
        %v5882 = vadd.f32 %v5809, %v5881
        %5883 = vmatprep.mubr.bf16.mxu0 %v4894
        %5884 = vmatmul.mubr.bf16.gmra.mxu0 %v4893
        %v5885 = vpop.f32.mrf.mxu0
        %v5886 = vadd.f32 %v5813, %v5885
        %v5887 = vpop.f32.mrf.mxu0
        %v5888 = vadd.f32 %v5815, %v5887
        %v5889 = vpop.f32.mrf.mxu0
        %v5890 = vadd.f32 %v5817, %v5889
        %v5891 = vpop.f32.mrf.mxu0
        %v5892 = vadd.f32 %v5819, %v5891
        %5893 = vmatprep.mubr.bf16.mxu0 %v4902
        %5894 = vmatmul.mubr.bf16.gmra.mxu0 %v4901
        %v5895 = vpop.f32.mrf.mxu0
        %v5896 = vadd.f32 %v5823, %v5895
        %v5897 = vpop.f32.mrf.mxu0
        %v5898 = vadd.f32 %v5825, %v5897
        %v5899 = vpop.f32.mrf.mxu0
        %v5900 = vadd.f32 %v5827, %v5899
        %v5901 = vpop.f32.mrf.mxu0
        %v5902 = vadd.f32 %v5829, %v5901
        %5903 = vdwg.mxu0
        %5904 = vmatprep.subr.bf16.mxu0 %v5540
        %5905 = vmatpush1.bf16.msra.mxu0 %v5539
        %5906 = vmatprep.subr.bf16.mxu0 %v5538
        %5907 = vmatpush1.bf16.msra.mxu0 %v5537
        %5908 = vmatprep.subr.bf16.mxu0 %v5536
        %5909 = vmatpush1.bf16.msra.mxu0 %v5535
        %5910 = vmatprep.subr.bf16.mxu0 %v5534
        %5911 = vmatpush1.bf16.msra.mxu0 %v5533
        %5912 = vmatprep.subr.bf16.mxu0 %v5532
        %5913 = vmatpush1.bf16.msra.mxu0 %v5531
        %5914 = vmatprep.subr.bf16.mxu0 %v5530
        %5915 = vmatpush1.bf16.msra.mxu0 %v5529
        %5916 = vmatprep.subr.bf16.mxu0 %v5528
        %5917 = vmatpush1.bf16.msra.mxu0 %v5527
        %5918 = vmatprep.subr.bf16.mxu0 %v5526
        %5919 = vmatpush1.bf16.msra.mxu0 %v5525
        %5920 = vmatprep.subr.bf16.mxu0 %v5556
        %5921 = vmatpush2.bf16.msra.mxu0 %v5555
        %5922 = vmatprep.subr.bf16.mxu0 %v5554
        %5923 = vmatpush2.bf16.msra.mxu0 %v5553
        %5924 = vmatprep.subr.bf16.mxu0 %v5552
        %5925 = vmatpush2.bf16.msra.mxu0 %v5551
        %5926 = vmatprep.subr.bf16.mxu0 %v5550
        %5927 = vmatpush2.bf16.msra.mxu0 %v5549
        %5928 = vmatprep.subr.bf16.mxu0 %v5548
        %5929 = vmatpush2.bf16.msra.mxu0 %v5547
        %5930 = vmatprep.subr.bf16.mxu0 %v5546
        %5931 = vmatpush2.bf16.msra.mxu0 %v5545
        %5932 = vmatprep.subr.bf16.mxu0 %v5544
        %5933 = vmatpush2.bf16.msra.mxu0 %v5543
        %5934 = vmatprep.subr.bf16.mxu0 %v5542
        %5935 = vmatpush2.bf16.msra.mxu0 %v5541
        %5936 = vmatprep.mubr.bf16.mxu0 %v4880
        %5937 = vmatmul.mubr.bf16.gmra.mxu0 %v4879
        %v5938 = vpop.f32.mrf.mxu0
        %v5939 = vadd.f32 %v5866, %v5938
        %v5940 = vpop.f32.mrf.mxu0
        %v5941 = vadd.f32 %v5868, %v5940
        %v5942 = vpop.f32.mrf.mxu0
        %v5943 = vadd.f32 %v5870, %v5942
        %v5944 = vpop.f32.mrf.mxu0
        %v5945 = vadd.f32 %v5872, %v5944
        %5946 = vmatprep.mubr.bf16.mxu0 %v4888
        %5947 = vmatmul.mubr.bf16.gmra.mxu0 %v4887
        %v5948 = vpop.f32.mrf.mxu0
        %v5949 = vadd.f32 %v5876, %v5948
        %v5950 = vpop.f32.mrf.mxu0
        %v5951 = vadd.f32 %v5878, %v5950
        %v5952 = vpop.f32.mrf.mxu0
        %v5953 = vadd.f32 %v5880, %v5952
        %v5954 = vpop.f32.mrf.mxu0
        %v5955 = vadd.f32 %v5882, %v5954
        %5956 = vmatprep.mubr.bf16.mxu0 %v4896
        %5957 = vmatmul.mubr.bf16.gmra.mxu0 %v4895
        %v5958 = vpop.f32.mrf.mxu0
        %v5959 = vadd.f32 %v5886, %v5958
        %v5960 = vpop.f32.mrf.mxu0
        %v5961 = vadd.f32 %v5888, %v5960
        %v5962 = vpop.f32.mrf.mxu0
        %v5963 = vadd.f32 %v5890, %v5962
        %v5964 = vpop.f32.mrf.mxu0
        %v5965 = vadd.f32 %v5892, %v5964
        %5966 = vmatprep.mubr.bf16.mxu0 %v4904
        %5967 = vmatmul.mubr.bf16.gmra.mxu0 %v4903
        %v5968 = vpop.f32.mrf.mxu0
        %v5969 = vadd.f32 %v5896, %v5968
        %v5970 = vpop.f32.mrf.mxu0
        %v5971 = vadd.f32 %v5898, %v5970
        %v5972 = vpop.f32.mrf.mxu0
        %v5973 = vadd.f32 %v5900, %v5972
        %v5974 = vpop.f32.mrf.mxu0
        %v5975 = vadd.f32 %v5902, %v5974
        %5976 = vdwg.mxu0
        %v5977 = vadd.f32 %v2987, %v5939
        %v5978 = vadd.f32 %v2988, %v5941
        %v5979 = vadd.f32 %v2989, %v5943
        %v5980 = vadd.f32 %v2990, %v5945
        %v5981 = vadd.f32 %v2991, %v5949
        %v5982 = vadd.f32 %v2992, %v5951
        %v5983 = vadd.f32 %v2993, %v5953
        %v5984 = vadd.f32 %v2994, %v5955
        %v5985 = vadd.f32 %v2995, %v5959
        %v5986 = vadd.f32 %v2996, %v5961
        %v5987 = vadd.f32 %v2997, %v5963
        %v5988 = vadd.f32 %v2998, %v5965
        %v5989 = vadd.f32 %v2999, %v5969
        %v5990 = vadd.f32 %v3000, %v5971
        %v5991 = vadd.f32 %v3001, %v5973
        %v5992 = vadd.f32 %v3002, %v5975
        %5993 = vst [vmem:[#allocation2] sm:$0xff] %v5977
        %5994 = vst [vmem:[#allocation2 + $0x8] sm:$0xff] %v5978
        %5995 = vst [vmem:[#allocation2 + $0x10] sm:$0xff] %v5979
        %5996 = vst [vmem:[#allocation2 + $0x18] sm:$0xff] %v5980
        %5997 = vst [vmem:[#allocation2 + $0x20] sm:$0xff] %v5981
        %5998 = vst [vmem:[#allocation2 + $0x28] sm:$0xff] %v5982
        %5999 = vst [vmem:[#allocation2 + $0x30] sm:$0xff] %v5983
        %6000 = vst [vmem:[#allocation2 + $0x38] sm:$0xff] %v5984
        %6001 = vst [vmem:[#allocation2 + $0x40] sm:$0xff] %v5985
        %6002 = vst [vmem:[#allocation2 + $0x48] sm:$0xff] %v5986
        %6003 = vst [vmem:[#allocation2 + $0x50] sm:$0xff] %v5987
        %6004 = vst [vmem:[#allocation2 + $0x58] sm:$0xff] %v5988
        %6005 = vst [vmem:[#allocation2 + $0x60] sm:$0xff] %v5989
        %6006 = vst [vmem:[#allocation2 + $0x68] sm:$0xff] %v5990
        %6007 = vst [vmem:[#allocation2 + $0x70] sm:$0xff] %v5991
        %6008 = vst [vmem:[#allocation2 + $0x78] sm:$0xff] %v5992
        %p6009 = scmp.eq.s32.totalorder %s34, 1
        // Predicated region
        $region129: #{tpu_custom_call.1} parent=79 // pred_check
          %p6010 = pneg %p6009
        $region130: #{tpu_custom_call.1} parent=79 // pred_check_branch
          %6012 = sbr.rel (%p6010) target = $region132
        $region131: #{tpu_custom_call.1} parent=79 // pred_region
          %v6013 = vld [vmem:[%s13] sm:$0x3]
          %v6014 = vld [vmem:[%s14] sm:$0x3]
          %v6015 = vadd.f32 %v5977, %v5978
          %6016 = vadd.xlane.f32.xlu0 %v6015
          %v6017 = vpop.xlane.xlu0 %6016
          %v6018 = vadd.f32 %v5979, %v5980
          %6019 = vadd.xlane.f32.xlu0 %v6018
          %v6020 = vpop.xlane.xlu0 %6019
          %v6021 = vadd.f32 %v5981, %v5982
          %6022 = vadd.xlane.f32.xlu0 %v6021
          %v6023 = vpop.xlane.xlu0 %6022
          %v6024 = vadd.f32 %v5983, %v5984
          %6025 = vadd.xlane.f32.xlu0 %v6024
          %v6026 = vpop.xlane.xlu0 %6025
          %v6027 = vadd.f32 %v5985, %v5986
          %6028 = vadd.xlane.f32.xlu0 %v6027
          %v6029 = vpop.xlane.xlu0 %6028
          %v6030 = vadd.f32 %v5987, %v5988
          %6031 = vadd.xlane.f32.xlu0 %v6030
          %v6032 = vpop.xlane.xlu0 %6031
          %v6033 = vadd.f32 %v5989, %v5990
          %6034 = vadd.xlane.f32.xlu0 %v6033
          %v6035 = vpop.xlane.xlu0 %6034
          %v6036 = vadd.f32 %v5991, %v5992
          %6037 = vadd.xlane.f32.xlu0 %v6036
          %v6038 = vpop.xlane.xlu0 %6037
          %v6039 = vmul.f32 %v6017, %v979
          %v6040 = vmul.f32 %v6020, %v979
          %v6041 = vmul.f32 %v6023, %v979
          %v6042 = vmul.f32 %v6026, %v979
          %v6043 = vmul.f32 %v6029, %v979
          %v6044 = vmul.f32 %v6032, %v979
          %v6045 = vmul.f32 %v6035, %v979
          %v6046 = vmul.f32 %v6038, %v979
          %v6047 = vsub.f32 %v5977, %v6039
          %v6048 = vsub.f32 %v5978, %v6039
          %v6049 = vsub.f32 %v5979, %v6040
          %v6050 = vsub.f32 %v5980, %v6040
          %v6051 = vsub.f32 %v5981, %v6041
          %v6052 = vsub.f32 %v5982, %v6041
          %v6053 = vsub.f32 %v5983, %v6042
          %v6054 = vsub.f32 %v5984, %v6042
          %v6055 = vsub.f32 %v5985, %v6043
          %v6056 = vsub.f32 %v5986, %v6043
          %v6057 = vsub.f32 %v5987, %v6044
          %v6058 = vsub.f32 %v5988, %v6044
          %v6059 = vsub.f32 %v5989, %v6045
          %v6060 = vsub.f32 %v5990, %v6045
          %v6061 = vsub.f32 %v5991, %v6046
          %v6062 = vsub.f32 %v5992, %v6046
          %v6063 = vmul.f32 %v6047, %v6047
          %v6064 = vmul.f32 %v6048, %v6048
          %v6065 = vmul.f32 %v6049, %v6049
          %v6066 = vmul.f32 %v6050, %v6050
          %v6067 = vmul.f32 %v6051, %v6051
          %v6068 = vmul.f32 %v6052, %v6052
          %v6069 = vmul.f32 %v6053, %v6053
          %v6070 = vmul.f32 %v6054, %v6054
          %v6071 = vmul.f32 %v6055, %v6055
          %v6072 = vmul.f32 %v6056, %v6056
          %v6073 = vmul.f32 %v6057, %v6057
          %v6074 = vmul.f32 %v6058, %v6058
          %v6075 = vmul.f32 %v6059, %v6059
          %v6076 = vmul.f32 %v6060, %v6060
          %v6077 = vmul.f32 %v6061, %v6061
          %v6078 = vmul.f32 %v6062, %v6062
          %v6079 = vadd.f32 %v6063, %v6064
          %6080 = vadd.xlane.f32.xlu0 %v6079
          %v6081 = vpop.xlane.xlu0 %6080
          %v6082 = vadd.f32 %v6065, %v6066
          %6083 = vadd.xlane.f32.xlu0 %v6082
          %v6084 = vpop.xlane.xlu0 %6083
          %v6085 = vadd.f32 %v6067, %v6068
          %6086 = vadd.xlane.f32.xlu0 %v6085
          %v6087 = vpop.xlane.xlu0 %6086
          %v6088 = vadd.f32 %v6069, %v6070
          %6089 = vadd.xlane.f32.xlu0 %v6088
          %v6090 = vpop.xlane.xlu0 %6089
          %v6091 = vadd.f32 %v6071, %v6072
          %6092 = vadd.xlane.f32.xlu0 %v6091
          %v6093 = vpop.xlane.xlu0 %6092
          %v6094 = vadd.f32 %v6073, %v6074
          %6095 = vadd.xlane.f32.xlu0 %v6094
          %v6096 = vpop.xlane.xlu0 %6095
          %v6097 = vadd.f32 %v6075, %v6076
          %6098 = vadd.xlane.f32.xlu0 %v6097
          %v6099 = vpop.xlane.xlu0 %6098
          %v6100 = vadd.f32 %v6077, %v6078
          %6101 = vadd.xlane.f32.xlu0 %v6100
          %v6102 = vpop.xlane.xlu0 %6101
          %v6103 = vmul.f32 %v6081, %v979
          %v6104 = vmul.f32 %v6084, %v979
          %v6105 = vmul.f32 %v6087, %v979
          %v6106 = vmul.f32 %v6090, %v979
          %v6107 = vmul.f32 %v6093, %v979
          %v6108 = vmul.f32 %v6096, %v979
          %v6109 = vmul.f32 %v6099, %v979
          %v6110 = vmul.f32 %v6102, %v979
          %v6111 = vadd.f32 %v6103, 1e-05
          %v6112 = vadd.f32 %v6104, 1e-05
          %v6113 = vadd.f32 %v6105, 1e-05
          %v6114 = vadd.f32 %v6106, 1e-05
          %v6115 = vadd.f32 %v6107, 1e-05
          %v6116 = vadd.f32 %v6108, 1e-05
          %v6117 = vadd.f32 %v6109, 1e-05
          %v6118 = vadd.f32 %v6110, 1e-05
          %v6119 = vrsqrt.pop %v6111
          %v6120 = vrsqrt.pop %v6112
          %v6121 = vrsqrt.pop %v6113
          %v6122 = vrsqrt.pop %v6114
          %v6123 = vrsqrt.pop %v6115
          %v6124 = vrsqrt.pop %v6116
          %v6125 = vrsqrt.pop %v6117
          %v6126 = vrsqrt.pop %v6118
          %v6127 = vmul.f32 %v6047, %v6119
          %v6128 = vmul.f32 %v6048, %v6119
          %v6129 = vmul.f32 %v6049, %v6120
          %v6130 = vmul.f32 %v6050, %v6120
          %v6131 = vmul.f32 %v6051, %v6121
          %v6132 = vmul.f32 %v6052, %v6121
          %v6133 = vmul.f32 %v6053, %v6122
          %v6134 = vmul.f32 %v6054, %v6122
          %v6135 = vmul.f32 %v6055, %v6123
          %v6136 = vmul.f32 %v6056, %v6123
          %v6137 = vmul.f32 %v6057, %v6124
          %v6138 = vmul.f32 %v6058, %v6124
          %v6139 = vmul.f32 %v6059, %v6125
          %v6140 = vmul.f32 %v6060, %v6125
          %v6141 = vmul.f32 %v6061, %v6126
          %v6142 = vmul.f32 %v6062, %v6126
          %v6144 = vlaneseq
          %v6145 = vshrl.u32 %v6144, 7
          %v6146 = vsub.s32 0, %v6145
          %v6147 = vrot.slane %v6013, %v6146
          %v6148 = vlaneseq
          %v6149 = vshrl.u32 %v6148, 7
          %v6150 = vsub.s32 1, %v6149
          %v6151 = vrot.slane %v6013, %v6150
          %v6154 = vmul.f32 %v6127, %v6147
          %v6155 = vmul.f32 %v6128, %v6151
          %v6156 = vmul.f32 %v6129, %v6147
          %v6157 = vmul.f32 %v6130, %v6151
          %v6158 = vmul.f32 %v6131, %v6147
          %v6159 = vmul.f32 %v6132, %v6151
          %v6160 = vmul.f32 %v6133, %v6147
          %v6161 = vmul.f32 %v6134, %v6151
          %v6162 = vmul.f32 %v6135, %v6147
          %v6163 = vmul.f32 %v6136, %v6151
          %v6164 = vmul.f32 %v6137, %v6147
          %v6165 = vmul.f32 %v6138, %v6151
          %v6166 = vmul.f32 %v6139, %v6147
          %v6167 = vmul.f32 %v6140, %v6151
          %v6168 = vmul.f32 %v6141, %v6147
          %v6169 = vmul.f32 %v6142, %v6151
          %v6171 = vlaneseq
          %v6172 = vshrl.u32 %v6171, 7
          %v6173 = vsub.s32 0, %v6172
          %v6174 = vrot.slane %v6014, %v6173
          %v6175 = vlaneseq
          %v6176 = vshrl.u32 %v6175, 7
          %v6177 = vsub.s32 1, %v6176
          %v6178 = vrot.slane %v6014, %v6177
          %v6181 = vadd.f32 %v6154, %v6174
          %v6182 = vadd.f32 %v6155, %v6178
          %v6183 = vadd.f32 %v6156, %v6174
          %v6184 = vadd.f32 %v6157, %v6178
          %v6185 = vadd.f32 %v6158, %v6174
          %v6186 = vadd.f32 %v6159, %v6178
          %v6187 = vadd.f32 %v6160, %v6174
          %v6188 = vadd.f32 %v6161, %v6178
          %v6189 = vadd.f32 %v6162, %v6174
          %v6190 = vadd.f32 %v6163, %v6178
          %v6191 = vadd.f32 %v6164, %v6174
          %v6192 = vadd.f32 %v6165, %v6178
          %v6193 = vadd.f32 %v6166, %v6174
          %v6194 = vadd.f32 %v6167, %v6178
          %v6195 = vadd.f32 %v6168, %v6174
          %v6196 = vadd.f32 %v6169, %v6178
          %6197 = vst [vmem:[#allocation18] sm:$0xff] %v6181
          %6198 = vst [vmem:[#allocation18 + $0x8] sm:$0xff] %v6182
          %6199 = vst [vmem:[#allocation18 + $0x10] sm:$0xff] %v6183
          %6200 = vst [vmem:[#allocation18 + $0x18] sm:$0xff] %v6184
          %6201 = vst [vmem:[#allocation18 + $0x20] sm:$0xff] %v6185
          %6202 = vst [vmem:[#allocation18 + $0x28] sm:$0xff] %v6186
          %6203 = vst [vmem:[#allocation18 + $0x30] sm:$0xff] %v6187
          %6204 = vst [vmem:[#allocation18 + $0x38] sm:$0xff] %v6188
          %6205 = vst [vmem:[#allocation18 + $0x40] sm:$0xff] %v6189
          %6206 = vst [vmem:[#allocation18 + $0x48] sm:$0xff] %v6190
          %6207 = vst [vmem:[#allocation18 + $0x50] sm:$0xff] %v6191
          %6208 = vst [vmem:[#allocation18 + $0x58] sm:$0xff] %v6192
          %6209 = vst [vmem:[#allocation18 + $0x60] sm:$0xff] %v6193
          %6210 = vst [vmem:[#allocation18 + $0x68] sm:$0xff] %v6194
          %6211 = vst [vmem:[#allocation18 + $0x70] sm:$0xff] %v6195
          %6212 = vst [vmem:[#allocation18 + $0x78] sm:$0xff] %v6196
        $region132: #{tpu_custom_call.1} parent=79 // pred_fallthru
          _
        // Predicated region
        $region133: #{tpu_custom_call.1} parent=79 // pred_check
          %p6213 = pneg %p434
        $region134: #{tpu_custom_call.1} parent=79 // pred_check_branch
          %6215 = sbr.rel (%p6213) target = $region136
        $region135: #{tpu_custom_call.1} parent=79 // pred_region
          %s6216 = smul.u32 2, %s33
          %s6218 = ssub.s32 2048, 2048
          %6219 = vsyncadd [#allocation6], %s6218
          %s6220 = smul.addr %s6216, 8
          %s6221 = smul.addr %s6220, 128
          %s6222 = scalar_lea.hbm %s15, %s6221
          %s6223 = sshll.u32 [#allocation18], 4
          %s6224 = int_to_ptr.vmem [resolvable:$true] %s6223
          %6229 = dma.vmem_to_hbm [thread:$0]  %s6224, 2048, %s6222, [#allocation6], 256, 256, 16
        $region136: #{tpu_custom_call.1} parent=79 // pred_fallthru
          _
        // Predicated region
        $region137: #{tpu_custom_call.1} parent=79 // pred_check
          %p6230 = pneg %p434
        $region138: #{tpu_custom_call.1} parent=79 // pred_check_branch
          %6232 = sbr.rel (%p6230) target = $region140
        $region139: #{tpu_custom_call.1} parent=79 // pred_region
          %6233 = dma.done [#allocation6], 2048
        $region140: #{tpu_custom_call.1} parent=79 // pred_fallthru
          _
      $region80: #{tpu_custom_call.1} parent=5 // pred_fallthru
        _
      %p6234 = scmp.le.s32.totalorder 2, %s24
      // Predicated region
      $region141: #{tpu_custom_call.1} parent=5 // pred_check
        %p6235 = pneg %p6234
      $region142: #{tpu_custom_call.1} parent=5 // pred_check_branch
        %6237 = sbr.rel (%p6235) target = $region144
      $region143: #{tpu_custom_call.1} parent=5 // pred_region
        %s6238 = ssub.s32 %s24, 2
      $region144: #{tpu_custom_call.1} parent=5 // pred_fallthru
        _
    $region6: #{tpu_custom_call.1} parent=1 // loop_footer
      %s28 = sadd.s32 1, %s24
    $region7: #{tpu_custom_call.1} parent=1 // loop_footer_branch
      %23 = sbr.rel target = $region3
    $region8: #{tpu_custom_call.1} parent=1 // loop_exit
      _
    %6239 = vsyncpa [#allocation5], 1
    %s6240 = scalar_lea.sflag [#allocation5], 1
    %6241 = vsyncpa %s6240, 1
    %6242 = vsyncpa [#allocation8], 1
    %6243 = vsyncpa [#allocation6], 1
    %s6244 = scalar_lea.sflag [#allocation6], 1
    %6245 = vsyncpa %s6244, 1

</llo_original>
